<compile_context>
chip_gen: v6e
topology: v6e:2x2x1
jax: 0.10.0
libtpu: 0.0.40
codegen_flags: <defaults>
</compile_context>

<pallas_src>
import functools
import math

import jax
import jax.numpy as jnp
from jax.experimental import pallas as pl
from jax.experimental.pallas import tpu as pltpu


def transformer_block_kernel(
    x_ref,                      # (block_b, S, D)
    wq_ref, bq_ref,             # (D, D), (1, D)
    wk_ref, bk_ref,
    wv_ref, bv_ref,
    wo_ref, bo_ref,
    w1_ref, b1_ref,             # (D, F), (1, F)
    w2_ref, b2_ref,             # (F, D), (1, D)
    g1_ref, be1_ref,            # LayerNorm1 gamma/beta (1, D)
    g2_ref, be2_ref,            # LayerNorm2 gamma/beta (1, D)
    o_ref,                      # (block_b, S, D)
    attn_ref,                   # VMEM scratch (block_b*S, D) f32 accumulator
    *, n_heads: int,
):
    TB, S, D = x_ref.shape
    H = n_heads
    dk = D // H
    R = TB * S
    scale = 1.0 / math.sqrt(dk)

    # Rows of all block_b batch elements feed the MXU together (big M).
    x = x_ref[...].reshape(R, D)                 # native dtype MXU operand

    def proj(w_ref, b_ref):
        return (jnp.dot(x, w_ref[...], preferred_element_type=jnp.float32)
                + b_ref[...].astype(jnp.float32))

    q = proj(wq_ref, bq_ref) * scale             # fold 1/sqrt(dk) into q
    k = proj(wk_ref, bk_ref)
    v = proj(wv_ref, bv_ref)

    # --- attention; output projection reassociated into the head loop -------
    # ctx_full @ Wo == sum_h ctx_h @ Wo[h*dk:(h+1)*dk, :]  -> no lane concat.
    attn_ref[...] = jnp.zeros_like(attn_ref)
    for b in range(TB):                          # small static loops (TB*H)
        rows = slice(b * S, (b + 1) * S)
        for h in range(H):
            cols = slice(h * dk, (h + 1) * dk)
            qh = q[rows, cols]                   # (S, dk) static slices
            kh = k[rows, cols]
            vh = v[rows, cols]
            # q @ k^T without materializing k^T: contract dk on both operands.
            s = jax.lax.dot_general(
                qh, kh, (((1,), (1,)), ((), ())),
                preferred_element_type=jnp.float32)            # (S, S)
            s = s - jnp.max(s, axis=-1, keepdims=True)
            p = jnp.exp(s)
            p = p * pl.reciprocal(jnp.sum(p, axis=-1, keepdims=True),
                                  approx=True)
            ctx = jnp.dot(p, vh, preferred_element_type=jnp.float32)  # (S, dk)
            attn_ref[rows, :] += jnp.dot(
                ctx.astype(wo_ref.dtype), wo_ref[cols, :],
                preferred_element_type=jnp.float32)

    attn_out = attn_ref[...] + bo_ref[...].astype(jnp.float32)   # (R, D) f32

    def layernorm(t, g_ref, b_ref):              # stats in f32 always
        mu = jnp.mean(t, axis=-1, keepdims=True)
        var = jnp.mean(jnp.square(t - mu), axis=-1, keepdims=True)
        return ((t - mu) * jax.lax.rsqrt(var + 1e-5)
                * g_ref[...].astype(jnp.float32)
                + b_ref[...].astype(jnp.float32))

    # --- residual + LayerNorm1 ---
    x1 = layernorm(x.astype(jnp.float32) + attn_out, g1_ref, be1_ref)

    # --- FFN: Linear -> ReLU -> Linear (full (R, F) hidden; small F here) ---
    h1 = (jnp.dot(x1.astype(w1_ref.dtype), w1_ref[...],
                  preferred_element_type=jnp.float32)
          + b1_ref[...].astype(jnp.float32))
    h1 = jnp.maximum(h1, 0.0)
    ff = (jnp.dot(h1.astype(w2_ref.dtype), w2_ref[...],
                  preferred_element_type=jnp.float32)
          + b2_ref[...].astype(jnp.float32))

    # --- residual + LayerNorm2 ---
    out = layernorm(x1 + ff, g2_ref, be2_ref)
    o_ref[...] = out.reshape(TB, S, D).astype(o_ref.dtype)


def _largest_block_b(B, S, max_rows=256):
    """Largest divisor of B such that block_b * S <= max_rows (MXU-friendly M)."""
    best = 1
    for cand in range(1, B + 1):
        if B % cand == 0 and cand * S <= max_rows:
            best = cand
    return best


def transformer_block(x, params, n_heads, *, block_b=None):
    B, S, D = x.shape
    F = params["w1"].shape[1]
    if block_b is None:
        block_b = _largest_block_b(B, S)
    assert B % block_b == 0

    # Explicit scoped-VMEM budget: resident weights (double-buffered by the
    # pipeline even with constant index_maps) + I/O blocks + f32 intermediates.
    x_isz = jnp.dtype(x.dtype).itemsize
    w_isz = jnp.dtype(params["wq"].dtype).itemsize
    weight_bytes = (4 * D * D + 2 * D * F + 6 * D + F + 4 * D) * w_isz
    io_bytes = 2 * 2 * block_b * S * D * x_isz
    act_bytes = block_b * S * (8 * D + 2 * F) * 4
    vmem_limit = int(min(2 * weight_bytes + io_bytes + act_bytes + (16 << 20),
                         64 << 20))              # stay under v7x's 64 MiB/TC

    full = lambda shape: pl.BlockSpec(shape, lambda i: (0,) * len(shape))
    in_specs = [
        pl.BlockSpec((block_b, S, D), lambda i: (i, 0, 0)),  # x batch tile
        full((D, D)), full((1, D)),                          # wq, bq
        full((D, D)), full((1, D)),                          # wk, bk
        full((D, D)), full((1, D)),                          # wv, bv
        full((D, D)), full((1, D)),                          # wo, bo
        full((D, F)), full((1, F)),                          # w1, b1
        full((F, D)), full((1, D)),                          # w2, b2
        full((1, D)), full((1, D)),                          # g1, be1
        full((1, D)), full((1, D)),                          # g2, be2
    ]

    kernel = functools.partial(transformer_block_kernel, n_heads=n_heads)
    return pl.pallas_call(
        kernel,
        out_shape=jax.ShapeDtypeStruct((B, S, D), x.dtype),
        grid_spec=pltpu.PrefetchScalarGridSpec(
            num_scalar_prefetch=0,
            grid=(B // block_b,),
            in_specs=in_specs,
            out_specs=pl.BlockSpec((block_b, S, D), lambda i: (i, 0, 0)),
            scratch_shapes=[pltpu.VMEM((block_b * S, D), jnp.float32)],
        ),
        compiler_params=pltpu.CompilerParams(
            dimension_semantics=("parallel",),
            vmem_limit_bytes=vmem_limit,
        ),
    )(
        x,
        params["wq"], params["bq"],
        params["wk"], params["bk"],
        params["wv"], params["bv"],
        params["wo"], params["bo"],
        params["w1"], params["b1"],
        params["w2"], params["b2"],
        params["g1"], params["be1"],
        params["g2"], params["be2"],
    )


def reference_block(x, p, n_heads):
    """Pure-JAX reference matching the PyTorch forward (mask=None)."""
    B, S, D = x.shape
    dk = D // n_heads

    def lin(t, w, b):
        return jnp.einsum("bsd,df->bsf", t, w) + b[0]

    q = lin(x, p["wq"], p["bq"]).reshape(B, S, n_heads, dk).transpose(0, 2, 1, 3)
    k = lin(x, p["wk"], p["bk"]).reshape(B, S, n_heads, dk).transpose(0, 2, 1, 3)
    v = lin(x, p["wv"], p["bv"]).reshape(B, S, n_heads, dk).transpose(0, 2, 1, 3)
    scores = jnp.einsum("bhqd,bhkd->bhqk", q, k) / jnp.sqrt(jnp.float32(dk))
    attn = jax.nn.softmax(scores, axis=-1)
    ctx = jnp.einsum("bhqk,bhkd->bhqd", attn, v).transpose(0, 2, 1, 3).reshape(B, S, D)
    attn_out = lin(ctx, p["wo"], p["bo"])

    def ln(t, g, b):
        mu = jnp.mean(t, axis=-1, keepdims=True)
        var = jnp.mean((t - mu) ** 2, axis=-1, keepdims=True)
        return (t - mu) * jax.lax.rsqrt(var + 1e-5) * g[0] + b[0]

    x1 = ln(x + attn_out, p["g1"], p["be1"])
    ff = lin(jnp.maximum(lin(x1, p["w1"], p["b1"]), 0.0), p["w2"], p["b2"])
    return ln(x1 + ff, p["g2"], p["be2"])


def make_params(key, d_model, d_ff):
    ks = jax.random.split(key, 12)
    s = 0.1
    return {
        "wq": s * jax.random.normal(ks[0], (d_model, d_model), jnp.float32),
        "bq": s * jax.random.normal(ks[1], (1, d_model), jnp.float32),
        "wk": s * jax.random.normal(ks[2], (d_model, d_model), jnp.float32),
        "bk": s * jax.random.normal(ks[3], (1, d_model), jnp.float32),
        "wv": s * jax.random.normal(ks[4], (d_model, d_model), jnp.float32),
        "bv": s * jax.random.normal(ks[5], (1, d_model), jnp.float32),
        "wo": s * jax.random.normal(ks[6], (d_model, d_model), jnp.float32),
        "bo": s * jax.random.normal(ks[7], (1, d_model), jnp.float32),
        "w1": s * jax.random.normal(ks[8], (d_model, d_ff), jnp.float32),
        "b1": s * jax.random.normal(ks[9], (1, d_ff), jnp.float32),
        "w2": s * jax.random.normal(ks[10], (d_ff, d_model), jnp.float32),
        "b2": s * jax.random.normal(ks[11], (1, d_model), jnp.float32),
        "g1": jnp.ones((1, d_model), jnp.float32),
        "be1": jnp.zeros((1, d_model), jnp.float32),
        "g2": jnp.ones((1, d_model), jnp.float32),
        "be2": jnp.zeros((1, d_model), jnp.float32),
    }


if __name__ == "__main__":
    B, S, d_model, n_heads, d_ff = 2, 8, 32, 4, 64

    key = jax.random.PRNGKey(0)
    kx, kp = jax.random.split(key)
    x = jax.random.normal(kx, (B, S, d_model), jnp.float32)
    params = make_params(kp, d_model, d_ff)

    out = transformer_block(x, params, n_heads)
    out = jax.block_until_ready(out)

    ref = reference_block(x, params, n_heads)
    assert out.shape == (B, S, d_model)
    assert jnp.allclose(out, ref, atol=1e-3, rtol=1e-3), "mismatch vs reference"

    print("KERNEL_OK")
</pallas_src>

<mosaic_0001>
module attributes {stable_mosaic.version = 11 : i64} {
  func.func @transformer_block_kernel(%arg0: i32, %arg1: memref<2x8x32xf32, #tpu.memory_space<vmem>>, %arg2: memref<32x32xf32, #tpu.memory_space<vmem>>, %arg3: memref<1x32xf32, #tpu.memory_space<vmem>>, %arg4: memref<32x32xf32, #tpu.memory_space<vmem>>, %arg5: memref<1x32xf32, #tpu.memory_space<vmem>>, %arg6: memref<32x32xf32, #tpu.memory_space<vmem>>, %arg7: memref<1x32xf32, #tpu.memory_space<vmem>>, %arg8: memref<32x32xf32, #tpu.memory_space<vmem>>, %arg9: memref<1x32xf32, #tpu.memory_space<vmem>>, %arg10: memref<32x64xf32, #tpu.memory_space<vmem>>, %arg11: memref<1x64xf32, #tpu.memory_space<vmem>>, %arg12: memref<64x32xf32, #tpu.memory_space<vmem>>, %arg13: memref<1x32xf32, #tpu.memory_space<vmem>>, %arg14: memref<1x32xf32, #tpu.memory_space<vmem>>, %arg15: memref<1x32xf32, #tpu.memory_space<vmem>>, %arg16: memref<1x32xf32, #tpu.memory_space<vmem>>, %arg17: memref<1x32xf32, #tpu.memory_space<vmem>>, %arg18: memref<2x8x32xf32, #tpu.memory_space<vmem>>, %arg19: memref<16x32xf32, #tpu.memory_space<vmem>>) attributes {dimension_semantics = [#tpu.dimension_semantics<parallel>], iteration_bounds = array<i64: 1>, scalar_prefetch = 0 : i64, scratch_operands = 1 : i64, tpu.core_type = #tpu.core_type<tc>, window_params = [{transform_indices = @transform_0, window_bounds = array<i64: 2, 8, 32>}, {pipeline_mode = #tpu.pipeline_mode<synchronous>, transform_indices = @transform_1, window_bounds = array<i64: 32, 32>}, {pipeline_mode = #tpu.pipeline_mode<synchronous>, transform_indices = @transform_2, window_bounds = array<i64: 1, 32>}, {pipeline_mode = #tpu.pipeline_mode<synchronous>, transform_indices = @transform_3, window_bounds = array<i64: 32, 32>}, {pipeline_mode = #tpu.pipeline_mode<synchronous>, transform_indices = @transform_4, window_bounds = array<i64: 1, 32>}, {pipeline_mode = #tpu.pipeline_mode<synchronous>, transform_indices = @transform_5, window_bounds = array<i64: 32, 32>}, {pipeline_mode = #tpu.pipeline_mode<synchronous>, transform_indices = @transform_6, window_bounds = array<i64: 1, 32>}, {pipeline_mode = #tpu.pipeline_mode<synchronous>, transform_indices = @transform_7, window_bounds = array<i64: 32, 32>}, {pipeline_mode = #tpu.pipeline_mode<synchronous>, transform_indices = @transform_8, window_bounds = array<i64: 1, 32>}, {pipeline_mode = #tpu.pipeline_mode<synchronous>, transform_indices = @transform_9, window_bounds = array<i64: 32, 64>}, {pipeline_mode = #tpu.pipeline_mode<synchronous>, transform_indices = @transform_10, window_bounds = array<i64: 1, 64>}, {pipeline_mode = #tpu.pipeline_mode<synchronous>, transform_indices = @transform_11, window_bounds = array<i64: 64, 32>}, {pipeline_mode = #tpu.pipeline_mode<synchronous>, transform_indices = @transform_12, window_bounds = array<i64: 1, 32>}, {pipeline_mode = #tpu.pipeline_mode<synchronous>, transform_indices = @transform_13, window_bounds = array<i64: 1, 32>}, {pipeline_mode = #tpu.pipeline_mode<synchronous>, transform_indices = @transform_14, window_bounds = array<i64: 1, 32>}, {pipeline_mode = #tpu.pipeline_mode<synchronous>, transform_indices = @transform_15, window_bounds = array<i64: 1, 32>}, {pipeline_mode = #tpu.pipeline_mode<synchronous>, transform_indices = @transform_16, window_bounds = array<i64: 1, 32>}, {transform_indices = @transform_17, window_bounds = array<i64: 2, 8, 32>}]} {
    %c0 = arith.constant 0 : index
    %c0_0 = arith.constant 0 : index
    %c0_1 = arith.constant 0 : index
    %0 = vector.load %arg1[%c0, %c0_0, %c0_1] : memref<2x8x32xf32, #tpu.memory_space<vmem>>, vector<2x8x32xf32>
    %1 = vector.shape_cast %0 : vector<2x8x32xf32> to vector<16x32xf32>
    %c0_2 = arith.constant 0 : index
    %c0_3 = arith.constant 0 : index
    %2 = vector.load %arg2[%c0_2, %c0_3] : memref<32x32xf32, #tpu.memory_space<vmem>>, vector<32x32xf32>
    %cst = arith.constant dense<0.000000e+00> : vector<16x32xf32>
    %3 = tpu.matmul %1, %2, %cst {dimension_numbers = #tpu.dot_dimension_numbers<[1], [0], [0], [1], [0, 0, 1, 1], [], []>} : vector<16x32xf32>, vector<32x32xf32>, vector<16x32xf32> -> vector<16x32xf32>
    %c0_4 = arith.constant 0 : index
    %c0_5 = arith.constant 0 : index
    %4 = vector.load %arg3[%c0_4, %c0_5] : memref<1x32xf32, #tpu.memory_space<vmem>>, vector<1x32xf32>
    %5 = vector.broadcast %4 : vector<1x32xf32> to vector<16x32xf32>
    %6 = arith.addf %3, %5 : vector<16x32xf32>
    %cst_6 = arith.constant 0.353553385 : f32
    %7 = vector.broadcast %cst_6 : f32 to vector<16x32xf32>
    %8 = arith.mulf %6, %7 : vector<16x32xf32>
    %c0_7 = arith.constant 0 : index
    %c0_8 = arith.constant 0 : index
    %9 = vector.load %arg4[%c0_7, %c0_8] : memref<32x32xf32, #tpu.memory_space<vmem>>, vector<32x32xf32>
    %cst_9 = arith.constant dense<0.000000e+00> : vector<16x32xf32>
    %10 = tpu.matmul %1, %9, %cst_9 {dimension_numbers = #tpu.dot_dimension_numbers<[1], [0], [0], [1], [0, 0, 1, 1], [], []>} : vector<16x32xf32>, vector<32x32xf32>, vector<16x32xf32> -> vector<16x32xf32>
    %c0_10 = arith.constant 0 : index
    %c0_11 = arith.constant 0 : index
    %11 = vector.load %arg5[%c0_10, %c0_11] : memref<1x32xf32, #tpu.memory_space<vmem>>, vector<1x32xf32>
    %12 = vector.broadcast %11 : vector<1x32xf32> to vector<16x32xf32>
    %13 = arith.addf %10, %12 : vector<16x32xf32>
    %c0_12 = arith.constant 0 : index
    %c0_13 = arith.constant 0 : index
    %14 = vector.load %arg6[%c0_12, %c0_13] : memref<32x32xf32, #tpu.memory_space<vmem>>, vector<32x32xf32>
    %cst_14 = arith.constant dense<0.000000e+00> : vector<16x32xf32>
    %15 = tpu.matmul %1, %14, %cst_14 {dimension_numbers = #tpu.dot_dimension_numbers<[1], [0], [0], [1], [0, 0, 1, 1], [], []>} : vector<16x32xf32>, vector<32x32xf32>, vector<16x32xf32> -> vector<16x32xf32>
    %c0_15 = arith.constant 0 : index
    %c0_16 = arith.constant 0 : index
    %16 = vector.load %arg7[%c0_15, %c0_16] : memref<1x32xf32, #tpu.memory_space<vmem>>, vector<1x32xf32>
    %17 = vector.broadcast %16 : vector<1x32xf32> to vector<16x32xf32>
    %18 = arith.addf %15, %17 : vector<16x32xf32>
    %cst_17 = arith.constant 0.000000e+00 : f32
    %19 = vector.broadcast %cst_17 : f32 to vector<16x32xf32>
    %c0_18 = arith.constant 0 : index
    %c0_19 = arith.constant 0 : index
    %20 = vector.load %arg19[%c0_18, %c0_19] : memref<16x32xf32, #tpu.memory_space<vmem>>, vector<16x32xf32>
    tpu.vector_store %arg19[%c0_18, %c0_19], %19 {strides = array<i32>} : memref<16x32xf32, #tpu.memory_space<vmem>>, vector<16x32xf32>,
    %21 = vector.extract_strided_slice %8 {offsets = [0, 0], sizes = [8, 8], strides = [1, 1]} : vector<16x32xf32> to vector<8x8xf32>
    %22 = vector.extract_strided_slice %13 {offsets = [0, 0], sizes = [8, 8], strides = [1, 1]} : vector<16x32xf32> to vector<8x8xf32>
    %23 = vector.extract_strided_slice %18 {offsets = [0, 0], sizes = [8, 8], strides = [1, 1]} : vector<16x32xf32> to vector<8x8xf32>
    %cst_20 = arith.constant dense<0.000000e+00> : vector<8x8xf32>
    %24 = tpu.matmul %21, %22, %cst_20 {dimension_numbers = #tpu.dot_dimension_numbers<[1], [1], [0], [0], [0, 0, 1, 0], [], []>} : vector<8x8xf32>, vector<8x8xf32>, vector<8x8xf32> -> vector<8x8xf32>
    %cst_21 = arith.constant dense<0xFF800000> : vector<8xf32>
    %25 = vector.multi_reduction <maximumf>, %24, %cst_21 [1] : vector<8x8xf32> to vector<8xf32>
    %26 = vector.shape_cast %25 : vector<8xf32> to vector<8x1xf32>
    %27 = vector.broadcast %26 : vector<8x1xf32> to vector<8x8xf32>
    %28 = arith.subf %24, %27 : vector<8x8xf32>
    %29 = math.exp %28 : vector<8x8xf32>
    %cst_22 = arith.constant dense<0.000000e+00> : vector<8xf32>
    %30 = vector.multi_reduction <add>, %29, %cst_22 [1] : vector<8x8xf32> to vector<8xf32>
    %31 = vector.shape_cast %30 : vector<8xf32> to vector<8x1xf32>
    %32 = tpu.reciprocal %31 {approx = true} : vector<8x1xf32> -> vector<8x1xf32>
    %33 = vector.broadcast %32 : vector<8x1xf32> to vector<8x8xf32>
    %34 = arith.mulf %29, %33 : vector<8x8xf32>
    %cst_23 = arith.constant dense<0.000000e+00> : vector<8x8xf32>
    %35 = tpu.matmul %34, %23, %cst_23 {dimension_numbers = #tpu.dot_dimension_numbers<[1], [0], [0], [1], [0, 0, 1, 1], [], []>} : vector<8x8xf32>, vector<8x8xf32>, vector<8x8xf32> -> vector<8x8xf32>
    %c0_24 = arith.constant 0 : index
    %c0_25 = arith.constant 0 : index
    %36 = vector.load %arg19[%c0_24, %c0_25] : memref<16x32xf32, #tpu.memory_space<vmem>>, vector<8x32xf32>
    %c0_26 = arith.constant 0 : index
    %c0_27 = arith.constant 0 : index
    %37 = vector.load %arg8[%c0_26, %c0_27] : memref<32x32xf32, #tpu.memory_space<vmem>>, vector<8x32xf32>
    %cst_28 = arith.constant dense<0.000000e+00> : vector<8x32xf32>
    %38 = tpu.matmul %35, %37, %cst_28 {dimension_numbers = #tpu.dot_dimension_numbers<[1], [0], [0], [1], [0, 0, 1, 1], [], []>} : vector<8x8xf32>, vector<8x32xf32>, vector<8x32xf32> -> vector<8x32xf32>
    %39 = arith.addf %36, %38 : vector<8x32xf32>
    %c0_29 = arith.constant 0 : index
    %c0_30 = arith.constant 0 : index
    %40 = vector.load %arg19[%c0_29, %c0_30] : memref<16x32xf32, #tpu.memory_space<vmem>>, vector<8x32xf32>
    tpu.vector_store %arg19[%c0_29, %c0_30], %39 {strides = array<i32>} : memref<16x32xf32, #tpu.memory_space<vmem>>, vector<8x32xf32>,
    %41 = vector.extract_strided_slice %8 {offsets = [0, 8], sizes = [8, 8], strides = [1, 1]} : vector<16x32xf32> to vector<8x8xf32>
    %42 = vector.extract_strided_slice %13 {offsets = [0, 8], sizes = [8, 8], strides = [1, 1]} : vector<16x32xf32> to vector<8x8xf32>
    %43 = vector.extract_strided_slice %18 {offsets = [0, 8], sizes = [8, 8], strides = [1, 1]} : vector<16x32xf32> to vector<8x8xf32>
    %cst_31 = arith.constant dense<0.000000e+00> : vector<8x8xf32>
    %44 = tpu.matmul %41, %42, %cst_31 {dimension_numbers = #tpu.dot_dimension_numbers<[1], [1], [0], [0], [0, 0, 1, 0], [], []>} : vector<8x8xf32>, vector<8x8xf32>, vector<8x8xf32> -> vector<8x8xf32>
    %cst_32 = arith.constant dense<0xFF800000> : vector<8xf32>
    %45 = vector.multi_reduction <maximumf>, %44, %cst_32 [1] : vector<8x8xf32> to vector<8xf32>
    %46 = vector.shape_cast %45 : vector<8xf32> to vector<8x1xf32>
    %47 = vector.broadcast %46 : vector<8x1xf32> to vector<8x8xf32>
    %48 = arith.subf %44, %47 : vector<8x8xf32>
    %49 = math.exp %48 : vector<8x8xf32>
    %cst_33 = arith.constant dense<0.000000e+00> : vector<8xf32>
    %50 = vector.multi_reduction <add>, %49, %cst_33 [1] : vector<8x8xf32> to vector<8xf32>
    %51 = vector.shape_cast %50 : vector<8xf32> to vector<8x1xf32>
    %52 = tpu.reciprocal %51 {approx = true} : vector<8x1xf32> -> vector<8x1xf32>
    %53 = vector.broadcast %52 : vector<8x1xf32> to vector<8x8xf32>
    %54 = arith.mulf %49, %53 : vector<8x8xf32>
    %cst_34 = arith.constant dense<0.000000e+00> : vector<8x8xf32>
    %55 = tpu.matmul %54, %43, %cst_34 {dimension_numbers = #tpu.dot_dimension_numbers<[1], [0], [0], [1], [0, 0, 1, 1], [], []>} : vector<8x8xf32>, vector<8x8xf32>, vector<8x8xf32> -> vector<8x8xf32>
    %c0_35 = arith.constant 0 : index
    %c0_36 = arith.constant 0 : index
    %56 = vector.load %arg19[%c0_35, %c0_36] : memref<16x32xf32, #tpu.memory_space<vmem>>, vector<8x32xf32>
    %c8 = arith.constant 8 : index
    %c0_37 = arith.constant 0 : index
    %57 = vector.load %arg8[%c8, %c0_37] : memref<32x32xf32, #tpu.memory_space<vmem>>, vector<8x32xf32>
    %cst_38 = arith.constant dense<0.000000e+00> : vector<8x32xf32>
    %58 = tpu.matmul %55, %57, %cst_38 {dimension_numbers = #tpu.dot_dimension_numbers<[1], [0], [0], [1], [0, 0, 1, 1], [], []>} : vector<8x8xf32>, vector<8x32xf32>, vector<8x32xf32> -> vector<8x32xf32>
    %59 = arith.addf %56, %58 : vector<8x32xf32>
    %c0_39 = arith.constant 0 : index
    %c0_40 = arith.constant 0 : index
    %60 = vector.load %arg19[%c0_39, %c0_40] : memref<16x32xf32, #tpu.memory_space<vmem>>, vector<8x32xf32>
    tpu.vector_store %arg19[%c0_39, %c0_40], %59 {strides = array<i32>} : memref<16x32xf32, #tpu.memory_space<vmem>>, vector<8x32xf32>,
    %61 = vector.extract_strided_slice %8 {offsets = [0, 16], sizes = [8, 8], strides = [1, 1]} : vector<16x32xf32> to vector<8x8xf32>
    %62 = vector.extract_strided_slice %13 {offsets = [0, 16], sizes = [8, 8], strides = [1, 1]} : vector<16x32xf32> to vector<8x8xf32>
    %63 = vector.extract_strided_slice %18 {offsets = [0, 16], sizes = [8, 8], strides = [1, 1]} : vector<16x32xf32> to vector<8x8xf32>
    %cst_41 = arith.constant dense<0.000000e+00> : vector<8x8xf32>
    %64 = tpu.matmul %61, %62, %cst_41 {dimension_numbers = #tpu.dot_dimension_numbers<[1], [1], [0], [0], [0, 0, 1, 0], [], []>} : vector<8x8xf32>, vector<8x8xf32>, vector<8x8xf32> -> vector<8x8xf32>
    %cst_42 = arith.constant dense<0xFF800000> : vector<8xf32>
    %65 = vector.multi_reduction <maximumf>, %64, %cst_42 [1] : vector<8x8xf32> to vector<8xf32>
    %66 = vector.shape_cast %65 : vector<8xf32> to vector<8x1xf32>
    %67 = vector.broadcast %66 : vector<8x1xf32> to vector<8x8xf32>
    %68 = arith.subf %64, %67 : vector<8x8xf32>
    %69 = math.exp %68 : vector<8x8xf32>
    %cst_43 = arith.constant dense<0.000000e+00> : vector<8xf32>
    %70 = vector.multi_reduction <add>, %69, %cst_43 [1] : vector<8x8xf32> to vector<8xf32>
    %71 = vector.shape_cast %70 : vector<8xf32> to vector<8x1xf32>
    %72 = tpu.reciprocal %71 {approx = true} : vector<8x1xf32> -> vector<8x1xf32>
    %73 = vector.broadcast %72 : vector<8x1xf32> to vector<8x8xf32>
    %74 = arith.mulf %69, %73 : vector<8x8xf32>
    %cst_44 = arith.constant dense<0.000000e+00> : vector<8x8xf32>
    %75 = tpu.matmul %74, %63, %cst_44 {dimension_numbers = #tpu.dot_dimension_numbers<[1], [0], [0], [1], [0, 0, 1, 1], [], []>} : vector<8x8xf32>, vector<8x8xf32>, vector<8x8xf32> -> vector<8x8xf32>
    %c0_45 = arith.constant 0 : index
    %c0_46 = arith.constant 0 : index
    %76 = vector.load %arg19[%c0_45, %c0_46] : memref<16x32xf32, #tpu.memory_space<vmem>>, vector<8x32xf32>
    %c16 = arith.constant 16 : index
    %c0_47 = arith.constant 0 : index
    %77 = vector.load %arg8[%c16, %c0_47] : memref<32x32xf32, #tpu.memory_space<vmem>>, vector<8x32xf32>
    %cst_48 = arith.constant dense<0.000000e+00> : vector<8x32xf32>
    %78 = tpu.matmul %75, %77, %cst_48 {dimension_numbers = #tpu.dot_dimension_numbers<[1], [0], [0], [1], [0, 0, 1, 1], [], []>} : vector<8x8xf32>, vector<8x32xf32>, vector<8x32xf32> -> vector<8x32xf32>
    %79 = arith.addf %76, %78 : vector<8x32xf32>
    %c0_49 = arith.constant 0 : index
    %c0_50 = arith.constant 0 : index
    %80 = vector.load %arg19[%c0_49, %c0_50] : memref<16x32xf32, #tpu.memory_space<vmem>>, vector<8x32xf32>
    tpu.vector_store %arg19[%c0_49, %c0_50], %79 {strides = array<i32>} : memref<16x32xf32, #tpu.memory_space<vmem>>, vector<8x32xf32>,
    %81 = vector.extract_strided_slice %8 {offsets = [0, 24], sizes = [8, 8], strides = [1, 1]} : vector<16x32xf32> to vector<8x8xf32>
    %82 = vector.extract_strided_slice %13 {offsets = [0, 24], sizes = [8, 8], strides = [1, 1]} : vector<16x32xf32> to vector<8x8xf32>
    %83 = vector.extract_strided_slice %18 {offsets = [0, 24], sizes = [8, 8], strides = [1, 1]} : vector<16x32xf32> to vector<8x8xf32>
    %cst_51 = arith.constant dense<0.000000e+00> : vector<8x8xf32>
    %84 = tpu.matmul %81, %82, %cst_51 {dimension_numbers = #tpu.dot_dimension_numbers<[1], [1], [0], [0], [0, 0, 1, 0], [], []>} : vector<8x8xf32>, vector<8x8xf32>, vector<8x8xf32> -> vector<8x8xf32>
    %cst_52 = arith.constant dense<0xFF800000> : vector<8xf32>
    %85 = vector.multi_reduction <maximumf>, %84, %cst_52 [1] : vector<8x8xf32> to vector<8xf32>
    %86 = vector.shape_cast %85 : vector<8xf32> to vector<8x1xf32>
    %87 = vector.broadcast %86 : vector<8x1xf32> to vector<8x8xf32>
    %88 = arith.subf %84, %87 : vector<8x8xf32>
    %89 = math.exp %88 : vector<8x8xf32>
    %cst_53 = arith.constant dense<0.000000e+00> : vector<8xf32>
    %90 = vector.multi_reduction <add>, %89, %cst_53 [1] : vector<8x8xf32> to vector<8xf32>
    %91 = vector.shape_cast %90 : vector<8xf32> to vector<8x1xf32>
    %92 = tpu.reciprocal %91 {approx = true} : vector<8x1xf32> -> vector<8x1xf32>
    %93 = vector.broadcast %92 : vector<8x1xf32> to vector<8x8xf32>
    %94 = arith.mulf %89, %93 : vector<8x8xf32>
    %cst_54 = arith.constant dense<0.000000e+00> : vector<8x8xf32>
    %95 = tpu.matmul %94, %83, %cst_54 {dimension_numbers = #tpu.dot_dimension_numbers<[1], [0], [0], [1], [0, 0, 1, 1], [], []>} : vector<8x8xf32>, vector<8x8xf32>, vector<8x8xf32> -> vector<8x8xf32>
    %c0_55 = arith.constant 0 : index
    %c0_56 = arith.constant 0 : index
    %96 = vector.load %arg19[%c0_55, %c0_56] : memref<16x32xf32, #tpu.memory_space<vmem>>, vector<8x32xf32>
    %c24 = arith.constant 24 : index
    %c0_57 = arith.constant 0 : index
    %97 = vector.load %arg8[%c24, %c0_57] : memref<32x32xf32, #tpu.memory_space<vmem>>, vector<8x32xf32>
    %cst_58 = arith.constant dense<0.000000e+00> : vector<8x32xf32>
    %98 = tpu.matmul %95, %97, %cst_58 {dimension_numbers = #tpu.dot_dimension_numbers<[1], [0], [0], [1], [0, 0, 1, 1], [], []>} : vector<8x8xf32>, vector<8x32xf32>, vector<8x32xf32> -> vector<8x32xf32>
    %99 = arith.addf %96, %98 : vector<8x32xf32>
    %c0_59 = arith.constant 0 : index
    %c0_60 = arith.constant 0 : index
    %100 = vector.load %arg19[%c0_59, %c0_60] : memref<16x32xf32, #tpu.memory_space<vmem>>, vector<8x32xf32>
    tpu.vector_store %arg19[%c0_59, %c0_60], %99 {strides = array<i32>} : memref<16x32xf32, #tpu.memory_space<vmem>>, vector<8x32xf32>,
    %101 = vector.extract_strided_slice %8 {offsets = [8, 0], sizes = [8, 8], strides = [1, 1]} : vector<16x32xf32> to vector<8x8xf32>
    %102 = vector.extract_strided_slice %13 {offsets = [8, 0], sizes = [8, 8], strides = [1, 1]} : vector<16x32xf32> to vector<8x8xf32>
    %103 = vector.extract_strided_slice %18 {offsets = [8, 0], sizes = [8, 8], strides = [1, 1]} : vector<16x32xf32> to vector<8x8xf32>
    %cst_61 = arith.constant dense<0.000000e+00> : vector<8x8xf32>
    %104 = tpu.matmul %101, %102, %cst_61 {dimension_numbers = #tpu.dot_dimension_numbers<[1], [1], [0], [0], [0, 0, 1, 0], [], []>} : vector<8x8xf32>, vector<8x8xf32>, vector<8x8xf32> -> vector<8x8xf32>
    %cst_62 = arith.constant dense<0xFF800000> : vector<8xf32>
    %105 = vector.multi_reduction <maximumf>, %104, %cst_62 [1] : vector<8x8xf32> to vector<8xf32>
    %106 = vector.shape_cast %105 : vector<8xf32> to vector<8x1xf32>
    %107 = vector.broadcast %106 : vector<8x1xf32> to vector<8x8xf32>
    %108 = arith.subf %104, %107 : vector<8x8xf32>
    %109 = math.exp %108 : vector<8x8xf32>
    %cst_63 = arith.constant dense<0.000000e+00> : vector<8xf32>
    %110 = vector.multi_reduction <add>, %109, %cst_63 [1] : vector<8x8xf32> to vector<8xf32>
    %111 = vector.shape_cast %110 : vector<8xf32> to vector<8x1xf32>
    %112 = tpu.reciprocal %111 {approx = true} : vector<8x1xf32> -> vector<8x1xf32>
    %113 = vector.broadcast %112 : vector<8x1xf32> to vector<8x8xf32>
    %114 = arith.mulf %109, %113 : vector<8x8xf32>
    %cst_64 = arith.constant dense<0.000000e+00> : vector<8x8xf32>
    %115 = tpu.matmul %114, %103, %cst_64 {dimension_numbers = #tpu.dot_dimension_numbers<[1], [0], [0], [1], [0, 0, 1, 1], [], []>} : vector<8x8xf32>, vector<8x8xf32>, vector<8x8xf32> -> vector<8x8xf32>
    %c8_65 = arith.constant 8 : index
    %c0_66 = arith.constant 0 : index
    %116 = vector.load %arg19[%c8_65, %c0_66] : memref<16x32xf32, #tpu.memory_space<vmem>>, vector<8x32xf32>
    %c0_67 = arith.constant 0 : index
    %c0_68 = arith.constant 0 : index
    %117 = vector.load %arg8[%c0_67, %c0_68] : memref<32x32xf32, #tpu.memory_space<vmem>>, vector<8x32xf32>
    %cst_69 = arith.constant dense<0.000000e+00> : vector<8x32xf32>
    %118 = tpu.matmul %115, %117, %cst_69 {dimension_numbers = #tpu.dot_dimension_numbers<[1], [0], [0], [1], [0, 0, 1, 1], [], []>} : vector<8x8xf32>, vector<8x32xf32>, vector<8x32xf32> -> vector<8x32xf32>
    %119 = arith.addf %116, %118 : vector<8x32xf32>
    %c8_70 = arith.constant 8 : index
    %c0_71 = arith.constant 0 : index
    %120 = vector.load %arg19[%c8_70, %c0_71] : memref<16x32xf32, #tpu.memory_space<vmem>>, vector<8x32xf32>
    tpu.vector_store %arg19[%c8_70, %c0_71], %119 {strides = array<i32>} : memref<16x32xf32, #tpu.memory_space<vmem>>, vector<8x32xf32>,
    %121 = vector.extract_strided_slice %8 {offsets = [8, 8], sizes = [8, 8], strides = [1, 1]} : vector<16x32xf32> to vector<8x8xf32>
    %122 = vector.extract_strided_slice %13 {offsets = [8, 8], sizes = [8, 8], strides = [1, 1]} : vector<16x32xf32> to vector<8x8xf32>
    %123 = vector.extract_strided_slice %18 {offsets = [8, 8], sizes = [8, 8], strides = [1, 1]} : vector<16x32xf32> to vector<8x8xf32>
    %cst_72 = arith.constant dense<0.000000e+00> : vector<8x8xf32>
    %124 = tpu.matmul %121, %122, %cst_72 {dimension_numbers = #tpu.dot_dimension_numbers<[1], [1], [0], [0], [0, 0, 1, 0], [], []>} : vector<8x8xf32>, vector<8x8xf32>, vector<8x8xf32> -> vector<8x8xf32>
    %cst_73 = arith.constant dense<0xFF800000> : vector<8xf32>
    %125 = vector.multi_reduction <maximumf>, %124, %cst_73 [1] : vector<8x8xf32> to vector<8xf32>
    %126 = vector.shape_cast %125 : vector<8xf32> to vector<8x1xf32>
    %127 = vector.broadcast %126 : vector<8x1xf32> to vector<8x8xf32>
    %128 = arith.subf %124, %127 : vector<8x8xf32>
    %129 = math.exp %128 : vector<8x8xf32>
    %cst_74 = arith.constant dense<0.000000e+00> : vector<8xf32>
    %130 = vector.multi_reduction <add>, %129, %cst_74 [1] : vector<8x8xf32> to vector<8xf32>
    %131 = vector.shape_cast %130 : vector<8xf32> to vector<8x1xf32>
    %132 = tpu.reciprocal %131 {approx = true} : vector<8x1xf32> -> vector<8x1xf32>
    %133 = vector.broadcast %132 : vector<8x1xf32> to vector<8x8xf32>
    %134 = arith.mulf %129, %133 : vector<8x8xf32>
    %cst_75 = arith.constant dense<0.000000e+00> : vector<8x8xf32>
    %135 = tpu.matmul %134, %123, %cst_75 {dimension_numbers = #tpu.dot_dimension_numbers<[1], [0], [0], [1], [0, 0, 1, 1], [], []>} : vector<8x8xf32>, vector<8x8xf32>, vector<8x8xf32> -> vector<8x8xf32>
    %c8_76 = arith.constant 8 : index
    %c0_77 = arith.constant 0 : index
    %136 = vector.load %arg19[%c8_76, %c0_77] : memref<16x32xf32, #tpu.memory_space<vmem>>, vector<8x32xf32>
    %c8_78 = arith.constant 8 : index
    %c0_79 = arith.constant 0 : index
    %137 = vector.load %arg8[%c8_78, %c0_79] : memref<32x32xf32, #tpu.memory_space<vmem>>, vector<8x32xf32>
    %cst_80 = arith.constant dense<0.000000e+00> : vector<8x32xf32>
    %138 = tpu.matmul %135, %137, %cst_80 {dimension_numbers = #tpu.dot_dimension_numbers<[1], [0], [0], [1], [0, 0, 1, 1], [], []>} : vector<8x8xf32>, vector<8x32xf32>, vector<8x32xf32> -> vector<8x32xf32>
    %139 = arith.addf %136, %138 : vector<8x32xf32>
    %c8_81 = arith.constant 8 : index
    %c0_82 = arith.constant 0 : index
    %140 = vector.load %arg19[%c8_81, %c0_82] : memref<16x32xf32, #tpu.memory_space<vmem>>, vector<8x32xf32>
    tpu.vector_store %arg19[%c8_81, %c0_82], %139 {strides = array<i32>} : memref<16x32xf32, #tpu.memory_space<vmem>>, vector<8x32xf32>,
    %141 = vector.extract_strided_slice %8 {offsets = [8, 16], sizes = [8, 8], strides = [1, 1]} : vector<16x32xf32> to vector<8x8xf32>
    %142 = vector.extract_strided_slice %13 {offsets = [8, 16], sizes = [8, 8], strides = [1, 1]} : vector<16x32xf32> to vector<8x8xf32>
    %143 = vector.extract_strided_slice %18 {offsets = [8, 16], sizes = [8, 8], strides = [1, 1]} : vector<16x32xf32> to vector<8x8xf32>
    %cst_83 = arith.constant dense<0.000000e+00> : vector<8x8xf32>
    %144 = tpu.matmul %141, %142, %cst_83 {dimension_numbers = #tpu.dot_dimension_numbers<[1], [1], [0], [0], [0, 0, 1, 0], [], []>} : vector<8x8xf32>, vector<8x8xf32>, vector<8x8xf32> -> vector<8x8xf32>
    %cst_84 = arith.constant dense<0xFF800000> : vector<8xf32>
    %145 = vector.multi_reduction <maximumf>, %144, %cst_84 [1] : vector<8x8xf32> to vector<8xf32>
    %146 = vector.shape_cast %145 : vector<8xf32> to vector<8x1xf32>
    %147 = vector.broadcast %146 : vector<8x1xf32> to vector<8x8xf32>
    %148 = arith.subf %144, %147 : vector<8x8xf32>
    %149 = math.exp %148 : vector<8x8xf32>
    %cst_85 = arith.constant dense<0.000000e+00> : vector<8xf32>
    %150 = vector.multi_reduction <add>, %149, %cst_85 [1] : vector<8x8xf32> to vector<8xf32>
    %151 = vector.shape_cast %150 : vector<8xf32> to vector<8x1xf32>
    %152 = tpu.reciprocal %151 {approx = true} : vector<8x1xf32> -> vector<8x1xf32>
    %153 = vector.broadcast %152 : vector<8x1xf32> to vector<8x8xf32>
    %154 = arith.mulf %149, %153 : vector<8x8xf32>
    %cst_86 = arith.constant dense<0.000000e+00> : vector<8x8xf32>
    %155 = tpu.matmul %154, %143, %cst_86 {dimension_numbers = #tpu.dot_dimension_numbers<[1], [0], [0], [1], [0, 0, 1, 1], [], []>} : vector<8x8xf32>, vector<8x8xf32>, vector<8x8xf32> -> vector<8x8xf32>
    %c8_87 = arith.constant 8 : index
    %c0_88 = arith.constant 0 : index
    %156 = vector.load %arg19[%c8_87, %c0_88] : memref<16x32xf32, #tpu.memory_space<vmem>>, vector<8x32xf32>
    %c16_89 = arith.constant 16 : index
    %c0_90 = arith.constant 0 : index
    %157 = vector.load %arg8[%c16_89, %c0_90] : memref<32x32xf32, #tpu.memory_space<vmem>>, vector<8x32xf32>
    %cst_91 = arith.constant dense<0.000000e+00> : vector<8x32xf32>
    %158 = tpu.matmul %155, %157, %cst_91 {dimension_numbers = #tpu.dot_dimension_numbers<[1], [0], [0], [1], [0, 0, 1, 1], [], []>} : vector<8x8xf32>, vector<8x32xf32>, vector<8x32xf32> -> vector<8x32xf32>
    %159 = arith.addf %156, %158 : vector<8x32xf32>
    %c8_92 = arith.constant 8 : index
    %c0_93 = arith.constant 0 : index
    %160 = vector.load %arg19[%c8_92, %c0_93] : memref<16x32xf32, #tpu.memory_space<vmem>>, vector<8x32xf32>
    tpu.vector_store %arg19[%c8_92, %c0_93], %159 {strides = array<i32>} : memref<16x32xf32, #tpu.memory_space<vmem>>, vector<8x32xf32>,
    %161 = vector.extract_strided_slice %8 {offsets = [8, 24], sizes = [8, 8], strides = [1, 1]} : vector<16x32xf32> to vector<8x8xf32>
    %162 = vector.extract_strided_slice %13 {offsets = [8, 24], sizes = [8, 8], strides = [1, 1]} : vector<16x32xf32> to vector<8x8xf32>
    %163 = vector.extract_strided_slice %18 {offsets = [8, 24], sizes = [8, 8], strides = [1, 1]} : vector<16x32xf32> to vector<8x8xf32>
    %cst_94 = arith.constant dense<0.000000e+00> : vector<8x8xf32>
    %164 = tpu.matmul %161, %162, %cst_94 {dimension_numbers = #tpu.dot_dimension_numbers<[1], [1], [0], [0], [0, 0, 1, 0], [], []>} : vector<8x8xf32>, vector<8x8xf32>, vector<8x8xf32> -> vector<8x8xf32>
    %cst_95 = arith.constant dense<0xFF800000> : vector<8xf32>
    %165 = vector.multi_reduction <maximumf>, %164, %cst_95 [1] : vector<8x8xf32> to vector<8xf32>
    %166 = vector.shape_cast %165 : vector<8xf32> to vector<8x1xf32>
    %167 = vector.broadcast %166 : vector<8x1xf32> to vector<8x8xf32>
    %168 = arith.subf %164, %167 : vector<8x8xf32>
    %169 = math.exp %168 : vector<8x8xf32>
    %cst_96 = arith.constant dense<0.000000e+00> : vector<8xf32>
    %170 = vector.multi_reduction <add>, %169, %cst_96 [1] : vector<8x8xf32> to vector<8xf32>
    %171 = vector.shape_cast %170 : vector<8xf32> to vector<8x1xf32>
    %172 = tpu.reciprocal %171 {approx = true} : vector<8x1xf32> -> vector<8x1xf32>
    %173 = vector.broadcast %172 : vector<8x1xf32> to vector<8x8xf32>
    %174 = arith.mulf %169, %173 : vector<8x8xf32>
    %cst_97 = arith.constant dense<0.000000e+00> : vector<8x8xf32>
    %175 = tpu.matmul %174, %163, %cst_97 {dimension_numbers = #tpu.dot_dimension_numbers<[1], [0], [0], [1], [0, 0, 1, 1], [], []>} : vector<8x8xf32>, vector<8x8xf32>, vector<8x8xf32> -> vector<8x8xf32>
    %c8_98 = arith.constant 8 : index
    %c0_99 = arith.constant 0 : index
    %176 = vector.load %arg19[%c8_98, %c0_99] : memref<16x32xf32, #tpu.memory_space<vmem>>, vector<8x32xf32>
    %c24_100 = arith.constant 24 : index
    %c0_101 = arith.constant 0 : index
    %177 = vector.load %arg8[%c24_100, %c0_101] : memref<32x32xf32, #tpu.memory_space<vmem>>, vector<8x32xf32>
    %cst_102 = arith.constant dense<0.000000e+00> : vector<8x32xf32>
    %178 = tpu.matmul %175, %177, %cst_102 {dimension_numbers = #tpu.dot_dimension_numbers<[1], [0], [0], [1], [0, 0, 1, 1], [], []>} : vector<8x8xf32>, vector<8x32xf32>, vector<8x32xf32> -> vector<8x32xf32>
    %179 = arith.addf %176, %178 : vector<8x32xf32>
    %c8_103 = arith.constant 8 : index
    %c0_104 = arith.constant 0 : index
    %180 = vector.load %arg19[%c8_103, %c0_104] : memref<16x32xf32, #tpu.memory_space<vmem>>, vector<8x32xf32>
    tpu.vector_store %arg19[%c8_103, %c0_104], %179 {strides = array<i32>} : memref<16x32xf32, #tpu.memory_space<vmem>>, vector<8x32xf32>,
    %c0_105 = arith.constant 0 : index
    %c0_106 = arith.constant 0 : index
    %181 = vector.load %arg19[%c0_105, %c0_106] : memref<16x32xf32, #tpu.memory_space<vmem>>, vector<16x32xf32>
    %c0_107 = arith.constant 0 : index
    %c0_108 = arith.constant 0 : index
    %182 = vector.load %arg9[%c0_107, %c0_108] : memref<1x32xf32, #tpu.memory_space<vmem>>, vector<1x32xf32>
    %183 = vector.broadcast %182 : vector<1x32xf32> to vector<16x32xf32>
    %184 = arith.addf %181, %183 : vector<16x32xf32>
    %185 = arith.addf %1, %184 : vector<16x32xf32>
    %cst_109 = arith.constant dense<0.000000e+00> : vector<16xf32>
    %186 = vector.multi_reduction <add>, %185, %cst_109 [1] : vector<16x32xf32> to vector<16xf32>
    %187 = vector.shape_cast %186 : vector<16xf32> to vector<16x1xf32>
    %cst_110 = arith.constant 3.200000e+01 : f32
    %188 = vector.broadcast %cst_110 : f32 to vector<16x1xf32>
    %189 = arith.divf %187, %188 : vector<16x1xf32>
    %190 = vector.broadcast %189 : vector<16x1xf32> to vector<16x32xf32>
    %191 = arith.subf %185, %190 : vector<16x32xf32>
    %192 = arith.mulf %191, %191 : vector<16x32xf32>
    %cst_111 = arith.constant dense<0.000000e+00> : vector<16xf32>
    %193 = vector.multi_reduction <add>, %192, %cst_111 [1] : vector<16x32xf32> to vector<16xf32>
    %194 = vector.shape_cast %193 : vector<16xf32> to vector<16x1xf32>
    %cst_112 = arith.constant 3.200000e+01 : f32
    %195 = vector.broadcast %cst_112 : f32 to vector<16x1xf32>
    %196 = arith.divf %194, %195 : vector<16x1xf32>
    %197 = vector.broadcast %189 : vector<16x1xf32> to vector<16x32xf32>
    %198 = arith.subf %185, %197 : vector<16x32xf32>
    %cst_113 = arith.constant 9.99999974E-6 : f32
    %199 = vector.broadcast %cst_113 : f32 to vector<16x1xf32>
    %200 = arith.addf %196, %199 : vector<16x1xf32>
    %201 = math.rsqrt %200 : vector<16x1xf32>
    %202 = vector.broadcast %201 : vector<16x1xf32> to vector<16x32xf32>
    %203 = arith.mulf %198, %202 : vector<16x32xf32>
    %c0_114 = arith.constant 0 : index
    %c0_115 = arith.constant 0 : index
    %204 = vector.load %arg14[%c0_114, %c0_115] : memref<1x32xf32, #tpu.memory_space<vmem>>, vector<1x32xf32>
    %205 = vector.broadcast %204 : vector<1x32xf32> to vector<16x32xf32>
    %206 = arith.mulf %203, %205 : vector<16x32xf32>
    %c0_116 = arith.constant 0 : index
    %c0_117 = arith.constant 0 : index
    %207 = vector.load %arg15[%c0_116, %c0_117] : memref<1x32xf32, #tpu.memory_space<vmem>>, vector<1x32xf32>
    %208 = vector.broadcast %207 : vector<1x32xf32> to vector<16x32xf32>
    %209 = arith.addf %206, %208 : vector<16x32xf32>
    %c0_118 = arith.constant 0 : index
    %c0_119 = arith.constant 0 : index
    %210 = vector.load %arg10[%c0_118, %c0_119] : memref<32x64xf32, #tpu.memory_space<vmem>>, vector<32x64xf32>
    %cst_120 = arith.constant dense<0.000000e+00> : vector<16x64xf32>
    %211 = tpu.matmul %209, %210, %cst_120 {dimension_numbers = #tpu.dot_dimension_numbers<[1], [0], [0], [1], [0, 0, 1, 1], [], []>} : vector<16x32xf32>, vector<32x64xf32>, vector<16x64xf32> -> vector<16x64xf32>
    %c0_121 = arith.constant 0 : index
    %c0_122 = arith.constant 0 : index
    %212 = vector.load %arg11[%c0_121, %c0_122] : memref<1x64xf32, #tpu.memory_space<vmem>>, vector<1x64xf32>
    %213 = vector.broadcast %212 : vector<1x64xf32> to vector<16x64xf32>
    %214 = arith.addf %211, %213 : vector<16x64xf32>
    %cst_123 = arith.constant 0.000000e+00 : f32
    %215 = vector.broadcast %cst_123 : f32 to vector<16x64xf32>
    %216 = arith.maximumf %214, %215 : vector<16x64xf32>
    %c0_124 = arith.constant 0 : index
    %c0_125 = arith.constant 0 : index
    %217 = vector.load %arg12[%c0_124, %c0_125] : memref<64x32xf32, #tpu.memory_space<vmem>>, vector<64x32xf32>
    %cst_126 = arith.constant dense<0.000000e+00> : vector<16x32xf32>
    %218 = tpu.matmul %216, %217, %cst_126 {dimension_numbers = #tpu.dot_dimension_numbers<[1], [0], [0], [1], [0, 0, 1, 1], [], []>} : vector<16x64xf32>, vector<64x32xf32>, vector<16x32xf32> -> vector<16x32xf32>
    %c0_127 = arith.constant 0 : index
    %c0_128 = arith.constant 0 : index
    %219 = vector.load %arg13[%c0_127, %c0_128] : memref<1x32xf32, #tpu.memory_space<vmem>>, vector<1x32xf32>
    %220 = vector.broadcast %219 : vector<1x32xf32> to vector<16x32xf32>
    %221 = arith.addf %218, %220 : vector<16x32xf32>
    %222 = arith.addf %209, %221 : vector<16x32xf32>
    %cst_129 = arith.constant dense<0.000000e+00> : vector<16xf32>
    %223 = vector.multi_reduction <add>, %222, %cst_129 [1] : vector<16x32xf32> to vector<16xf32>
    %224 = vector.shape_cast %223 : vector<16xf32> to vector<16x1xf32>
    %cst_130 = arith.constant 3.200000e+01 : f32
    %225 = vector.broadcast %cst_130 : f32 to vector<16x1xf32>
    %226 = arith.divf %224, %225 : vector<16x1xf32>
    %227 = vector.broadcast %226 : vector<16x1xf32> to vector<16x32xf32>
    %228 = arith.subf %222, %227 : vector<16x32xf32>
    %229 = arith.mulf %228, %228 : vector<16x32xf32>
    %cst_131 = arith.constant dense<0.000000e+00> : vector<16xf32>
    %230 = vector.multi_reduction <add>, %229, %cst_131 [1] : vector<16x32xf32> to vector<16xf32>
    %231 = vector.shape_cast %230 : vector<16xf32> to vector<16x1xf32>
    %cst_132 = arith.constant 3.200000e+01 : f32
    %232 = vector.broadcast %cst_132 : f32 to vector<16x1xf32>
    %233 = arith.divf %231, %232 : vector<16x1xf32>
    %234 = vector.broadcast %226 : vector<16x1xf32> to vector<16x32xf32>
    %235 = arith.subf %222, %234 : vector<16x32xf32>
    %cst_133 = arith.constant 9.99999974E-6 : f32
    %236 = vector.broadcast %cst_133 : f32 to vector<16x1xf32>
    %237 = arith.addf %233, %236 : vector<16x1xf32>
    %238 = math.rsqrt %237 : vector<16x1xf32>
    %239 = vector.broadcast %238 : vector<16x1xf32> to vector<16x32xf32>
    %240 = arith.mulf %235, %239 : vector<16x32xf32>
    %c0_134 = arith.constant 0 : index
    %c0_135 = arith.constant 0 : index
    %241 = vector.load %arg16[%c0_134, %c0_135] : memref<1x32xf32, #tpu.memory_space<vmem>>, vector<1x32xf32>
    %242 = vector.broadcast %241 : vector<1x32xf32> to vector<16x32xf32>
    %243 = arith.mulf %240, %242 : vector<16x32xf32>
    %c0_136 = arith.constant 0 : index
    %c0_137 = arith.constant 0 : index
    %244 = vector.load %arg17[%c0_136, %c0_137] : memref<1x32xf32, #tpu.memory_space<vmem>>, vector<1x32xf32>
    %245 = vector.broadcast %244 : vector<1x32xf32> to vector<16x32xf32>
    %246 = arith.addf %243, %245 : vector<16x32xf32>
    %247 = vector.shape_cast %246 : vector<16x32xf32> to vector<2x8x32xf32>
    %c0_138 = arith.constant 0 : index
    %c0_139 = arith.constant 0 : index
    %c0_140 = arith.constant 0 : index
    %248 = vector.load %arg18[%c0_138, %c0_139, %c0_140] : memref<2x8x32xf32, #tpu.memory_space<vmem>>, vector<2x8x32xf32>
    tpu.vector_store %arg18[%c0_138, %c0_139, %c0_140], %247 {strides = array<i32>} : memref<2x8x32xf32, #tpu.memory_space<vmem>>, vector<2x8x32xf32>,
    return
  }
  func.func @transform_0(%arg0: i32) -> (i32, i32, i32) {
    %c0_i32 = arith.constant 0 : i32
    %c0_i32_0 = arith.constant 0 : i32
    %c0_i32_1 = arith.constant 0 : i32
    return %arg0, %c0_i32, %c0_i32_0 : i32, i32, i32
  }
  func.func @transform_1(%arg0: i32) -> (i32, i32) {
    %c0_i32 = arith.constant 0 : i32
    %c0_i32_0 = arith.constant 0 : i32
    %c0_i32_1 = arith.constant 0 : i32
    return %c0_i32, %c0_i32_0 : i32, i32
  }
  func.func @transform_2(%arg0: i32) -> (i32, i32) {
    %c0_i32 = arith.constant 0 : i32
    %c0_i32_0 = arith.constant 0 : i32
    %c0_i32_1 = arith.constant 0 : i32
    return %c0_i32, %c0_i32_0 : i32, i32
  }
  func.func @transform_3(%arg0: i32) -> (i32, i32) {
    %c0_i32 = arith.constant 0 : i32
    %c0_i32_0 = arith.constant 0 : i32
    %c0_i32_1 = arith.constant 0 : i32
    return %c0_i32, %c0_i32_0 : i32, i32
  }
  func.func @transform_4(%arg0: i32) -> (i32, i32) {
    %c0_i32 = arith.constant 0 : i32
    %c0_i32_0 = arith.constant 0 : i32
    %c0_i32_1 = arith.constant 0 : i32
    return %c0_i32, %c0_i32_0 : i32, i32
  }
  func.func @transform_5(%arg0: i32) -> (i32, i32) {
    %c0_i32 = arith.constant 0 : i32
    %c0_i32_0 = arith.constant 0 : i32
    %c0_i32_1 = arith.constant 0 : i32
    return %c0_i32, %c0_i32_0 : i32, i32
  }
  func.func @transform_6(%arg0: i32) -> (i32, i32) {
    %c0_i32 = arith.constant 0 : i32
    %c0_i32_0 = arith.constant 0 : i32
    %c0_i32_1 = arith.constant 0 : i32
    return %c0_i32, %c0_i32_0 : i32, i32
  }
  func.func @transform_7(%arg0: i32) -> (i32, i32) {
    %c0_i32 = arith.constant 0 : i32
    %c0_i32_0 = arith.constant 0 : i32
    %c0_i32_1 = arith.constant 0 : i32
    return %c0_i32, %c0_i32_0 : i32, i32
  }
  func.func @transform_8(%arg0: i32) -> (i32, i32) {
    %c0_i32 = arith.constant 0 : i32
    %c0_i32_0 = arith.constant 0 : i32
    %c0_i32_1 = arith.constant 0 : i32
    return %c0_i32, %c0_i32_0 : i32, i32
  }
  func.func @transform_9(%arg0: i32) -> (i32, i32) {
    %c0_i32 = arith.constant 0 : i32
    %c0_i32_0 = arith.constant 0 : i32
    %c0_i32_1 = arith.constant 0 : i32
    return %c0_i32, %c0_i32_0 : i32, i32
  }
  func.func @transform_10(%arg0: i32) -> (i32, i32) {
    %c0_i32 = arith.constant 0 : i32
    %c0_i32_0 = arith.constant 0 : i32
    %c0_i32_1 = arith.constant 0 : i32
    return %c0_i32, %c0_i32_0 : i32, i32
  }
  func.func @transform_11(%arg0: i32) -> (i32, i32) {
    %c0_i32 = arith.constant 0 : i32
    %c0_i32_0 = arith.constant 0 : i32
    %c0_i32_1 = arith.constant 0 : i32
    return %c0_i32, %c0_i32_0 : i32, i32
  }
  func.func @transform_12(%arg0: i32) -> (i32, i32) {
    %c0_i32 = arith.constant 0 : i32
    %c0_i32_0 = arith.constant 0 : i32
    %c0_i32_1 = arith.constant 0 : i32
    return %c0_i32, %c0_i32_0 : i32, i32
  }
  func.func @transform_13(%arg0: i32) -> (i32, i32) {
    %c0_i32 = arith.constant 0 : i32
    %c0_i32_0 = arith.constant 0 : i32
    %c0_i32_1 = arith.constant 0 : i32
    return %c0_i32, %c0_i32_0 : i32, i32
  }
  func.func @transform_14(%arg0: i32) -> (i32, i32) {
    %c0_i32 = arith.constant 0 : i32
    %c0_i32_0 = arith.constant 0 : i32
    %c0_i32_1 = arith.constant 0 : i32
    return %c0_i32, %c0_i32_0 : i32, i32
  }
  func.func @transform_15(%arg0: i32) -> (i32, i32) {
    %c0_i32 = arith.constant 0 : i32
    %c0_i32_0 = arith.constant 0 : i32
    %c0_i32_1 = arith.constant 0 : i32
    return %c0_i32, %c0_i32_0 : i32, i32
  }
  func.func @transform_16(%arg0: i32) -> (i32, i32) {
    %c0_i32 = arith.constant 0 : i32
    %c0_i32_0 = arith.constant 0 : i32
    %c0_i32_1 = arith.constant 0 : i32
    return %c0_i32, %c0_i32_0 : i32, i32
  }
  func.func @transform_17(%arg0: i32) -> (i32, i32, i32) {
    %c0_i32 = arith.constant 0 : i32
    %c0_i32_0 = arith.constant 0 : i32
    %c0_i32_1 = arith.constant 0 : i32
    return %arg0, %c0_i32, %c0_i32_0 : i32, i32, i32
  }
}

</mosaic_0001>

<llo_original>
// kernel: tpu_custom_call.1
$region0: #{tpu_custom_call.1}
  #allocation0 [shape = 'u32[]', space=smem, size = 0x4, offset = 0x4, fixed_abs, tag = 'smem constant byte address 0x4 - core index']
  #allocation1 [shape = 'u32[144,128]{1,0:T(1,128)}', space=vmem, size = 0x12000, scoped, tag = 'internal scratch']
  #allocation2 [shape = 'f32[16,32]{1,0:T(8,128)}', space=vmem, size = 0x2000, scoped, tag = 'scratch operand']
  %s0 = inlined_call_operand.hbm [shape: f32[2,8,32], index: 0, kind: input, shape index: {}]
  %s1 = inlined_call_operand.vmem [shape: f32[32,32], index: 1, kind: input, shape index: {}]
  %s2 = inlined_call_operand.vmem [shape: f32[1,32], index: 2, kind: input, shape index: {}]
  %s3 = inlined_call_operand.vmem [shape: f32[32,32], index: 3, kind: input, shape index: {}]
  %s4 = inlined_call_operand.vmem [shape: f32[1,32], index: 4, kind: input, shape index: {}]
  %s5 = inlined_call_operand.vmem [shape: f32[32,32], index: 5, kind: input, shape index: {}]
  %s6 = inlined_call_operand.vmem [shape: f32[1,32], index: 6, kind: input, shape index: {}]
  %s7 = inlined_call_operand.hbm [shape: f32[32,32], index: 7, kind: input, shape index: {}]
  %s8 = inlined_call_operand.vmem [shape: f32[1,32], index: 8, kind: input, shape index: {}]
  %s9 = inlined_call_operand.hbm [shape: f32[32,64], index: 9, kind: input, shape index: {}]
  %s10 = inlined_call_operand.vmem [shape: f32[1,64], index: 10, kind: input, shape index: {}]
  %s11 = inlined_call_operand.vmem [shape: f32[64,32], index: 11, kind: input, shape index: {}]
  %s12 = inlined_call_operand.vmem [shape: f32[1,32], index: 12, kind: input, shape index: {}]
  %s13 = inlined_call_operand.vmem [shape: f32[1,32], index: 13, kind: input, shape index: {}]
  %s14 = inlined_call_operand.vmem [shape: f32[1,32], index: 14, kind: input, shape index: {}]
  %s15 = inlined_call_operand.vmem [shape: f32[1,32], index: 15, kind: input, shape index: {}]
  %s16 = inlined_call_operand.vmem [shape: f32[1,32], index: 16, kind: input, shape index: {}]
  %s17 = inlined_call_operand.hbm [shape: f32[2,8,32], index: 17, kind: output, shape index: {}]
  %s18 = sld [smem:[#allocation0]]
  $region90: #{tpu_custom_call.1} parent=0
    _
  %s20 = ssub.s32 1, %s18
  %s21 = scalar_select 0, %s20, %s18
  $region1: #{tpu_custom_call.1} parent=0
    #allocation3 [shape = 'u8[8192]{0}', space=vmem, size = 0x2000, scoped, tag = 'input window, operand 0, single buffered']
    #allocation4 [shape = 's32[1]{0}', space=sflag, size = 0x4, scoped, tag = 'scoped memory for tpu_custom_call.1']
    #allocation5 [shape = 's32[1]{0}', space=sflag, size = 0x4, scoped, tag = 'scoped memory for tpu_custom_call.1']
    #allocation6 [shape = 'u8[16384]{0}', space=vmem, size = 0x4000, scoped, tag = 'input window, operand 7, single buffered']
    #allocation7 [shape = 's32[1]{0}', space=sflag, size = 0x4, scoped, tag = 'scoped memory for tpu_custom_call.1']
    #allocation8 [shape = 'u8[16384]{0}', space=vmem, size = 0x4000, scoped, tag = 'input window, operand 9, single buffered']
    #allocation9 [shape = 'u8[8192]{0}', space=vmem, size = 0x2000, scoped, tag = 'output window, operand 0, single buffered']
    %22 = vsyncpa [#allocation4], 0
    %23 = vsyncpa [#allocation7], 0
    %24 = vsyncpa [#allocation5], 0
    // Predicated region
    $region2: #{tpu_custom_call.1} parent=1 // pred_check
      _
    $region3: #{tpu_custom_call.1} parent=1 // pred_check_branch
      %26 = sbr.rel (0) target = $region5
    $region4: #{tpu_custom_call.1} parent=1 // pred_region
      %s28 = ssub.s32 256, 256
      %29 = vsyncadd [#allocation4], %s28
      %s30 = sshll.u32 [#allocation3], 4
      %s31 = int_to_ptr.vmem [resolvable:$true] %s30
      %36 = dma.hbm_to_vmem [thread:$0]  %s0, 256, %s31, [#allocation4], 128, 128, 8
    $region5: #{tpu_custom_call.1} parent=1 // pred_fallthru
      _
    // Predicated region
    $region6: #{tpu_custom_call.1} parent=1 // pred_check
      _
    $region7: #{tpu_custom_call.1} parent=1 // pred_check_branch
      %38 = sbr.rel (0) target = $region9
    $region8: #{tpu_custom_call.1} parent=1 // pred_region
      _
    $region9: #{tpu_custom_call.1} parent=1 // pred_fallthru
      _
    // Predicated region
    $region10: #{tpu_custom_call.1} parent=1 // pred_check
      _
    $region11: #{tpu_custom_call.1} parent=1 // pred_check_branch
      %40 = sbr.rel (0) target = $region13
    $region12: #{tpu_custom_call.1} parent=1 // pred_region
      _
    $region13: #{tpu_custom_call.1} parent=1 // pred_fallthru
      _
    // Predicated region
    $region14: #{tpu_custom_call.1} parent=1 // pred_check
      _
    $region15: #{tpu_custom_call.1} parent=1 // pred_check_branch
      %42 = sbr.rel (0) target = $region17
    $region16: #{tpu_custom_call.1} parent=1 // pred_region
      _
    $region17: #{tpu_custom_call.1} parent=1 // pred_fallthru
      _
    // Predicated region
    $region18: #{tpu_custom_call.1} parent=1 // pred_check
      _
    $region19: #{tpu_custom_call.1} parent=1 // pred_check_branch
      %44 = sbr.rel (0) target = $region21
    $region20: #{tpu_custom_call.1} parent=1 // pred_region
      _
    $region21: #{tpu_custom_call.1} parent=1 // pred_fallthru
      _
    // Predicated region
    $region22: #{tpu_custom_call.1} parent=1 // pred_check
      _
    $region23: #{tpu_custom_call.1} parent=1 // pred_check_branch
      %46 = sbr.rel (0) target = $region25
    $region24: #{tpu_custom_call.1} parent=1 // pred_region
      _
    $region25: #{tpu_custom_call.1} parent=1 // pred_fallthru
      _
    // Predicated region
    $region26: #{tpu_custom_call.1} parent=1 // pred_check
      _
    $region27: #{tpu_custom_call.1} parent=1 // pred_check_branch
      %48 = sbr.rel (0) target = $region29
    $region28: #{tpu_custom_call.1} parent=1 // pred_region
      _
    $region29: #{tpu_custom_call.1} parent=1 // pred_fallthru
      _
    // Predicated region
    $region30: #{tpu_custom_call.1} parent=1 // pred_check
      _
    $region31: #{tpu_custom_call.1} parent=1 // pred_check_branch
      %50 = sbr.rel (0) target = $region33
    $region32: #{tpu_custom_call.1} parent=1 // pred_region
      %s52 = ssub.s32 512, 512
      %53 = vsyncadd [#allocation7], %s52
      %s54 = sshll.u32 [#allocation6], 4
      %s55 = int_to_ptr.vmem [resolvable:$true] %s54
      %60 = dma.hbm_to_vmem [thread:$0]  %s7, 512, %s55, [#allocation7], 128, 128, 8
    $region33: #{tpu_custom_call.1} parent=1 // pred_fallthru
      _
    // Predicated region
    $region34: #{tpu_custom_call.1} parent=1 // pred_check
      _
    $region35: #{tpu_custom_call.1} parent=1 // pred_check_branch
      %62 = sbr.rel (0) target = $region37
    $region36: #{tpu_custom_call.1} parent=1 // pred_region
      _
    $region37: #{tpu_custom_call.1} parent=1 // pred_fallthru
      _
    // Predicated region
    $region38: #{tpu_custom_call.1} parent=1 // pred_check
      _
    $region39: #{tpu_custom_call.1} parent=1 // pred_check_branch
      %64 = sbr.rel (0) target = $region41
    $region40: #{tpu_custom_call.1} parent=1 // pred_region
      %s66 = ssub.s32 512, 512
      %67 = vsyncadd [#allocation7], %s66
      %s68 = sshll.u32 [#allocation8], 4
      %s69 = int_to_ptr.vmem [resolvable:$true] %s68
      %74 = dma.hbm_to_vmem [thread:$0]  %s9, 512, %s69, [#allocation7], 128, 128, 8
    $region41: #{tpu_custom_call.1} parent=1 // pred_fallthru
      _
    // Predicated region
    $region42: #{tpu_custom_call.1} parent=1 // pred_check
      _
    $region43: #{tpu_custom_call.1} parent=1 // pred_check_branch
      %76 = sbr.rel (0) target = $region45
    $region44: #{tpu_custom_call.1} parent=1 // pred_region
      _
    $region45: #{tpu_custom_call.1} parent=1 // pred_fallthru
      _
    // Predicated region
    $region46: #{tpu_custom_call.1} parent=1 // pred_check
      _
    $region47: #{tpu_custom_call.1} parent=1 // pred_check_branch
      %78 = sbr.rel (0) target = $region49
    $region48: #{tpu_custom_call.1} parent=1 // pred_region
      _
    $region49: #{tpu_custom_call.1} parent=1 // pred_fallthru
      _
    // Predicated region
    $region50: #{tpu_custom_call.1} parent=1 // pred_check
      _
    $region51: #{tpu_custom_call.1} parent=1 // pred_check_branch
      %80 = sbr.rel (0) target = $region53
    $region52: #{tpu_custom_call.1} parent=1 // pred_region
      _
    $region53: #{tpu_custom_call.1} parent=1 // pred_fallthru
      _
    // Predicated region
    $region54: #{tpu_custom_call.1} parent=1 // pred_check
      _
    $region55: #{tpu_custom_call.1} parent=1 // pred_check_branch
      %82 = sbr.rel (0) target = $region57
    $region56: #{tpu_custom_call.1} parent=1 // pred_region
      _
    $region57: #{tpu_custom_call.1} parent=1 // pred_fallthru
      _
    // Predicated region
    $region58: #{tpu_custom_call.1} parent=1 // pred_check
      _
    $region59: #{tpu_custom_call.1} parent=1 // pred_check_branch
      %84 = sbr.rel (0) target = $region61
    $region60: #{tpu_custom_call.1} parent=1 // pred_region
      _
    $region61: #{tpu_custom_call.1} parent=1 // pred_fallthru
      _
    // Predicated region
    $region62: #{tpu_custom_call.1} parent=1 // pred_check
      _
    $region63: #{tpu_custom_call.1} parent=1 // pred_check_branch
      %86 = sbr.rel (0) target = $region65
    $region64: #{tpu_custom_call.1} parent=1 // pred_region
      _
    $region65: #{tpu_custom_call.1} parent=1 // pred_fallthru
      _
    // Predicated region
    $region66: #{tpu_custom_call.1} parent=1 // pred_check
      _
    $region67: #{tpu_custom_call.1} parent=1 // pred_check_branch
      %88 = sbr.rel (0) target = $region69
    $region68: #{tpu_custom_call.1} parent=1 // pred_region
      _
    $region69: #{tpu_custom_call.1} parent=1 // pred_fallthru
      _
    // Predicated region
    $region70: #{tpu_custom_call.1} parent=1 // pred_check
      _
    $region71: #{tpu_custom_call.1} parent=1 // pred_check_branch
      %90 = sbr.rel (0) target = $region73
    $region72: #{tpu_custom_call.1} parent=1 // pred_region
      %91 = dma.done [#allocation4], 256
    $region73: #{tpu_custom_call.1} parent=1 // pred_fallthru
      _
    // Predicated region
    $region74: #{tpu_custom_call.1} parent=1 // pred_check
      _
    $region75: #{tpu_custom_call.1} parent=1 // pred_check_branch
      %93 = sbr.rel (0) target = $region77
    $region76: #{tpu_custom_call.1} parent=1 // pred_region
      %94 = dma.done [#allocation7], 512
    $region77: #{tpu_custom_call.1} parent=1 // pred_fallthru
      _
    // Predicated region
    $region78: #{tpu_custom_call.1} parent=1 // pred_check
      _
    $region79: #{tpu_custom_call.1} parent=1 // pred_check_branch
      %96 = sbr.rel (0) target = $region81
    $region80: #{tpu_custom_call.1} parent=1 // pred_region
      %97 = dma.done [#allocation7], 512
    $region81: #{tpu_custom_call.1} parent=1 // pred_fallthru
      _
    %v98 = vld [vmem:[#allocation3] sm:$0xff]
    %v99 = vld [vmem:[#allocation3 + $0x8] sm:$0xff]
    %v100 = vld [vmem:[%s1] sm:$0xff]
    %v101 = vld [vmem:[%s1 + $0x8] sm:$0xff]
    %v102 = vld [vmem:[%s1 + $0x10] sm:$0xff]
    %v103 = vld [vmem:[%s1 + $0x18] sm:$0xff]
    %v104 = vld [vmem:[%s2] sm:$0x1]
    %v106 = vlaneseq
    %v107 = vshrl.u32 %v106, 7
    %v108 = vsub.s32 0, %v107
    %v109 = vrot.slane %v104, %v108
    %vm111 = vcmask 261120
    %v113 = vsel %vm111, %v98, 0
    %v116 = vsel %vm111, %v99, 0
    %118 = vmatprep.subr.mxu0 0.0
    %119 = vmatpush1.msra.mxu0 0.0
    %120 = vmatprep.subr.mxu0 0.0
    %121 = vmatpush1.msra.mxu0 0.0
    %122 = vmatprep.subr.mxu0 0.0
    %123 = vmatpush1.msra.mxu0 0.0
    %124 = vmatprep.subr.mxu0 0.0
    %125 = vmatpush1.msra.mxu0 0.0
    %126 = vmatprep.subr.mxu0 0.0
    %127 = vmatpush1.msra.mxu0 0.0
    %128 = vmatprep.subr.mxu0 0.0
    %129 = vmatpush1.msra.mxu0 0.0
    %130 = vmatprep.subr.mxu0 0.0
    %131 = vmatpush1.msra.mxu0 0.0
    %132 = vmatprep.subr.mxu0 0.0
    %133 = vmatpush1.msra.mxu0 0.0
    %134 = vmatprep.subr.mxu0 0.0
    %135 = vmatpush1.msra.mxu0 0.0
    %136 = vmatprep.subr.mxu0 0.0
    %137 = vmatpush1.msra.mxu0 0.0
    %138 = vmatprep.subr.mxu0 0.0
    %139 = vmatpush1.msra.mxu0 0.0
    %140 = vmatprep.subr.mxu0 0.0
    %141 = vmatpush1.msra.mxu0 0.0
    %142 = vmatprep.subr.mxu0 0.0
    %143 = vmatpush1.msra.mxu0 %v103
    %144 = vmatprep.subr.mxu0 0.0
    %145 = vmatpush1.msra.mxu0 %v102
    %146 = vmatprep.subr.mxu0 0.0
    %147 = vmatpush1.msra.mxu0 %v101
    %148 = vmatprep.subr.mxu0 0.0
    %149 = vmatpush1.msra.mxu0 %v100
    %150 = vmatprep.subr.mxu0 0.0
    %151 = vmatpush2.msra.mxu0 0.0
    %152 = vmatprep.subr.mxu0 0.0
    %153 = vmatpush2.msra.mxu0 0.0
    %154 = vmatprep.subr.mxu0 0.0
    %155 = vmatpush2.msra.mxu0 0.0
    %156 = vmatprep.subr.mxu0 0.0
    %157 = vmatpush2.msra.mxu0 0.0
    %158 = vmatprep.subr.mxu0 0.0
    %159 = vmatpush2.msra.mxu0 0.0
    %160 = vmatprep.subr.mxu0 0.0
    %161 = vmatpush2.msra.mxu0 0.0
    %162 = vmatprep.subr.mxu0 0.0
    %163 = vmatpush2.msra.mxu0 0.0
    %164 = vmatprep.subr.mxu0 0.0
    %165 = vmatpush2.msra.mxu0 0.0
    %166 = vmatprep.subr.mxu0 0.0
    %167 = vmatpush2.msra.mxu0 0.0
    %168 = vmatprep.subr.mxu0 0.0
    %169 = vmatpush2.msra.mxu0 0.0
    %170 = vmatprep.subr.mxu0 0.0
    %171 = vmatpush2.msra.mxu0 0.0
    %172 = vmatprep.subr.mxu0 0.0
    %173 = vmatpush2.msra.mxu0 0.0
    %174 = vmatprep.subr.mxu0 0.0
    %175 = vmatpush2.msra.mxu0 0.0
    %176 = vmatprep.subr.mxu0 0.0
    %177 = vmatpush2.msra.mxu0 0.0
    %178 = vmatprep.subr.mxu0 0.0
    %179 = vmatpush2.msra.mxu0 0.0
    %180 = vmatprep.subr.mxu0 0.0
    %181 = vmatpush2.msra.mxu0 0.0
    %182 = vmatprep.mubr.f32.mxu0 0.0
    %183 = vmatmul.mubr.f32.gmra.mxu0 %v113
    %v184 = vpop.f32.mrf.mxu0
    %v185 = vadd.f32 %v109, %v184
    %v186 = vpop.f32.mrf.mxu0
    %187 = vmatprep.mubr.f32.mxu0 0.0
    %188 = vmatmul.mubr.f32.gmra.mxu0 %v116
    %v189 = vpop.f32.mrf.mxu0
    %v190 = vadd.f32 %v109, %v189
    %v191 = vpop.f32.mrf.mxu0
    %192 = vdwg.mxu0
    %v193 = vmul.f32 %v185, 0.35355338
    %v194 = vmul.f32 %v190, 0.35355338
    %v195 = vld [vmem:[%s3] sm:$0xff]
    %v196 = vld [vmem:[%s3 + $0x8] sm:$0xff]
    %v197 = vld [vmem:[%s3 + $0x10] sm:$0xff]
    %v198 = vld [vmem:[%s3 + $0x18] sm:$0xff]
    %v199 = vld [vmem:[%s4] sm:$0x1]
    %v201 = vlaneseq
    %v202 = vshrl.u32 %v201, 7
    %v203 = vsub.s32 0, %v202
    %v204 = vrot.slane %v199, %v203
    %206 = vmatprep.subr.mxu0 0.0
    %207 = vmatpush1.msra.mxu0 0.0
    %208 = vmatprep.subr.mxu0 0.0
    %209 = vmatpush1.msra.mxu0 0.0
    %210 = vmatprep.subr.mxu0 0.0
    %211 = vmatpush1.msra.mxu0 0.0
    %212 = vmatprep.subr.mxu0 0.0
    %213 = vmatpush1.msra.mxu0 0.0
    %214 = vmatprep.subr.mxu0 0.0
    %215 = vmatpush1.msra.mxu0 0.0
    %216 = vmatprep.subr.mxu0 0.0
    %217 = vmatpush1.msra.mxu0 0.0
    %218 = vmatprep.subr.mxu0 0.0
    %219 = vmatpush1.msra.mxu0 0.0
    %220 = vmatprep.subr.mxu0 0.0
    %221 = vmatpush1.msra.mxu0 0.0
    %222 = vmatprep.subr.mxu0 0.0
    %223 = vmatpush1.msra.mxu0 0.0
    %224 = vmatprep.subr.mxu0 0.0
    %225 = vmatpush1.msra.mxu0 0.0
    %226 = vmatprep.subr.mxu0 0.0
    %227 = vmatpush1.msra.mxu0 0.0
    %228 = vmatprep.subr.mxu0 0.0
    %229 = vmatpush1.msra.mxu0 0.0
    %230 = vmatprep.subr.mxu0 0.0
    %231 = vmatpush1.msra.mxu0 %v198
    %232 = vmatprep.subr.mxu0 0.0
    %233 = vmatpush1.msra.mxu0 %v197
    %234 = vmatprep.subr.mxu0 0.0
    %235 = vmatpush1.msra.mxu0 %v196
    %236 = vmatprep.subr.mxu0 0.0
    %237 = vmatpush1.msra.mxu0 %v195
    %238 = vmatprep.subr.mxu0 0.0
    %239 = vmatpush2.msra.mxu0 0.0
    %240 = vmatprep.subr.mxu0 0.0
    %241 = vmatpush2.msra.mxu0 0.0
    %242 = vmatprep.subr.mxu0 0.0
    %243 = vmatpush2.msra.mxu0 0.0
    %244 = vmatprep.subr.mxu0 0.0
    %245 = vmatpush2.msra.mxu0 0.0
    %246 = vmatprep.subr.mxu0 0.0
    %247 = vmatpush2.msra.mxu0 0.0
    %248 = vmatprep.subr.mxu0 0.0
    %249 = vmatpush2.msra.mxu0 0.0
    %250 = vmatprep.subr.mxu0 0.0
    %251 = vmatpush2.msra.mxu0 0.0
    %252 = vmatprep.subr.mxu0 0.0
    %253 = vmatpush2.msra.mxu0 0.0
    %254 = vmatprep.subr.mxu0 0.0
    %255 = vmatpush2.msra.mxu0 0.0
    %256 = vmatprep.subr.mxu0 0.0
    %257 = vmatpush2.msra.mxu0 0.0
    %258 = vmatprep.subr.mxu0 0.0
    %259 = vmatpush2.msra.mxu0 0.0
    %260 = vmatprep.subr.mxu0 0.0
    %261 = vmatpush2.msra.mxu0 0.0
    %262 = vmatprep.subr.mxu0 0.0
    %263 = vmatpush2.msra.mxu0 0.0
    %264 = vmatprep.subr.mxu0 0.0
    %265 = vmatpush2.msra.mxu0 0.0
    %266 = vmatprep.subr.mxu0 0.0
    %267 = vmatpush2.msra.mxu0 0.0
    %268 = vmatprep.subr.mxu0 0.0
    %269 = vmatpush2.msra.mxu0 0.0
    %270 = vmatprep.mubr.f32.mxu0 0.0
    %271 = vmatmul.mubr.f32.gmra.mxu0 %v113
    %v272 = vpop.f32.mrf.mxu0
    %v273 = vadd.f32 %v204, %v272
    %v274 = vpop.f32.mrf.mxu0
    %275 = vmatprep.mubr.f32.mxu0 0.0
    %276 = vmatmul.mubr.f32.gmra.mxu0 %v116
    %v277 = vpop.f32.mrf.mxu0
    %v278 = vadd.f32 %v204, %v277
    %v279 = vpop.f32.mrf.mxu0
    %280 = vdwg.mxu0
    %v281 = vld [vmem:[%s5] sm:$0xff]
    %v282 = vld [vmem:[%s5 + $0x8] sm:$0xff]
    %v283 = vld [vmem:[%s5 + $0x10] sm:$0xff]
    %v284 = vld [vmem:[%s5 + $0x18] sm:$0xff]
    %v285 = vld [vmem:[%s6] sm:$0x1]
    %v287 = vlaneseq
    %v288 = vshrl.u32 %v287, 7
    %v289 = vsub.s32 0, %v288
    %v290 = vrot.slane %v285, %v289
    %292 = vmatprep.subr.mxu0 0.0
    %293 = vmatpush1.msra.mxu0 0.0
    %294 = vmatprep.subr.mxu0 0.0
    %295 = vmatpush1.msra.mxu0 0.0
    %296 = vmatprep.subr.mxu0 0.0
    %297 = vmatpush1.msra.mxu0 0.0
    %298 = vmatprep.subr.mxu0 0.0
    %299 = vmatpush1.msra.mxu0 0.0
    %300 = vmatprep.subr.mxu0 0.0
    %301 = vmatpush1.msra.mxu0 0.0
    %302 = vmatprep.subr.mxu0 0.0
    %303 = vmatpush1.msra.mxu0 0.0
    %304 = vmatprep.subr.mxu0 0.0
    %305 = vmatpush1.msra.mxu0 0.0
    %306 = vmatprep.subr.mxu0 0.0
    %307 = vmatpush1.msra.mxu0 0.0
    %308 = vmatprep.subr.mxu0 0.0
    %309 = vmatpush1.msra.mxu0 0.0
    %310 = vmatprep.subr.mxu0 0.0
    %311 = vmatpush1.msra.mxu0 0.0
    %312 = vmatprep.subr.mxu0 0.0
    %313 = vmatpush1.msra.mxu0 0.0
    %314 = vmatprep.subr.mxu0 0.0
    %315 = vmatpush1.msra.mxu0 0.0
    %316 = vmatprep.subr.mxu0 0.0
    %317 = vmatpush1.msra.mxu0 %v284
    %318 = vmatprep.subr.mxu0 0.0
    %319 = vmatpush1.msra.mxu0 %v283
    %320 = vmatprep.subr.mxu0 0.0
    %321 = vmatpush1.msra.mxu0 %v282
    %322 = vmatprep.subr.mxu0 0.0
    %323 = vmatpush1.msra.mxu0 %v281
    %324 = vmatprep.subr.mxu0 0.0
    %325 = vmatpush2.msra.mxu0 0.0
    %326 = vmatprep.subr.mxu0 0.0
    %327 = vmatpush2.msra.mxu0 0.0
    %328 = vmatprep.subr.mxu0 0.0
    %329 = vmatpush2.msra.mxu0 0.0
    %330 = vmatprep.subr.mxu0 0.0
    %331 = vmatpush2.msra.mxu0 0.0
    %332 = vmatprep.subr.mxu0 0.0
    %333 = vmatpush2.msra.mxu0 0.0
    %334 = vmatprep.subr.mxu0 0.0
    %335 = vmatpush2.msra.mxu0 0.0
    %336 = vmatprep.subr.mxu0 0.0
    %337 = vmatpush2.msra.mxu0 0.0
    %338 = vmatprep.subr.mxu0 0.0
    %339 = vmatpush2.msra.mxu0 0.0
    %340 = vmatprep.subr.mxu0 0.0
    %341 = vmatpush2.msra.mxu0 0.0
    %342 = vmatprep.subr.mxu0 0.0
    %343 = vmatpush2.msra.mxu0 0.0
    %344 = vmatprep.subr.mxu0 0.0
    %345 = vmatpush2.msra.mxu0 0.0
    %346 = vmatprep.subr.mxu0 0.0
    %347 = vmatpush2.msra.mxu0 0.0
    %348 = vmatprep.subr.mxu0 0.0
    %349 = vmatpush2.msra.mxu0 0.0
    %350 = vmatprep.subr.mxu0 0.0
    %351 = vmatpush2.msra.mxu0 0.0
    %352 = vmatprep.subr.mxu0 0.0
    %353 = vmatpush2.msra.mxu0 0.0
    %354 = vmatprep.subr.mxu0 0.0
    %355 = vmatpush2.msra.mxu0 0.0
    %356 = vmatprep.mubr.f32.mxu0 0.0
    %357 = vmatmul.mubr.f32.gmra.mxu0 %v113
    %v358 = vpop.f32.mrf.mxu0
    %v359 = vadd.f32 %v290, %v358
    %v360 = vpop.f32.mrf.mxu0
    %361 = vmatprep.mubr.f32.mxu0 0.0
    %362 = vmatmul.mubr.f32.gmra.mxu0 %v116
    %v363 = vpop.f32.mrf.mxu0
    %v364 = vadd.f32 %v290, %v363
    %v365 = vpop.f32.mrf.mxu0
    %366 = vdwg.mxu0
    %367 = vst.msk [vmem:[#allocation2] sm:$0xff] %vm111, 0.0
    %368 = vst.msk [vmem:[#allocation2 + $0x8] sm:$0xff] %vm111, 0.0
    %vm369 = vcmask 64512
    %v371 = vsel %vm369, %v193, 0
    %v374 = vsel %vm369, %v273, 0
    %376 = vmatprep.subr.mxu0 0.0
    %377 = vmatpush1.xpose.msra.mxu0 0.0
    %378 = vmatprep.subr.mxu0 0.0
    %379 = vmatpush1.xpose.msra.mxu0 0.0
    %380 = vmatprep.subr.mxu0 0.0
    %381 = vmatpush1.xpose.msra.mxu0 0.0
    %382 = vmatprep.subr.mxu0 0.0
    %383 = vmatpush1.xpose.msra.mxu0 0.0
    %384 = vmatprep.subr.mxu0 0.0
    %385 = vmatpush1.xpose.msra.mxu0 0.0
    %386 = vmatprep.subr.mxu0 0.0
    %387 = vmatpush1.xpose.msra.mxu0 0.0
    %388 = vmatprep.subr.mxu0 0.0
    %389 = vmatpush1.xpose.msra.mxu0 0.0
    %390 = vmatprep.subr.mxu0 0.0
    %391 = vmatpush1.xpose.msra.mxu0 0.0
    %392 = vmatprep.subr.mxu0 0.0
    %393 = vmatpush1.xpose.msra.mxu0 0.0
    %394 = vmatprep.subr.mxu0 0.0
    %395 = vmatpush1.xpose.msra.mxu0 0.0
    %396 = vmatprep.subr.mxu0 0.0
    %397 = vmatpush1.xpose.msra.mxu0 0.0
    %398 = vmatprep.subr.mxu0 0.0
    %399 = vmatpush1.xpose.msra.mxu0 0.0
    %400 = vmatprep.subr.mxu0 0.0
    %401 = vmatpush1.xpose.msra.mxu0 0.0
    %402 = vmatprep.subr.mxu0 0.0
    %403 = vmatpush1.xpose.msra.mxu0 0.0
    %404 = vmatprep.subr.mxu0 0.0
    %405 = vmatpush1.xpose.msra.mxu0 0.0
    %406 = vmatprep.subr.mxu0 0.0
    %407 = vmatpush1.xpose.msra.mxu0 %v374
    %408 = vmatprep.subr.mxu0 0.0
    %409 = vmatpush2.xpose.msra.mxu0 0.0
    %410 = vmatprep.subr.mxu0 0.0
    %411 = vmatpush2.xpose.msra.mxu0 0.0
    %412 = vmatprep.subr.mxu0 0.0
    %413 = vmatpush2.xpose.msra.mxu0 0.0
    %414 = vmatprep.subr.mxu0 0.0
    %415 = vmatpush2.xpose.msra.mxu0 0.0
    %416 = vmatprep.subr.mxu0 0.0
    %417 = vmatpush2.xpose.msra.mxu0 0.0
    %418 = vmatprep.subr.mxu0 0.0
    %419 = vmatpush2.xpose.msra.mxu0 0.0
    %420 = vmatprep.subr.mxu0 0.0
    %421 = vmatpush2.xpose.msra.mxu0 0.0
    %422 = vmatprep.subr.mxu0 0.0
    %423 = vmatpush2.xpose.msra.mxu0 0.0
    %424 = vmatprep.subr.mxu0 0.0
    %425 = vmatpush2.xpose.msra.mxu0 0.0
    %426 = vmatprep.subr.mxu0 0.0
    %427 = vmatpush2.xpose.msra.mxu0 0.0
    %428 = vmatprep.subr.mxu0 0.0
    %429 = vmatpush2.xpose.msra.mxu0 0.0
    %430 = vmatprep.subr.mxu0 0.0
    %431 = vmatpush2.xpose.msra.mxu0 0.0
    %432 = vmatprep.subr.mxu0 0.0
    %433 = vmatpush2.xpose.msra.mxu0 0.0
    %434 = vmatprep.subr.mxu0 0.0
    %435 = vmatpush2.xpose.msra.mxu0 0.0
    %436 = vmatprep.subr.mxu0 0.0
    %437 = vmatpush2.xpose.msra.mxu0 0.0
    %438 = vmatprep.subr.mxu0 0.0
    %439 = vmatpush2.xpose.msra.mxu0 0.0
    %440 = vmatprep.mubr.f32.mxu0 0.0
    %441 = vmatmul.mubr.f32.gmra.mxu0 %v371
    %v442 = vpop.f32.mrf.mxu0
    %v443 = vadd.f32 0.0, %v442
    %v444 = vpop.f32.mrf.mxu0
    %445 = vdwg.mxu0
    %v446 = vsel %vm369, %v443, -inf
    %447 = vmax.xlane.f32.xlu0 %v446
    %v448 = vpop.xlane.xlu0 %447
    %v449 = vsub.f32 %v443, %v448
    %v450 = vmul.f32 %v449, 1.442695
    %v451 = vpow.pop %v450
    %v452 = vsel %vm369, %v451, 0.0
    %453 = vadd.xlane.f32.xlu0 %v452
    %v454 = vpop.xlane.xlu0 %453
    %v455 = vrcp.pop %v454
    %v456 = vmul.f32 %v451, %v455
    %v458 = vsel %vm369, %v456, 0
    %460 = vmatprep.subr.mxu0 0.0
    %461 = vmatpush1.msra.mxu0 0.0
    %462 = vmatprep.subr.mxu0 0.0
    %463 = vmatpush1.msra.mxu0 0.0
    %464 = vmatprep.subr.mxu0 0.0
    %465 = vmatpush1.msra.mxu0 0.0
    %466 = vmatprep.subr.mxu0 0.0
    %467 = vmatpush1.msra.mxu0 0.0
    %468 = vmatprep.subr.mxu0 0.0
    %469 = vmatpush1.msra.mxu0 0.0
    %470 = vmatprep.subr.mxu0 0.0
    %471 = vmatpush1.msra.mxu0 0.0
    %472 = vmatprep.subr.mxu0 0.0
    %473 = vmatpush1.msra.mxu0 0.0
    %474 = vmatprep.subr.mxu0 0.0
    %475 = vmatpush1.msra.mxu0 0.0
    %476 = vmatprep.subr.mxu0 0.0
    %477 = vmatpush1.msra.mxu0 0.0
    %478 = vmatprep.subr.mxu0 0.0
    %479 = vmatpush1.msra.mxu0 0.0
    %480 = vmatprep.subr.mxu0 0.0
    %481 = vmatpush1.msra.mxu0 0.0
    %482 = vmatprep.subr.mxu0 0.0
    %483 = vmatpush1.msra.mxu0 0.0
    %484 = vmatprep.subr.mxu0 0.0
    %485 = vmatpush1.msra.mxu0 0.0
    %486 = vmatprep.subr.mxu0 0.0
    %487 = vmatpush1.msra.mxu0 0.0
    %488 = vmatprep.subr.mxu0 0.0
    %489 = vmatpush1.msra.mxu0 0.0
    %490 = vmatprep.subr.mxu0 0.0
    %491 = vmatpush1.msra.mxu0 %v359
    %492 = vmatprep.subr.mxu0 0.0
    %493 = vmatpush2.msra.mxu0 0.0
    %494 = vmatprep.subr.mxu0 0.0
    %495 = vmatpush2.msra.mxu0 0.0
    %496 = vmatprep.subr.mxu0 0.0
    %497 = vmatpush2.msra.mxu0 0.0
    %498 = vmatprep.subr.mxu0 0.0
    %499 = vmatpush2.msra.mxu0 0.0
    %500 = vmatprep.subr.mxu0 0.0
    %501 = vmatpush2.msra.mxu0 0.0
    %502 = vmatprep.subr.mxu0 0.0
    %503 = vmatpush2.msra.mxu0 0.0
    %504 = vmatprep.subr.mxu0 0.0
    %505 = vmatpush2.msra.mxu0 0.0
    %506 = vmatprep.subr.mxu0 0.0
    %507 = vmatpush2.msra.mxu0 0.0
    %508 = vmatprep.subr.mxu0 0.0
    %509 = vmatpush2.msra.mxu0 0.0
    %510 = vmatprep.subr.mxu0 0.0
    %511 = vmatpush2.msra.mxu0 0.0
    %512 = vmatprep.subr.mxu0 0.0
    %513 = vmatpush2.msra.mxu0 0.0
    %514 = vmatprep.subr.mxu0 0.0
    %515 = vmatpush2.msra.mxu0 0.0
    %516 = vmatprep.subr.mxu0 0.0
    %517 = vmatpush2.msra.mxu0 0.0
    %518 = vmatprep.subr.mxu0 0.0
    %519 = vmatpush2.msra.mxu0 0.0
    %520 = vmatprep.subr.mxu0 0.0
    %521 = vmatpush2.msra.mxu0 0.0
    %522 = vmatprep.subr.mxu0 0.0
    %523 = vmatpush2.msra.mxu0 0.0
    %524 = vmatprep.mubr.f32.mxu0 0.0
    %525 = vmatmul.mubr.f32.gmra.mxu0 %v458
    %v526 = vpop.f32.mrf.mxu0
    %v527 = vadd.f32 0.0, %v526
    %v528 = vpop.f32.mrf.mxu0
    %529 = vdwg.mxu0
    %v530 = vld [vmem:[#allocation2] sm:$0xff]
    %v531 = vld [vmem:[#allocation6] sm:$0xff]
    %v533 = vsel %vm369, %v527, 0
    %535 = vmatprep.subr.mxu0 0.0
    %536 = vmatpush1.msra.mxu0 0.0
    %537 = vmatprep.subr.mxu0 0.0
    %538 = vmatpush1.msra.mxu0 0.0
    %539 = vmatprep.subr.mxu0 0.0
    %540 = vmatpush1.msra.mxu0 0.0
    %541 = vmatprep.subr.mxu0 0.0
    %542 = vmatpush1.msra.mxu0 0.0
    %543 = vmatprep.subr.mxu0 0.0
    %544 = vmatpush1.msra.mxu0 0.0
    %545 = vmatprep.subr.mxu0 0.0
    %546 = vmatpush1.msra.mxu0 0.0
    %547 = vmatprep.subr.mxu0 0.0
    %548 = vmatpush1.msra.mxu0 0.0
    %549 = vmatprep.subr.mxu0 0.0
    %550 = vmatpush1.msra.mxu0 0.0
    %551 = vmatprep.subr.mxu0 0.0
    %552 = vmatpush1.msra.mxu0 0.0
    %553 = vmatprep.subr.mxu0 0.0
    %554 = vmatpush1.msra.mxu0 0.0
    %555 = vmatprep.subr.mxu0 0.0
    %556 = vmatpush1.msra.mxu0 0.0
    %557 = vmatprep.subr.mxu0 0.0
    %558 = vmatpush1.msra.mxu0 0.0
    %559 = vmatprep.subr.mxu0 0.0
    %560 = vmatpush1.msra.mxu0 0.0
    %561 = vmatprep.subr.mxu0 0.0
    %562 = vmatpush1.msra.mxu0 0.0
    %563 = vmatprep.subr.mxu0 0.0
    %564 = vmatpush1.msra.mxu0 0.0
    %565 = vmatprep.subr.mxu0 0.0
    %566 = vmatpush1.msra.mxu0 %v531
    %567 = vmatprep.subr.mxu0 0.0
    %568 = vmatpush2.msra.mxu0 0.0
    %569 = vmatprep.subr.mxu0 0.0
    %570 = vmatpush2.msra.mxu0 0.0
    %571 = vmatprep.subr.mxu0 0.0
    %572 = vmatpush2.msra.mxu0 0.0
    %573 = vmatprep.subr.mxu0 0.0
    %574 = vmatpush2.msra.mxu0 0.0
    %575 = vmatprep.subr.mxu0 0.0
    %576 = vmatpush2.msra.mxu0 0.0
    %577 = vmatprep.subr.mxu0 0.0
    %578 = vmatpush2.msra.mxu0 0.0
    %579 = vmatprep.subr.mxu0 0.0
    %580 = vmatpush2.msra.mxu0 0.0
    %581 = vmatprep.subr.mxu0 0.0
    %582 = vmatpush2.msra.mxu0 0.0
    %583 = vmatprep.subr.mxu0 0.0
    %584 = vmatpush2.msra.mxu0 0.0
    %585 = vmatprep.subr.mxu0 0.0
    %586 = vmatpush2.msra.mxu0 0.0
    %587 = vmatprep.subr.mxu0 0.0
    %588 = vmatpush2.msra.mxu0 0.0
    %589 = vmatprep.subr.mxu0 0.0
    %590 = vmatpush2.msra.mxu0 0.0
    %591 = vmatprep.subr.mxu0 0.0
    %592 = vmatpush2.msra.mxu0 0.0
    %593 = vmatprep.subr.mxu0 0.0
    %594 = vmatpush2.msra.mxu0 0.0
    %595 = vmatprep.subr.mxu0 0.0
    %596 = vmatpush2.msra.mxu0 0.0
    %597 = vmatprep.subr.mxu0 0.0
    %598 = vmatpush2.msra.mxu0 0.0
    %599 = vmatprep.mubr.f32.mxu0 0.0
    %600 = vmatmul.mubr.f32.gmra.mxu0 %v533
    %v601 = vpop.f32.mrf.mxu0
    %v602 = vadd.f32 0.0, %v601
    %v603 = vpop.f32.mrf.mxu0
    %604 = vdwg.mxu0
    %v605 = vadd.f32 %v530, %v602
    %606 = vst.msk [vmem:[#allocation2] sm:$0xff] %vm111, %v605
    %607 = vrot.lane.b32.xlu0 %v193, 120
    %v608 = vpop.permute.xlu0 %607
    %609 = vrot.lane.b32.xlu0 %v273, 120
    %v610 = vpop.permute.xlu0 %609
    %v611 = vsel %vm369, %v608, 0
    %v613 = vsel %vm369, %v610, 0
    %615 = vmatprep.subr.mxu0 0.0
    %616 = vmatpush1.xpose.msra.mxu0 0.0
    %617 = vmatprep.subr.mxu0 0.0
    %618 = vmatpush1.xpose.msra.mxu0 0.0
    %619 = vmatprep.subr.mxu0 0.0
    %620 = vmatpush1.xpose.msra.mxu0 0.0
    %621 = vmatprep.subr.mxu0 0.0
    %622 = vmatpush1.xpose.msra.mxu0 0.0
    %623 = vmatprep.subr.mxu0 0.0
    %624 = vmatpush1.xpose.msra.mxu0 0.0
    %625 = vmatprep.subr.mxu0 0.0
    %626 = vmatpush1.xpose.msra.mxu0 0.0
    %627 = vmatprep.subr.mxu0 0.0
    %628 = vmatpush1.xpose.msra.mxu0 0.0
    %629 = vmatprep.subr.mxu0 0.0
    %630 = vmatpush1.xpose.msra.mxu0 0.0
    %631 = vmatprep.subr.mxu0 0.0
    %632 = vmatpush1.xpose.msra.mxu0 0.0
    %633 = vmatprep.subr.mxu0 0.0
    %634 = vmatpush1.xpose.msra.mxu0 0.0
    %635 = vmatprep.subr.mxu0 0.0
    %636 = vmatpush1.xpose.msra.mxu0 0.0
    %637 = vmatprep.subr.mxu0 0.0
    %638 = vmatpush1.xpose.msra.mxu0 0.0
    %639 = vmatprep.subr.mxu0 0.0
    %640 = vmatpush1.xpose.msra.mxu0 0.0
    %641 = vmatprep.subr.mxu0 0.0
    %642 = vmatpush1.xpose.msra.mxu0 0.0
    %643 = vmatprep.subr.mxu0 0.0
    %644 = vmatpush1.xpose.msra.mxu0 0.0
    %645 = vmatprep.subr.mxu0 0.0
    %646 = vmatpush1.xpose.msra.mxu0 %v613
    %647 = vmatprep.subr.mxu0 0.0
    %648 = vmatpush2.xpose.msra.mxu0 0.0
    %649 = vmatprep.subr.mxu0 0.0
    %650 = vmatpush2.xpose.msra.mxu0 0.0
    %651 = vmatprep.subr.mxu0 0.0
    %652 = vmatpush2.xpose.msra.mxu0 0.0
    %653 = vmatprep.subr.mxu0 0.0
    %654 = vmatpush2.xpose.msra.mxu0 0.0
    %655 = vmatprep.subr.mxu0 0.0
    %656 = vmatpush2.xpose.msra.mxu0 0.0
    %657 = vmatprep.subr.mxu0 0.0
    %658 = vmatpush2.xpose.msra.mxu0 0.0
    %659 = vmatprep.subr.mxu0 0.0
    %660 = vmatpush2.xpose.msra.mxu0 0.0
    %661 = vmatprep.subr.mxu0 0.0
    %662 = vmatpush2.xpose.msra.mxu0 0.0
    %663 = vmatprep.subr.mxu0 0.0
    %664 = vmatpush2.xpose.msra.mxu0 0.0
    %665 = vmatprep.subr.mxu0 0.0
    %666 = vmatpush2.xpose.msra.mxu0 0.0
    %667 = vmatprep.subr.mxu0 0.0
    %668 = vmatpush2.xpose.msra.mxu0 0.0
    %669 = vmatprep.subr.mxu0 0.0
    %670 = vmatpush2.xpose.msra.mxu0 0.0
    %671 = vmatprep.subr.mxu0 0.0
    %672 = vmatpush2.xpose.msra.mxu0 0.0
    %673 = vmatprep.subr.mxu0 0.0
    %674 = vmatpush2.xpose.msra.mxu0 0.0
    %675 = vmatprep.subr.mxu0 0.0
    %676 = vmatpush2.xpose.msra.mxu0 0.0
    %677 = vmatprep.subr.mxu0 0.0
    %678 = vmatpush2.xpose.msra.mxu0 0.0
    %679 = vmatprep.mubr.f32.mxu0 0.0
    %680 = vmatmul.mubr.f32.gmra.mxu0 %v611
    %v681 = vpop.f32.mrf.mxu0
    %v682 = vadd.f32 0.0, %v681
    %v683 = vpop.f32.mrf.mxu0
    %684 = vdwg.mxu0
    %v685 = vsel %vm369, %v682, -inf
    %686 = vmax.xlane.f32.xlu0 %v685
    %v687 = vpop.xlane.xlu0 %686
    %v688 = vsub.f32 %v682, %v687
    %v689 = vmul.f32 %v688, 1.442695
    %v690 = vpow.pop %v689
    %v691 = vsel %vm369, %v690, 0.0
    %692 = vadd.xlane.f32.xlu0 %v691
    %v693 = vpop.xlane.xlu0 %692
    %v694 = vrcp.pop %v693
    %v695 = vmul.f32 %v690, %v694
    %697 = vrot.lane.b32.xlu0 %v359, 120
    %v698 = vpop.permute.xlu0 %697
    %v701 = vsel %vm369, %v695, 0
    %703 = vmatprep.subr.mxu0 0.0
    %704 = vmatpush1.msra.mxu0 0.0
    %705 = vmatprep.subr.mxu0 0.0
    %706 = vmatpush1.msra.mxu0 0.0
    %707 = vmatprep.subr.mxu0 0.0
    %708 = vmatpush1.msra.mxu0 0.0
    %709 = vmatprep.subr.mxu0 0.0
    %710 = vmatpush1.msra.mxu0 0.0
    %711 = vmatprep.subr.mxu0 0.0
    %712 = vmatpush1.msra.mxu0 0.0
    %713 = vmatprep.subr.mxu0 0.0
    %714 = vmatpush1.msra.mxu0 0.0
    %715 = vmatprep.subr.mxu0 0.0
    %716 = vmatpush1.msra.mxu0 0.0
    %717 = vmatprep.subr.mxu0 0.0
    %718 = vmatpush1.msra.mxu0 0.0
    %719 = vmatprep.subr.mxu0 0.0
    %720 = vmatpush1.msra.mxu0 0.0
    %721 = vmatprep.subr.mxu0 0.0
    %722 = vmatpush1.msra.mxu0 0.0
    %723 = vmatprep.subr.mxu0 0.0
    %724 = vmatpush1.msra.mxu0 0.0
    %725 = vmatprep.subr.mxu0 0.0
    %726 = vmatpush1.msra.mxu0 0.0
    %727 = vmatprep.subr.mxu0 0.0
    %728 = vmatpush1.msra.mxu0 0.0
    %729 = vmatprep.subr.mxu0 0.0
    %730 = vmatpush1.msra.mxu0 0.0
    %731 = vmatprep.subr.mxu0 0.0
    %732 = vmatpush1.msra.mxu0 0.0
    %733 = vmatprep.subr.mxu0 0.0
    %734 = vmatpush1.msra.mxu0 %v698
    %735 = vmatprep.subr.mxu0 0.0
    %736 = vmatpush2.msra.mxu0 0.0
    %737 = vmatprep.subr.mxu0 0.0
    %738 = vmatpush2.msra.mxu0 0.0
    %739 = vmatprep.subr.mxu0 0.0
    %740 = vmatpush2.msra.mxu0 0.0
    %741 = vmatprep.subr.mxu0 0.0
    %742 = vmatpush2.msra.mxu0 0.0
    %743 = vmatprep.subr.mxu0 0.0
    %744 = vmatpush2.msra.mxu0 0.0
    %745 = vmatprep.subr.mxu0 0.0
    %746 = vmatpush2.msra.mxu0 0.0
    %747 = vmatprep.subr.mxu0 0.0
    %748 = vmatpush2.msra.mxu0 0.0
    %749 = vmatprep.subr.mxu0 0.0
    %750 = vmatpush2.msra.mxu0 0.0
    %751 = vmatprep.subr.mxu0 0.0
    %752 = vmatpush2.msra.mxu0 0.0
    %753 = vmatprep.subr.mxu0 0.0
    %754 = vmatpush2.msra.mxu0 0.0
    %755 = vmatprep.subr.mxu0 0.0
    %756 = vmatpush2.msra.mxu0 0.0
    %757 = vmatprep.subr.mxu0 0.0
    %758 = vmatpush2.msra.mxu0 0.0
    %759 = vmatprep.subr.mxu0 0.0
    %760 = vmatpush2.msra.mxu0 0.0
    %761 = vmatprep.subr.mxu0 0.0
    %762 = vmatpush2.msra.mxu0 0.0
    %763 = vmatprep.subr.mxu0 0.0
    %764 = vmatpush2.msra.mxu0 0.0
    %765 = vmatprep.subr.mxu0 0.0
    %766 = vmatpush2.msra.mxu0 0.0
    %767 = vmatprep.mubr.f32.mxu0 0.0
    %768 = vmatmul.mubr.f32.gmra.mxu0 %v701
    %v769 = vpop.f32.mrf.mxu0
    %v770 = vadd.f32 0.0, %v769
    %v771 = vpop.f32.mrf.mxu0
    %772 = vdwg.mxu0
    %v773 = vld [vmem:[#allocation2] sm:$0xff]
    %v774 = vld [vmem:[#allocation6 + $0x8] sm:$0xff]
    %v776 = vsel %vm369, %v770, 0
    %778 = vmatprep.subr.mxu0 0.0
    %779 = vmatpush1.msra.mxu0 0.0
    %780 = vmatprep.subr.mxu0 0.0
    %781 = vmatpush1.msra.mxu0 0.0
    %782 = vmatprep.subr.mxu0 0.0
    %783 = vmatpush1.msra.mxu0 0.0
    %784 = vmatprep.subr.mxu0 0.0
    %785 = vmatpush1.msra.mxu0 0.0
    %786 = vmatprep.subr.mxu0 0.0
    %787 = vmatpush1.msra.mxu0 0.0
    %788 = vmatprep.subr.mxu0 0.0
    %789 = vmatpush1.msra.mxu0 0.0
    %790 = vmatprep.subr.mxu0 0.0
    %791 = vmatpush1.msra.mxu0 0.0
    %792 = vmatprep.subr.mxu0 0.0
    %793 = vmatpush1.msra.mxu0 0.0
    %794 = vmatprep.subr.mxu0 0.0
    %795 = vmatpush1.msra.mxu0 0.0
    %796 = vmatprep.subr.mxu0 0.0
    %797 = vmatpush1.msra.mxu0 0.0
    %798 = vmatprep.subr.mxu0 0.0
    %799 = vmatpush1.msra.mxu0 0.0
    %800 = vmatprep.subr.mxu0 0.0
    %801 = vmatpush1.msra.mxu0 0.0
    %802 = vmatprep.subr.mxu0 0.0
    %803 = vmatpush1.msra.mxu0 0.0
    %804 = vmatprep.subr.mxu0 0.0
    %805 = vmatpush1.msra.mxu0 0.0
    %806 = vmatprep.subr.mxu0 0.0
    %807 = vmatpush1.msra.mxu0 0.0
    %808 = vmatprep.subr.mxu0 0.0
    %809 = vmatpush1.msra.mxu0 %v774
    %810 = vmatprep.subr.mxu0 0.0
    %811 = vmatpush2.msra.mxu0 0.0
    %812 = vmatprep.subr.mxu0 0.0
    %813 = vmatpush2.msra.mxu0 0.0
    %814 = vmatprep.subr.mxu0 0.0
    %815 = vmatpush2.msra.mxu0 0.0
    %816 = vmatprep.subr.mxu0 0.0
    %817 = vmatpush2.msra.mxu0 0.0
    %818 = vmatprep.subr.mxu0 0.0
    %819 = vmatpush2.msra.mxu0 0.0
    %820 = vmatprep.subr.mxu0 0.0
    %821 = vmatpush2.msra.mxu0 0.0
    %822 = vmatprep.subr.mxu0 0.0
    %823 = vmatpush2.msra.mxu0 0.0
    %824 = vmatprep.subr.mxu0 0.0
    %825 = vmatpush2.msra.mxu0 0.0
    %826 = vmatprep.subr.mxu0 0.0
    %827 = vmatpush2.msra.mxu0 0.0
    %828 = vmatprep.subr.mxu0 0.0
    %829 = vmatpush2.msra.mxu0 0.0
    %830 = vmatprep.subr.mxu0 0.0
    %831 = vmatpush2.msra.mxu0 0.0
    %832 = vmatprep.subr.mxu0 0.0
    %833 = vmatpush2.msra.mxu0 0.0
    %834 = vmatprep.subr.mxu0 0.0
    %835 = vmatpush2.msra.mxu0 0.0
    %836 = vmatprep.subr.mxu0 0.0
    %837 = vmatpush2.msra.mxu0 0.0
    %838 = vmatprep.subr.mxu0 0.0
    %839 = vmatpush2.msra.mxu0 0.0
    %840 = vmatprep.subr.mxu0 0.0
    %841 = vmatpush2.msra.mxu0 0.0
    %842 = vmatprep.mubr.f32.mxu0 0.0
    %843 = vmatmul.mubr.f32.gmra.mxu0 %v776
    %v844 = vpop.f32.mrf.mxu0
    %v845 = vadd.f32 0.0, %v844
    %v846 = vpop.f32.mrf.mxu0
    %847 = vdwg.mxu0
    %v848 = vadd.f32 %v773, %v845
    %849 = vst.msk [vmem:[#allocation2] sm:$0xff] %vm111, %v848
    %850 = vrot.lane.b32.xlu0 %v193, 112
    %v851 = vpop.permute.xlu0 %850
    %852 = vrot.lane.b32.xlu0 %v273, 112
    %v853 = vpop.permute.xlu0 %852
    %v854 = vsel %vm369, %v851, 0
    %v856 = vsel %vm369, %v853, 0
    %858 = vmatprep.subr.mxu0 0.0
    %859 = vmatpush1.xpose.msra.mxu0 0.0
    %860 = vmatprep.subr.mxu0 0.0
    %861 = vmatpush1.xpose.msra.mxu0 0.0
    %862 = vmatprep.subr.mxu0 0.0
    %863 = vmatpush1.xpose.msra.mxu0 0.0
    %864 = vmatprep.subr.mxu0 0.0
    %865 = vmatpush1.xpose.msra.mxu0 0.0
    %866 = vmatprep.subr.mxu0 0.0
    %867 = vmatpush1.xpose.msra.mxu0 0.0
    %868 = vmatprep.subr.mxu0 0.0
    %869 = vmatpush1.xpose.msra.mxu0 0.0
    %870 = vmatprep.subr.mxu0 0.0
    %871 = vmatpush1.xpose.msra.mxu0 0.0
    %872 = vmatprep.subr.mxu0 0.0
    %873 = vmatpush1.xpose.msra.mxu0 0.0
    %874 = vmatprep.subr.mxu0 0.0
    %875 = vmatpush1.xpose.msra.mxu0 0.0
    %876 = vmatprep.subr.mxu0 0.0
    %877 = vmatpush1.xpose.msra.mxu0 0.0
    %878 = vmatprep.subr.mxu0 0.0
    %879 = vmatpush1.xpose.msra.mxu0 0.0
    %880 = vmatprep.subr.mxu0 0.0
    %881 = vmatpush1.xpose.msra.mxu0 0.0
    %882 = vmatprep.subr.mxu0 0.0
    %883 = vmatpush1.xpose.msra.mxu0 0.0
    %884 = vmatprep.subr.mxu0 0.0
    %885 = vmatpush1.xpose.msra.mxu0 0.0
    %886 = vmatprep.subr.mxu0 0.0
    %887 = vmatpush1.xpose.msra.mxu0 0.0
    %888 = vmatprep.subr.mxu0 0.0
    %889 = vmatpush1.xpose.msra.mxu0 %v856
    %890 = vmatprep.subr.mxu0 0.0
    %891 = vmatpush2.xpose.msra.mxu0 0.0
    %892 = vmatprep.subr.mxu0 0.0
    %893 = vmatpush2.xpose.msra.mxu0 0.0
    %894 = vmatprep.subr.mxu0 0.0
    %895 = vmatpush2.xpose.msra.mxu0 0.0
    %896 = vmatprep.subr.mxu0 0.0
    %897 = vmatpush2.xpose.msra.mxu0 0.0
    %898 = vmatprep.subr.mxu0 0.0
    %899 = vmatpush2.xpose.msra.mxu0 0.0
    %900 = vmatprep.subr.mxu0 0.0
    %901 = vmatpush2.xpose.msra.mxu0 0.0
    %902 = vmatprep.subr.mxu0 0.0
    %903 = vmatpush2.xpose.msra.mxu0 0.0
    %904 = vmatprep.subr.mxu0 0.0
    %905 = vmatpush2.xpose.msra.mxu0 0.0
    %906 = vmatprep.subr.mxu0 0.0
    %907 = vmatpush2.xpose.msra.mxu0 0.0
    %908 = vmatprep.subr.mxu0 0.0
    %909 = vmatpush2.xpose.msra.mxu0 0.0
    %910 = vmatprep.subr.mxu0 0.0
    %911 = vmatpush2.xpose.msra.mxu0 0.0
    %912 = vmatprep.subr.mxu0 0.0
    %913 = vmatpush2.xpose.msra.mxu0 0.0
    %914 = vmatprep.subr.mxu0 0.0
    %915 = vmatpush2.xpose.msra.mxu0 0.0
    %916 = vmatprep.subr.mxu0 0.0
    %917 = vmatpush2.xpose.msra.mxu0 0.0
    %918 = vmatprep.subr.mxu0 0.0
    %919 = vmatpush2.xpose.msra.mxu0 0.0
    %920 = vmatprep.subr.mxu0 0.0
    %921 = vmatpush2.xpose.msra.mxu0 0.0
    %922 = vmatprep.mubr.f32.mxu0 0.0
    %923 = vmatmul.mubr.f32.gmra.mxu0 %v854
    %v924 = vpop.f32.mrf.mxu0
    %v925 = vadd.f32 0.0, %v924
    %v926 = vpop.f32.mrf.mxu0
    %927 = vdwg.mxu0
    %v928 = vsel %vm369, %v925, -inf
    %929 = vmax.xlane.f32.xlu0 %v928
    %v930 = vpop.xlane.xlu0 %929
    %v931 = vsub.f32 %v925, %v930
    %v932 = vmul.f32 %v931, 1.442695
    %v933 = vpow.pop %v932
    %v934 = vsel %vm369, %v933, 0.0
    %935 = vadd.xlane.f32.xlu0 %v934
    %v936 = vpop.xlane.xlu0 %935
    %v937 = vrcp.pop %v936
    %v938 = vmul.f32 %v933, %v937
    %939 = vrot.lane.b32.xlu0 %v359, 112
    %v940 = vpop.permute.xlu0 %939
    %v943 = vsel %vm369, %v938, 0
    %945 = vmatprep.subr.mxu0 0.0
    %946 = vmatpush1.msra.mxu0 0.0
    %947 = vmatprep.subr.mxu0 0.0
    %948 = vmatpush1.msra.mxu0 0.0
    %949 = vmatprep.subr.mxu0 0.0
    %950 = vmatpush1.msra.mxu0 0.0
    %951 = vmatprep.subr.mxu0 0.0
    %952 = vmatpush1.msra.mxu0 0.0
    %953 = vmatprep.subr.mxu0 0.0
    %954 = vmatpush1.msra.mxu0 0.0
    %955 = vmatprep.subr.mxu0 0.0
    %956 = vmatpush1.msra.mxu0 0.0
    %957 = vmatprep.subr.mxu0 0.0
    %958 = vmatpush1.msra.mxu0 0.0
    %959 = vmatprep.subr.mxu0 0.0
    %960 = vmatpush1.msra.mxu0 0.0
    %961 = vmatprep.subr.mxu0 0.0
    %962 = vmatpush1.msra.mxu0 0.0
    %963 = vmatprep.subr.mxu0 0.0
    %964 = vmatpush1.msra.mxu0 0.0
    %965 = vmatprep.subr.mxu0 0.0
    %966 = vmatpush1.msra.mxu0 0.0
    %967 = vmatprep.subr.mxu0 0.0
    %968 = vmatpush1.msra.mxu0 0.0
    %969 = vmatprep.subr.mxu0 0.0
    %970 = vmatpush1.msra.mxu0 0.0
    %971 = vmatprep.subr.mxu0 0.0
    %972 = vmatpush1.msra.mxu0 0.0
    %973 = vmatprep.subr.mxu0 0.0
    %974 = vmatpush1.msra.mxu0 0.0
    %975 = vmatprep.subr.mxu0 0.0
    %976 = vmatpush1.msra.mxu0 %v940
    %977 = vmatprep.subr.mxu0 0.0
    %978 = vmatpush2.msra.mxu0 0.0
    %979 = vmatprep.subr.mxu0 0.0
    %980 = vmatpush2.msra.mxu0 0.0
    %981 = vmatprep.subr.mxu0 0.0
    %982 = vmatpush2.msra.mxu0 0.0
    %983 = vmatprep.subr.mxu0 0.0
    %984 = vmatpush2.msra.mxu0 0.0
    %985 = vmatprep.subr.mxu0 0.0
    %986 = vmatpush2.msra.mxu0 0.0
    %987 = vmatprep.subr.mxu0 0.0
    %988 = vmatpush2.msra.mxu0 0.0
    %989 = vmatprep.subr.mxu0 0.0
    %990 = vmatpush2.msra.mxu0 0.0
    %991 = vmatprep.subr.mxu0 0.0
    %992 = vmatpush2.msra.mxu0 0.0
    %993 = vmatprep.subr.mxu0 0.0
    %994 = vmatpush2.msra.mxu0 0.0
    %995 = vmatprep.subr.mxu0 0.0
    %996 = vmatpush2.msra.mxu0 0.0
    %997 = vmatprep.subr.mxu0 0.0
    %998 = vmatpush2.msra.mxu0 0.0
    %999 = vmatprep.subr.mxu0 0.0
    %1000 = vmatpush2.msra.mxu0 0.0
    %1001 = vmatprep.subr.mxu0 0.0
    %1002 = vmatpush2.msra.mxu0 0.0
    %1003 = vmatprep.subr.mxu0 0.0
    %1004 = vmatpush2.msra.mxu0 0.0
    %1005 = vmatprep.subr.mxu0 0.0
    %1006 = vmatpush2.msra.mxu0 0.0
    %1007 = vmatprep.subr.mxu0 0.0
    %1008 = vmatpush2.msra.mxu0 0.0
    %1009 = vmatprep.mubr.f32.mxu0 0.0
    %1010 = vmatmul.mubr.f32.gmra.mxu0 %v943
    %v1011 = vpop.f32.mrf.mxu0
    %v1012 = vadd.f32 0.0, %v1011
    %v1013 = vpop.f32.mrf.mxu0
    %1014 = vdwg.mxu0
    %v1015 = vld [vmem:[#allocation2] sm:$0xff]
    %v1016 = vld [vmem:[#allocation6 + $0x10] sm:$0xff]
    %v1018 = vsel %vm369, %v1012, 0
    %1020 = vmatprep.subr.mxu0 0.0
    %1021 = vmatpush1.msra.mxu0 0.0
    %1022 = vmatprep.subr.mxu0 0.0
    %1023 = vmatpush1.msra.mxu0 0.0
    %1024 = vmatprep.subr.mxu0 0.0
    %1025 = vmatpush1.msra.mxu0 0.0
    %1026 = vmatprep.subr.mxu0 0.0
    %1027 = vmatpush1.msra.mxu0 0.0
    %1028 = vmatprep.subr.mxu0 0.0
    %1029 = vmatpush1.msra.mxu0 0.0
    %1030 = vmatprep.subr.mxu0 0.0
    %1031 = vmatpush1.msra.mxu0 0.0
    %1032 = vmatprep.subr.mxu0 0.0
    %1033 = vmatpush1.msra.mxu0 0.0
    %1034 = vmatprep.subr.mxu0 0.0
    %1035 = vmatpush1.msra.mxu0 0.0
    %1036 = vmatprep.subr.mxu0 0.0
    %1037 = vmatpush1.msra.mxu0 0.0
    %1038 = vmatprep.subr.mxu0 0.0
    %1039 = vmatpush1.msra.mxu0 0.0
    %1040 = vmatprep.subr.mxu0 0.0
    %1041 = vmatpush1.msra.mxu0 0.0
    %1042 = vmatprep.subr.mxu0 0.0
    %1043 = vmatpush1.msra.mxu0 0.0
    %1044 = vmatprep.subr.mxu0 0.0
    %1045 = vmatpush1.msra.mxu0 0.0
    %1046 = vmatprep.subr.mxu0 0.0
    %1047 = vmatpush1.msra.mxu0 0.0
    %1048 = vmatprep.subr.mxu0 0.0
    %1049 = vmatpush1.msra.mxu0 0.0
    %1050 = vmatprep.subr.mxu0 0.0
    %1051 = vmatpush1.msra.mxu0 %v1016
    %1052 = vmatprep.subr.mxu0 0.0
    %1053 = vmatpush2.msra.mxu0 0.0
    %1054 = vmatprep.subr.mxu0 0.0
    %1055 = vmatpush2.msra.mxu0 0.0
    %1056 = vmatprep.subr.mxu0 0.0
    %1057 = vmatpush2.msra.mxu0 0.0
    %1058 = vmatprep.subr.mxu0 0.0
    %1059 = vmatpush2.msra.mxu0 0.0
    %1060 = vmatprep.subr.mxu0 0.0
    %1061 = vmatpush2.msra.mxu0 0.0
    %1062 = vmatprep.subr.mxu0 0.0
    %1063 = vmatpush2.msra.mxu0 0.0
    %1064 = vmatprep.subr.mxu0 0.0
    %1065 = vmatpush2.msra.mxu0 0.0
    %1066 = vmatprep.subr.mxu0 0.0
    %1067 = vmatpush2.msra.mxu0 0.0
    %1068 = vmatprep.subr.mxu0 0.0
    %1069 = vmatpush2.msra.mxu0 0.0
    %1070 = vmatprep.subr.mxu0 0.0
    %1071 = vmatpush2.msra.mxu0 0.0
    %1072 = vmatprep.subr.mxu0 0.0
    %1073 = vmatpush2.msra.mxu0 0.0
    %1074 = vmatprep.subr.mxu0 0.0
    %1075 = vmatpush2.msra.mxu0 0.0
    %1076 = vmatprep.subr.mxu0 0.0
    %1077 = vmatpush2.msra.mxu0 0.0
    %1078 = vmatprep.subr.mxu0 0.0
    %1079 = vmatpush2.msra.mxu0 0.0
    %1080 = vmatprep.subr.mxu0 0.0
    %1081 = vmatpush2.msra.mxu0 0.0
    %1082 = vmatprep.subr.mxu0 0.0
    %1083 = vmatpush2.msra.mxu0 0.0
    %1084 = vmatprep.mubr.f32.mxu0 0.0
    %1085 = vmatmul.mubr.f32.gmra.mxu0 %v1018
    %v1086 = vpop.f32.mrf.mxu0
    %v1087 = vadd.f32 0.0, %v1086
    %v1088 = vpop.f32.mrf.mxu0
    %1089 = vdwg.mxu0
    %v1090 = vadd.f32 %v1015, %v1087
    %1091 = vst.msk [vmem:[#allocation2] sm:$0xff] %vm111, %v1090
    %1092 = vrot.lane.b32.xlu0 %v193, 104
    %v1093 = vpop.permute.xlu0 %1092
    %1094 = vrot.lane.b32.xlu0 %v273, 104
    %v1095 = vpop.permute.xlu0 %1094
    %v1096 = vsel %vm369, %v1093, 0
    %v1098 = vsel %vm369, %v1095, 0
    %1100 = vmatprep.subr.mxu0 0.0
    %1101 = vmatpush1.xpose.msra.mxu0 0.0
    %1102 = vmatprep.subr.mxu0 0.0
    %1103 = vmatpush1.xpose.msra.mxu0 0.0
    %1104 = vmatprep.subr.mxu0 0.0
    %1105 = vmatpush1.xpose.msra.mxu0 0.0
    %1106 = vmatprep.subr.mxu0 0.0
    %1107 = vmatpush1.xpose.msra.mxu0 0.0
    %1108 = vmatprep.subr.mxu0 0.0
    %1109 = vmatpush1.xpose.msra.mxu0 0.0
    %1110 = vmatprep.subr.mxu0 0.0
    %1111 = vmatpush1.xpose.msra.mxu0 0.0
    %1112 = vmatprep.subr.mxu0 0.0
    %1113 = vmatpush1.xpose.msra.mxu0 0.0
    %1114 = vmatprep.subr.mxu0 0.0
    %1115 = vmatpush1.xpose.msra.mxu0 0.0
    %1116 = vmatprep.subr.mxu0 0.0
    %1117 = vmatpush1.xpose.msra.mxu0 0.0
    %1118 = vmatprep.subr.mxu0 0.0
    %1119 = vmatpush1.xpose.msra.mxu0 0.0
    %1120 = vmatprep.subr.mxu0 0.0
    %1121 = vmatpush1.xpose.msra.mxu0 0.0
    %1122 = vmatprep.subr.mxu0 0.0
    %1123 = vmatpush1.xpose.msra.mxu0 0.0
    %1124 = vmatprep.subr.mxu0 0.0
    %1125 = vmatpush1.xpose.msra.mxu0 0.0
    %1126 = vmatprep.subr.mxu0 0.0
    %1127 = vmatpush1.xpose.msra.mxu0 0.0
    %1128 = vmatprep.subr.mxu0 0.0
    %1129 = vmatpush1.xpose.msra.mxu0 0.0
    %1130 = vmatprep.subr.mxu0 0.0
    %1131 = vmatpush1.xpose.msra.mxu0 %v1098
    %1132 = vmatprep.subr.mxu0 0.0
    %1133 = vmatpush2.xpose.msra.mxu0 0.0
    %1134 = vmatprep.subr.mxu0 0.0
    %1135 = vmatpush2.xpose.msra.mxu0 0.0
    %1136 = vmatprep.subr.mxu0 0.0
    %1137 = vmatpush2.xpose.msra.mxu0 0.0
    %1138 = vmatprep.subr.mxu0 0.0
    %1139 = vmatpush2.xpose.msra.mxu0 0.0
    %1140 = vmatprep.subr.mxu0 0.0
    %1141 = vmatpush2.xpose.msra.mxu0 0.0
    %1142 = vmatprep.subr.mxu0 0.0
    %1143 = vmatpush2.xpose.msra.mxu0 0.0
    %1144 = vmatprep.subr.mxu0 0.0
    %1145 = vmatpush2.xpose.msra.mxu0 0.0
    %1146 = vmatprep.subr.mxu0 0.0
    %1147 = vmatpush2.xpose.msra.mxu0 0.0
    %1148 = vmatprep.subr.mxu0 0.0
    %1149 = vmatpush2.xpose.msra.mxu0 0.0
    %1150 = vmatprep.subr.mxu0 0.0
    %1151 = vmatpush2.xpose.msra.mxu0 0.0
    %1152 = vmatprep.subr.mxu0 0.0
    %1153 = vmatpush2.xpose.msra.mxu0 0.0
    %1154 = vmatprep.subr.mxu0 0.0
    %1155 = vmatpush2.xpose.msra.mxu0 0.0
    %1156 = vmatprep.subr.mxu0 0.0
    %1157 = vmatpush2.xpose.msra.mxu0 0.0
    %1158 = vmatprep.subr.mxu0 0.0
    %1159 = vmatpush2.xpose.msra.mxu0 0.0
    %1160 = vmatprep.subr.mxu0 0.0
    %1161 = vmatpush2.xpose.msra.mxu0 0.0
    %1162 = vmatprep.subr.mxu0 0.0
    %1163 = vmatpush2.xpose.msra.mxu0 0.0
    %1164 = vmatprep.mubr.f32.mxu0 0.0
    %1165 = vmatmul.mubr.f32.gmra.mxu0 %v1096
    %v1166 = vpop.f32.mrf.mxu0
    %v1167 = vadd.f32 0.0, %v1166
    %v1168 = vpop.f32.mrf.mxu0
    %1169 = vdwg.mxu0
    %v1170 = vsel %vm369, %v1167, -inf
    %1171 = vmax.xlane.f32.xlu0 %v1170
    %v1172 = vpop.xlane.xlu0 %1171
    %v1173 = vsub.f32 %v1167, %v1172
    %v1174 = vmul.f32 %v1173, 1.442695
    %v1175 = vpow.pop %v1174
    %v1176 = vsel %vm369, %v1175, 0.0
    %1177 = vadd.xlane.f32.xlu0 %v1176
    %v1178 = vpop.xlane.xlu0 %1177
    %v1179 = vrcp.pop %v1178
    %v1180 = vmul.f32 %v1175, %v1179
    %1181 = vrot.lane.b32.xlu0 %v359, 104
    %v1182 = vpop.permute.xlu0 %1181
    %v1185 = vsel %vm369, %v1180, 0
    %1187 = vmatprep.subr.mxu0 0.0
    %1188 = vmatpush1.msra.mxu0 0.0
    %1189 = vmatprep.subr.mxu0 0.0
    %1190 = vmatpush1.msra.mxu0 0.0
    %1191 = vmatprep.subr.mxu0 0.0
    %1192 = vmatpush1.msra.mxu0 0.0
    %1193 = vmatprep.subr.mxu0 0.0
    %1194 = vmatpush1.msra.mxu0 0.0
    %1195 = vmatprep.subr.mxu0 0.0
    %1196 = vmatpush1.msra.mxu0 0.0
    %1197 = vmatprep.subr.mxu0 0.0
    %1198 = vmatpush1.msra.mxu0 0.0
    %1199 = vmatprep.subr.mxu0 0.0
    %1200 = vmatpush1.msra.mxu0 0.0
    %1201 = vmatprep.subr.mxu0 0.0
    %1202 = vmatpush1.msra.mxu0 0.0
    %1203 = vmatprep.subr.mxu0 0.0
    %1204 = vmatpush1.msra.mxu0 0.0
    %1205 = vmatprep.subr.mxu0 0.0
    %1206 = vmatpush1.msra.mxu0 0.0
    %1207 = vmatprep.subr.mxu0 0.0
    %1208 = vmatpush1.msra.mxu0 0.0
    %1209 = vmatprep.subr.mxu0 0.0
    %1210 = vmatpush1.msra.mxu0 0.0
    %1211 = vmatprep.subr.mxu0 0.0
    %1212 = vmatpush1.msra.mxu0 0.0
    %1213 = vmatprep.subr.mxu0 0.0
    %1214 = vmatpush1.msra.mxu0 0.0
    %1215 = vmatprep.subr.mxu0 0.0
    %1216 = vmatpush1.msra.mxu0 0.0
    %1217 = vmatprep.subr.mxu0 0.0
    %1218 = vmatpush1.msra.mxu0 %v1182
    %1219 = vmatprep.subr.mxu0 0.0
    %1220 = vmatpush2.msra.mxu0 0.0
    %1221 = vmatprep.subr.mxu0 0.0
    %1222 = vmatpush2.msra.mxu0 0.0
    %1223 = vmatprep.subr.mxu0 0.0
    %1224 = vmatpush2.msra.mxu0 0.0
    %1225 = vmatprep.subr.mxu0 0.0
    %1226 = vmatpush2.msra.mxu0 0.0
    %1227 = vmatprep.subr.mxu0 0.0
    %1228 = vmatpush2.msra.mxu0 0.0
    %1229 = vmatprep.subr.mxu0 0.0
    %1230 = vmatpush2.msra.mxu0 0.0
    %1231 = vmatprep.subr.mxu0 0.0
    %1232 = vmatpush2.msra.mxu0 0.0
    %1233 = vmatprep.subr.mxu0 0.0
    %1234 = vmatpush2.msra.mxu0 0.0
    %1235 = vmatprep.subr.mxu0 0.0
    %1236 = vmatpush2.msra.mxu0 0.0
    %1237 = vmatprep.subr.mxu0 0.0
    %1238 = vmatpush2.msra.mxu0 0.0
    %1239 = vmatprep.subr.mxu0 0.0
    %1240 = vmatpush2.msra.mxu0 0.0
    %1241 = vmatprep.subr.mxu0 0.0
    %1242 = vmatpush2.msra.mxu0 0.0
    %1243 = vmatprep.subr.mxu0 0.0
    %1244 = vmatpush2.msra.mxu0 0.0
    %1245 = vmatprep.subr.mxu0 0.0
    %1246 = vmatpush2.msra.mxu0 0.0
    %1247 = vmatprep.subr.mxu0 0.0
    %1248 = vmatpush2.msra.mxu0 0.0
    %1249 = vmatprep.subr.mxu0 0.0
    %1250 = vmatpush2.msra.mxu0 0.0
    %1251 = vmatprep.mubr.f32.mxu0 0.0
    %1252 = vmatmul.mubr.f32.gmra.mxu0 %v1185
    %v1253 = vpop.f32.mrf.mxu0
    %v1254 = vadd.f32 0.0, %v1253
    %v1255 = vpop.f32.mrf.mxu0
    %1256 = vdwg.mxu0
    %v1257 = vld [vmem:[#allocation2] sm:$0xff]
    %v1258 = vld [vmem:[#allocation6 + $0x18] sm:$0xff]
    %v1260 = vsel %vm369, %v1254, 0
    %1262 = vmatprep.subr.mxu0 0.0
    %1263 = vmatpush1.msra.mxu0 0.0
    %1264 = vmatprep.subr.mxu0 0.0
    %1265 = vmatpush1.msra.mxu0 0.0
    %1266 = vmatprep.subr.mxu0 0.0
    %1267 = vmatpush1.msra.mxu0 0.0
    %1268 = vmatprep.subr.mxu0 0.0
    %1269 = vmatpush1.msra.mxu0 0.0
    %1270 = vmatprep.subr.mxu0 0.0
    %1271 = vmatpush1.msra.mxu0 0.0
    %1272 = vmatprep.subr.mxu0 0.0
    %1273 = vmatpush1.msra.mxu0 0.0
    %1274 = vmatprep.subr.mxu0 0.0
    %1275 = vmatpush1.msra.mxu0 0.0
    %1276 = vmatprep.subr.mxu0 0.0
    %1277 = vmatpush1.msra.mxu0 0.0
    %1278 = vmatprep.subr.mxu0 0.0
    %1279 = vmatpush1.msra.mxu0 0.0
    %1280 = vmatprep.subr.mxu0 0.0
    %1281 = vmatpush1.msra.mxu0 0.0
    %1282 = vmatprep.subr.mxu0 0.0
    %1283 = vmatpush1.msra.mxu0 0.0
    %1284 = vmatprep.subr.mxu0 0.0
    %1285 = vmatpush1.msra.mxu0 0.0
    %1286 = vmatprep.subr.mxu0 0.0
    %1287 = vmatpush1.msra.mxu0 0.0
    %1288 = vmatprep.subr.mxu0 0.0
    %1289 = vmatpush1.msra.mxu0 0.0
    %1290 = vmatprep.subr.mxu0 0.0
    %1291 = vmatpush1.msra.mxu0 0.0
    %1292 = vmatprep.subr.mxu0 0.0
    %1293 = vmatpush1.msra.mxu0 %v1258
    %1294 = vmatprep.subr.mxu0 0.0
    %1295 = vmatpush2.msra.mxu0 0.0
    %1296 = vmatprep.subr.mxu0 0.0
    %1297 = vmatpush2.msra.mxu0 0.0
    %1298 = vmatprep.subr.mxu0 0.0
    %1299 = vmatpush2.msra.mxu0 0.0
    %1300 = vmatprep.subr.mxu0 0.0
    %1301 = vmatpush2.msra.mxu0 0.0
    %1302 = vmatprep.subr.mxu0 0.0
    %1303 = vmatpush2.msra.mxu0 0.0
    %1304 = vmatprep.subr.mxu0 0.0
    %1305 = vmatpush2.msra.mxu0 0.0
    %1306 = vmatprep.subr.mxu0 0.0
    %1307 = vmatpush2.msra.mxu0 0.0
    %1308 = vmatprep.subr.mxu0 0.0
    %1309 = vmatpush2.msra.mxu0 0.0
    %1310 = vmatprep.subr.mxu0 0.0
    %1311 = vmatpush2.msra.mxu0 0.0
    %1312 = vmatprep.subr.mxu0 0.0
    %1313 = vmatpush2.msra.mxu0 0.0
    %1314 = vmatprep.subr.mxu0 0.0
    %1315 = vmatpush2.msra.mxu0 0.0
    %1316 = vmatprep.subr.mxu0 0.0
    %1317 = vmatpush2.msra.mxu0 0.0
    %1318 = vmatprep.subr.mxu0 0.0
    %1319 = vmatpush2.msra.mxu0 0.0
    %1320 = vmatprep.subr.mxu0 0.0
    %1321 = vmatpush2.msra.mxu0 0.0
    %1322 = vmatprep.subr.mxu0 0.0
    %1323 = vmatpush2.msra.mxu0 0.0
    %1324 = vmatprep.subr.mxu0 0.0
    %1325 = vmatpush2.msra.mxu0 0.0
    %1326 = vmatprep.mubr.f32.mxu0 0.0
    %1327 = vmatmul.mubr.f32.gmra.mxu0 %v1260
    %v1328 = vpop.f32.mrf.mxu0
    %v1329 = vadd.f32 0.0, %v1328
    %v1330 = vpop.f32.mrf.mxu0
    %1331 = vdwg.mxu0
    %v1332 = vadd.f32 %v1257, %v1329
    %1333 = vst.msk [vmem:[#allocation2] sm:$0xff] %vm111, %v1332
    %v1335 = vsel %vm369, %v194, 0
    %v1338 = vsel %vm369, %v278, 0
    %1340 = vmatprep.subr.mxu0 0.0
    %1341 = vmatpush1.xpose.msra.mxu0 0.0
    %1342 = vmatprep.subr.mxu0 0.0
    %1343 = vmatpush1.xpose.msra.mxu0 0.0
    %1344 = vmatprep.subr.mxu0 0.0
    %1345 = vmatpush1.xpose.msra.mxu0 0.0
    %1346 = vmatprep.subr.mxu0 0.0
    %1347 = vmatpush1.xpose.msra.mxu0 0.0
    %1348 = vmatprep.subr.mxu0 0.0
    %1349 = vmatpush1.xpose.msra.mxu0 0.0
    %1350 = vmatprep.subr.mxu0 0.0
    %1351 = vmatpush1.xpose.msra.mxu0 0.0
    %1352 = vmatprep.subr.mxu0 0.0
    %1353 = vmatpush1.xpose.msra.mxu0 0.0
    %1354 = vmatprep.subr.mxu0 0.0
    %1355 = vmatpush1.xpose.msra.mxu0 0.0
    %1356 = vmatprep.subr.mxu0 0.0
    %1357 = vmatpush1.xpose.msra.mxu0 0.0
    %1358 = vmatprep.subr.mxu0 0.0
    %1359 = vmatpush1.xpose.msra.mxu0 0.0
    %1360 = vmatprep.subr.mxu0 0.0
    %1361 = vmatpush1.xpose.msra.mxu0 0.0
    %1362 = vmatprep.subr.mxu0 0.0
    %1363 = vmatpush1.xpose.msra.mxu0 0.0
    %1364 = vmatprep.subr.mxu0 0.0
    %1365 = vmatpush1.xpose.msra.mxu0 0.0
    %1366 = vmatprep.subr.mxu0 0.0
    %1367 = vmatpush1.xpose.msra.mxu0 0.0
    %1368 = vmatprep.subr.mxu0 0.0
    %1369 = vmatpush1.xpose.msra.mxu0 0.0
    %1370 = vmatprep.subr.mxu0 0.0
    %1371 = vmatpush1.xpose.msra.mxu0 %v1338
    %1372 = vmatprep.subr.mxu0 0.0
    %1373 = vmatpush2.xpose.msra.mxu0 0.0
    %1374 = vmatprep.subr.mxu0 0.0
    %1375 = vmatpush2.xpose.msra.mxu0 0.0
    %1376 = vmatprep.subr.mxu0 0.0
    %1377 = vmatpush2.xpose.msra.mxu0 0.0
    %1378 = vmatprep.subr.mxu0 0.0
    %1379 = vmatpush2.xpose.msra.mxu0 0.0
    %1380 = vmatprep.subr.mxu0 0.0
    %1381 = vmatpush2.xpose.msra.mxu0 0.0
    %1382 = vmatprep.subr.mxu0 0.0
    %1383 = vmatpush2.xpose.msra.mxu0 0.0
    %1384 = vmatprep.subr.mxu0 0.0
    %1385 = vmatpush2.xpose.msra.mxu0 0.0
    %1386 = vmatprep.subr.mxu0 0.0
    %1387 = vmatpush2.xpose.msra.mxu0 0.0
    %1388 = vmatprep.subr.mxu0 0.0
    %1389 = vmatpush2.xpose.msra.mxu0 0.0
    %1390 = vmatprep.subr.mxu0 0.0
    %1391 = vmatpush2.xpose.msra.mxu0 0.0
    %1392 = vmatprep.subr.mxu0 0.0
    %1393 = vmatpush2.xpose.msra.mxu0 0.0
    %1394 = vmatprep.subr.mxu0 0.0
    %1395 = vmatpush2.xpose.msra.mxu0 0.0
    %1396 = vmatprep.subr.mxu0 0.0
    %1397 = vmatpush2.xpose.msra.mxu0 0.0
    %1398 = vmatprep.subr.mxu0 0.0
    %1399 = vmatpush2.xpose.msra.mxu0 0.0
    %1400 = vmatprep.subr.mxu0 0.0
    %1401 = vmatpush2.xpose.msra.mxu0 0.0
    %1402 = vmatprep.subr.mxu0 0.0
    %1403 = vmatpush2.xpose.msra.mxu0 0.0
    %1404 = vmatprep.mubr.f32.mxu0 0.0
    %1405 = vmatmul.mubr.f32.gmra.mxu0 %v1335
    %v1406 = vpop.f32.mrf.mxu0
    %v1407 = vadd.f32 0.0, %v1406
    %v1408 = vpop.f32.mrf.mxu0
    %1409 = vdwg.mxu0
    %v1410 = vsel %vm369, %v1407, -inf
    %1411 = vmax.xlane.f32.xlu0 %v1410
    %v1412 = vpop.xlane.xlu0 %1411
    %v1413 = vsub.f32 %v1407, %v1412
    %v1414 = vmul.f32 %v1413, 1.442695
    %v1415 = vpow.pop %v1414
    %v1416 = vsel %vm369, %v1415, 0.0
    %1417 = vadd.xlane.f32.xlu0 %v1416
    %v1418 = vpop.xlane.xlu0 %1417
    %v1419 = vrcp.pop %v1418
    %v1420 = vmul.f32 %v1415, %v1419
    %v1422 = vsel %vm369, %v1420, 0
    %1424 = vmatprep.subr.mxu0 0.0
    %1425 = vmatpush1.msra.mxu0 0.0
    %1426 = vmatprep.subr.mxu0 0.0
    %1427 = vmatpush1.msra.mxu0 0.0
    %1428 = vmatprep.subr.mxu0 0.0
    %1429 = vmatpush1.msra.mxu0 0.0
    %1430 = vmatprep.subr.mxu0 0.0
    %1431 = vmatpush1.msra.mxu0 0.0
    %1432 = vmatprep.subr.mxu0 0.0
    %1433 = vmatpush1.msra.mxu0 0.0
    %1434 = vmatprep.subr.mxu0 0.0
    %1435 = vmatpush1.msra.mxu0 0.0
    %1436 = vmatprep.subr.mxu0 0.0
    %1437 = vmatpush1.msra.mxu0 0.0
    %1438 = vmatprep.subr.mxu0 0.0
    %1439 = vmatpush1.msra.mxu0 0.0
    %1440 = vmatprep.subr.mxu0 0.0
    %1441 = vmatpush1.msra.mxu0 0.0
    %1442 = vmatprep.subr.mxu0 0.0
    %1443 = vmatpush1.msra.mxu0 0.0
    %1444 = vmatprep.subr.mxu0 0.0
    %1445 = vmatpush1.msra.mxu0 0.0
    %1446 = vmatprep.subr.mxu0 0.0
    %1447 = vmatpush1.msra.mxu0 0.0
    %1448 = vmatprep.subr.mxu0 0.0
    %1449 = vmatpush1.msra.mxu0 0.0
    %1450 = vmatprep.subr.mxu0 0.0
    %1451 = vmatpush1.msra.mxu0 0.0
    %1452 = vmatprep.subr.mxu0 0.0
    %1453 = vmatpush1.msra.mxu0 0.0
    %1454 = vmatprep.subr.mxu0 0.0
    %1455 = vmatpush1.msra.mxu0 %v364
    %1456 = vmatprep.subr.mxu0 0.0
    %1457 = vmatpush2.msra.mxu0 0.0
    %1458 = vmatprep.subr.mxu0 0.0
    %1459 = vmatpush2.msra.mxu0 0.0
    %1460 = vmatprep.subr.mxu0 0.0
    %1461 = vmatpush2.msra.mxu0 0.0
    %1462 = vmatprep.subr.mxu0 0.0
    %1463 = vmatpush2.msra.mxu0 0.0
    %1464 = vmatprep.subr.mxu0 0.0
    %1465 = vmatpush2.msra.mxu0 0.0
    %1466 = vmatprep.subr.mxu0 0.0
    %1467 = vmatpush2.msra.mxu0 0.0
    %1468 = vmatprep.subr.mxu0 0.0
    %1469 = vmatpush2.msra.mxu0 0.0
    %1470 = vmatprep.subr.mxu0 0.0
    %1471 = vmatpush2.msra.mxu0 0.0
    %1472 = vmatprep.subr.mxu0 0.0
    %1473 = vmatpush2.msra.mxu0 0.0
    %1474 = vmatprep.subr.mxu0 0.0
    %1475 = vmatpush2.msra.mxu0 0.0
    %1476 = vmatprep.subr.mxu0 0.0
    %1477 = vmatpush2.msra.mxu0 0.0
    %1478 = vmatprep.subr.mxu0 0.0
    %1479 = vmatpush2.msra.mxu0 0.0
    %1480 = vmatprep.subr.mxu0 0.0
    %1481 = vmatpush2.msra.mxu0 0.0
    %1482 = vmatprep.subr.mxu0 0.0
    %1483 = vmatpush2.msra.mxu0 0.0
    %1484 = vmatprep.subr.mxu0 0.0
    %1485 = vmatpush2.msra.mxu0 0.0
    %1486 = vmatprep.subr.mxu0 0.0
    %1487 = vmatpush2.msra.mxu0 0.0
    %1488 = vmatprep.mubr.f32.mxu0 0.0
    %1489 = vmatmul.mubr.f32.gmra.mxu0 %v1422
    %v1490 = vpop.f32.mrf.mxu0
    %v1491 = vadd.f32 0.0, %v1490
    %v1492 = vpop.f32.mrf.mxu0
    %1493 = vdwg.mxu0
    %v1494 = vld [vmem:[#allocation2 + $0x8] sm:$0xff]
    %v1495 = vld [vmem:[#allocation6] sm:$0xff]
    %v1497 = vsel %vm369, %v1491, 0
    %1499 = vmatprep.subr.mxu0 0.0
    %1500 = vmatpush1.msra.mxu0 0.0
    %1501 = vmatprep.subr.mxu0 0.0
    %1502 = vmatpush1.msra.mxu0 0.0
    %1503 = vmatprep.subr.mxu0 0.0
    %1504 = vmatpush1.msra.mxu0 0.0
    %1505 = vmatprep.subr.mxu0 0.0
    %1506 = vmatpush1.msra.mxu0 0.0
    %1507 = vmatprep.subr.mxu0 0.0
    %1508 = vmatpush1.msra.mxu0 0.0
    %1509 = vmatprep.subr.mxu0 0.0
    %1510 = vmatpush1.msra.mxu0 0.0
    %1511 = vmatprep.subr.mxu0 0.0
    %1512 = vmatpush1.msra.mxu0 0.0
    %1513 = vmatprep.subr.mxu0 0.0
    %1514 = vmatpush1.msra.mxu0 0.0
    %1515 = vmatprep.subr.mxu0 0.0
    %1516 = vmatpush1.msra.mxu0 0.0
    %1517 = vmatprep.subr.mxu0 0.0
    %1518 = vmatpush1.msra.mxu0 0.0
    %1519 = vmatprep.subr.mxu0 0.0
    %1520 = vmatpush1.msra.mxu0 0.0
    %1521 = vmatprep.subr.mxu0 0.0
    %1522 = vmatpush1.msra.mxu0 0.0
    %1523 = vmatprep.subr.mxu0 0.0
    %1524 = vmatpush1.msra.mxu0 0.0
    %1525 = vmatprep.subr.mxu0 0.0
    %1526 = vmatpush1.msra.mxu0 0.0
    %1527 = vmatprep.subr.mxu0 0.0
    %1528 = vmatpush1.msra.mxu0 0.0
    %1529 = vmatprep.subr.mxu0 0.0
    %1530 = vmatpush1.msra.mxu0 %v1495
    %1531 = vmatprep.subr.mxu0 0.0
    %1532 = vmatpush2.msra.mxu0 0.0
    %1533 = vmatprep.subr.mxu0 0.0
    %1534 = vmatpush2.msra.mxu0 0.0
    %1535 = vmatprep.subr.mxu0 0.0
    %1536 = vmatpush2.msra.mxu0 0.0
    %1537 = vmatprep.subr.mxu0 0.0
    %1538 = vmatpush2.msra.mxu0 0.0
    %1539 = vmatprep.subr.mxu0 0.0
    %1540 = vmatpush2.msra.mxu0 0.0
    %1541 = vmatprep.subr.mxu0 0.0
    %1542 = vmatpush2.msra.mxu0 0.0
    %1543 = vmatprep.subr.mxu0 0.0
    %1544 = vmatpush2.msra.mxu0 0.0
    %1545 = vmatprep.subr.mxu0 0.0
    %1546 = vmatpush2.msra.mxu0 0.0
    %1547 = vmatprep.subr.mxu0 0.0
    %1548 = vmatpush2.msra.mxu0 0.0
    %1549 = vmatprep.subr.mxu0 0.0
    %1550 = vmatpush2.msra.mxu0 0.0
    %1551 = vmatprep.subr.mxu0 0.0
    %1552 = vmatpush2.msra.mxu0 0.0
    %1553 = vmatprep.subr.mxu0 0.0
    %1554 = vmatpush2.msra.mxu0 0.0
    %1555 = vmatprep.subr.mxu0 0.0
    %1556 = vmatpush2.msra.mxu0 0.0
    %1557 = vmatprep.subr.mxu0 0.0
    %1558 = vmatpush2.msra.mxu0 0.0
    %1559 = vmatprep.subr.mxu0 0.0
    %1560 = vmatpush2.msra.mxu0 0.0
    %1561 = vmatprep.subr.mxu0 0.0
    %1562 = vmatpush2.msra.mxu0 0.0
    %1563 = vmatprep.mubr.f32.mxu0 0.0
    %1564 = vmatmul.mubr.f32.gmra.mxu0 %v1497
    %v1565 = vpop.f32.mrf.mxu0
    %v1566 = vadd.f32 0.0, %v1565
    %v1567 = vpop.f32.mrf.mxu0
    %1568 = vdwg.mxu0
    %v1569 = vadd.f32 %v1494, %v1566
    %1570 = vst.msk [vmem:[#allocation2 + $0x8] sm:$0xff] %vm111, %v1569
    %1571 = vrot.lane.b32.xlu0 %v194, 120
    %v1572 = vpop.permute.xlu0 %1571
    %1573 = vrot.lane.b32.xlu0 %v278, 120
    %v1574 = vpop.permute.xlu0 %1573
    %v1575 = vsel %vm369, %v1572, 0
    %v1577 = vsel %vm369, %v1574, 0
    %1579 = vmatprep.subr.mxu0 0.0
    %1580 = vmatpush1.xpose.msra.mxu0 0.0
    %1581 = vmatprep.subr.mxu0 0.0
    %1582 = vmatpush1.xpose.msra.mxu0 0.0
    %1583 = vmatprep.subr.mxu0 0.0
    %1584 = vmatpush1.xpose.msra.mxu0 0.0
    %1585 = vmatprep.subr.mxu0 0.0
    %1586 = vmatpush1.xpose.msra.mxu0 0.0
    %1587 = vmatprep.subr.mxu0 0.0
    %1588 = vmatpush1.xpose.msra.mxu0 0.0
    %1589 = vmatprep.subr.mxu0 0.0
    %1590 = vmatpush1.xpose.msra.mxu0 0.0
    %1591 = vmatprep.subr.mxu0 0.0
    %1592 = vmatpush1.xpose.msra.mxu0 0.0
    %1593 = vmatprep.subr.mxu0 0.0
    %1594 = vmatpush1.xpose.msra.mxu0 0.0
    %1595 = vmatprep.subr.mxu0 0.0
    %1596 = vmatpush1.xpose.msra.mxu0 0.0
    %1597 = vmatprep.subr.mxu0 0.0
    %1598 = vmatpush1.xpose.msra.mxu0 0.0
    %1599 = vmatprep.subr.mxu0 0.0
    %1600 = vmatpush1.xpose.msra.mxu0 0.0
    %1601 = vmatprep.subr.mxu0 0.0
    %1602 = vmatpush1.xpose.msra.mxu0 0.0
    %1603 = vmatprep.subr.mxu0 0.0
    %1604 = vmatpush1.xpose.msra.mxu0 0.0
    %1605 = vmatprep.subr.mxu0 0.0
    %1606 = vmatpush1.xpose.msra.mxu0 0.0
    %1607 = vmatprep.subr.mxu0 0.0
    %1608 = vmatpush1.xpose.msra.mxu0 0.0
    %1609 = vmatprep.subr.mxu0 0.0
    %1610 = vmatpush1.xpose.msra.mxu0 %v1577
    %1611 = vmatprep.subr.mxu0 0.0
    %1612 = vmatpush2.xpose.msra.mxu0 0.0
    %1613 = vmatprep.subr.mxu0 0.0
    %1614 = vmatpush2.xpose.msra.mxu0 0.0
    %1615 = vmatprep.subr.mxu0 0.0
    %1616 = vmatpush2.xpose.msra.mxu0 0.0
    %1617 = vmatprep.subr.mxu0 0.0
    %1618 = vmatpush2.xpose.msra.mxu0 0.0
    %1619 = vmatprep.subr.mxu0 0.0
    %1620 = vmatpush2.xpose.msra.mxu0 0.0
    %1621 = vmatprep.subr.mxu0 0.0
    %1622 = vmatpush2.xpose.msra.mxu0 0.0
    %1623 = vmatprep.subr.mxu0 0.0
    %1624 = vmatpush2.xpose.msra.mxu0 0.0
    %1625 = vmatprep.subr.mxu0 0.0
    %1626 = vmatpush2.xpose.msra.mxu0 0.0
    %1627 = vmatprep.subr.mxu0 0.0
    %1628 = vmatpush2.xpose.msra.mxu0 0.0
    %1629 = vmatprep.subr.mxu0 0.0
    %1630 = vmatpush2.xpose.msra.mxu0 0.0
    %1631 = vmatprep.subr.mxu0 0.0
    %1632 = vmatpush2.xpose.msra.mxu0 0.0
    %1633 = vmatprep.subr.mxu0 0.0
    %1634 = vmatpush2.xpose.msra.mxu0 0.0
    %1635 = vmatprep.subr.mxu0 0.0
    %1636 = vmatpush2.xpose.msra.mxu0 0.0
    %1637 = vmatprep.subr.mxu0 0.0
    %1638 = vmatpush2.xpose.msra.mxu0 0.0
    %1639 = vmatprep.subr.mxu0 0.0
    %1640 = vmatpush2.xpose.msra.mxu0 0.0
    %1641 = vmatprep.subr.mxu0 0.0
    %1642 = vmatpush2.xpose.msra.mxu0 0.0
    %1643 = vmatprep.mubr.f32.mxu0 0.0
    %1644 = vmatmul.mubr.f32.gmra.mxu0 %v1575
    %v1645 = vpop.f32.mrf.mxu0
    %v1646 = vadd.f32 0.0, %v1645
    %v1647 = vpop.f32.mrf.mxu0
    %1648 = vdwg.mxu0
    %v1649 = vsel %vm369, %v1646, -inf
    %1650 = vmax.xlane.f32.xlu0 %v1649
    %v1651 = vpop.xlane.xlu0 %1650
    %v1652 = vsub.f32 %v1646, %v1651
    %v1653 = vmul.f32 %v1652, 1.442695
    %v1654 = vpow.pop %v1653
    %v1655 = vsel %vm369, %v1654, 0.0
    %1656 = vadd.xlane.f32.xlu0 %v1655
    %v1657 = vpop.xlane.xlu0 %1656
    %v1658 = vrcp.pop %v1657
    %v1659 = vmul.f32 %v1654, %v1658
    %1661 = vrot.lane.b32.xlu0 %v364, 120
    %v1662 = vpop.permute.xlu0 %1661
    %v1665 = vsel %vm369, %v1659, 0
    %1667 = vmatprep.subr.mxu0 0.0
    %1668 = vmatpush1.msra.mxu0 0.0
    %1669 = vmatprep.subr.mxu0 0.0
    %1670 = vmatpush1.msra.mxu0 0.0
    %1671 = vmatprep.subr.mxu0 0.0
    %1672 = vmatpush1.msra.mxu0 0.0
    %1673 = vmatprep.subr.mxu0 0.0
    %1674 = vmatpush1.msra.mxu0 0.0
    %1675 = vmatprep.subr.mxu0 0.0
    %1676 = vmatpush1.msra.mxu0 0.0
    %1677 = vmatprep.subr.mxu0 0.0
    %1678 = vmatpush1.msra.mxu0 0.0
    %1679 = vmatprep.subr.mxu0 0.0
    %1680 = vmatpush1.msra.mxu0 0.0
    %1681 = vmatprep.subr.mxu0 0.0
    %1682 = vmatpush1.msra.mxu0 0.0
    %1683 = vmatprep.subr.mxu0 0.0
    %1684 = vmatpush1.msra.mxu0 0.0
    %1685 = vmatprep.subr.mxu0 0.0
    %1686 = vmatpush1.msra.mxu0 0.0
    %1687 = vmatprep.subr.mxu0 0.0
    %1688 = vmatpush1.msra.mxu0 0.0
    %1689 = vmatprep.subr.mxu0 0.0
    %1690 = vmatpush1.msra.mxu0 0.0
    %1691 = vmatprep.subr.mxu0 0.0
    %1692 = vmatpush1.msra.mxu0 0.0
    %1693 = vmatprep.subr.mxu0 0.0
    %1694 = vmatpush1.msra.mxu0 0.0
    %1695 = vmatprep.subr.mxu0 0.0
    %1696 = vmatpush1.msra.mxu0 0.0
    %1697 = vmatprep.subr.mxu0 0.0
    %1698 = vmatpush1.msra.mxu0 %v1662
    %1699 = vmatprep.subr.mxu0 0.0
    %1700 = vmatpush2.msra.mxu0 0.0
    %1701 = vmatprep.subr.mxu0 0.0
    %1702 = vmatpush2.msra.mxu0 0.0
    %1703 = vmatprep.subr.mxu0 0.0
    %1704 = vmatpush2.msra.mxu0 0.0
    %1705 = vmatprep.subr.mxu0 0.0
    %1706 = vmatpush2.msra.mxu0 0.0
    %1707 = vmatprep.subr.mxu0 0.0
    %1708 = vmatpush2.msra.mxu0 0.0
    %1709 = vmatprep.subr.mxu0 0.0
    %1710 = vmatpush2.msra.mxu0 0.0
    %1711 = vmatprep.subr.mxu0 0.0
    %1712 = vmatpush2.msra.mxu0 0.0
    %1713 = vmatprep.subr.mxu0 0.0
    %1714 = vmatpush2.msra.mxu0 0.0
    %1715 = vmatprep.subr.mxu0 0.0
    %1716 = vmatpush2.msra.mxu0 0.0
    %1717 = vmatprep.subr.mxu0 0.0
    %1718 = vmatpush2.msra.mxu0 0.0
    %1719 = vmatprep.subr.mxu0 0.0
    %1720 = vmatpush2.msra.mxu0 0.0
    %1721 = vmatprep.subr.mxu0 0.0
    %1722 = vmatpush2.msra.mxu0 0.0
    %1723 = vmatprep.subr.mxu0 0.0
    %1724 = vmatpush2.msra.mxu0 0.0
    %1725 = vmatprep.subr.mxu0 0.0
    %1726 = vmatpush2.msra.mxu0 0.0
    %1727 = vmatprep.subr.mxu0 0.0
    %1728 = vmatpush2.msra.mxu0 0.0
    %1729 = vmatprep.subr.mxu0 0.0
    %1730 = vmatpush2.msra.mxu0 0.0
    %1731 = vmatprep.mubr.f32.mxu0 0.0
    %1732 = vmatmul.mubr.f32.gmra.mxu0 %v1665
    %v1733 = vpop.f32.mrf.mxu0
    %v1734 = vadd.f32 0.0, %v1733
    %v1735 = vpop.f32.mrf.mxu0
    %1736 = vdwg.mxu0
    %v1737 = vld [vmem:[#allocation2 + $0x8] sm:$0xff]
    %v1738 = vld [vmem:[#allocation6 + $0x8] sm:$0xff]
    %v1740 = vsel %vm369, %v1734, 0
    %1742 = vmatprep.subr.mxu0 0.0
    %1743 = vmatpush1.msra.mxu0 0.0
    %1744 = vmatprep.subr.mxu0 0.0
    %1745 = vmatpush1.msra.mxu0 0.0
    %1746 = vmatprep.subr.mxu0 0.0
    %1747 = vmatpush1.msra.mxu0 0.0
    %1748 = vmatprep.subr.mxu0 0.0
    %1749 = vmatpush1.msra.mxu0 0.0
    %1750 = vmatprep.subr.mxu0 0.0
    %1751 = vmatpush1.msra.mxu0 0.0
    %1752 = vmatprep.subr.mxu0 0.0
    %1753 = vmatpush1.msra.mxu0 0.0
    %1754 = vmatprep.subr.mxu0 0.0
    %1755 = vmatpush1.msra.mxu0 0.0
    %1756 = vmatprep.subr.mxu0 0.0
    %1757 = vmatpush1.msra.mxu0 0.0
    %1758 = vmatprep.subr.mxu0 0.0
    %1759 = vmatpush1.msra.mxu0 0.0
    %1760 = vmatprep.subr.mxu0 0.0
    %1761 = vmatpush1.msra.mxu0 0.0
    %1762 = vmatprep.subr.mxu0 0.0
    %1763 = vmatpush1.msra.mxu0 0.0
    %1764 = vmatprep.subr.mxu0 0.0
    %1765 = vmatpush1.msra.mxu0 0.0
    %1766 = vmatprep.subr.mxu0 0.0
    %1767 = vmatpush1.msra.mxu0 0.0
    %1768 = vmatprep.subr.mxu0 0.0
    %1769 = vmatpush1.msra.mxu0 0.0
    %1770 = vmatprep.subr.mxu0 0.0
    %1771 = vmatpush1.msra.mxu0 0.0
    %1772 = vmatprep.subr.mxu0 0.0
    %1773 = vmatpush1.msra.mxu0 %v1738
    %1774 = vmatprep.subr.mxu0 0.0
    %1775 = vmatpush2.msra.mxu0 0.0
    %1776 = vmatprep.subr.mxu0 0.0
    %1777 = vmatpush2.msra.mxu0 0.0
    %1778 = vmatprep.subr.mxu0 0.0
    %1779 = vmatpush2.msra.mxu0 0.0
    %1780 = vmatprep.subr.mxu0 0.0
    %1781 = vmatpush2.msra.mxu0 0.0
    %1782 = vmatprep.subr.mxu0 0.0
    %1783 = vmatpush2.msra.mxu0 0.0
    %1784 = vmatprep.subr.mxu0 0.0
    %1785 = vmatpush2.msra.mxu0 0.0
    %1786 = vmatprep.subr.mxu0 0.0
    %1787 = vmatpush2.msra.mxu0 0.0
    %1788 = vmatprep.subr.mxu0 0.0
    %1789 = vmatpush2.msra.mxu0 0.0
    %1790 = vmatprep.subr.mxu0 0.0
    %1791 = vmatpush2.msra.mxu0 0.0
    %1792 = vmatprep.subr.mxu0 0.0
    %1793 = vmatpush2.msra.mxu0 0.0
    %1794 = vmatprep.subr.mxu0 0.0
    %1795 = vmatpush2.msra.mxu0 0.0
    %1796 = vmatprep.subr.mxu0 0.0
    %1797 = vmatpush2.msra.mxu0 0.0
    %1798 = vmatprep.subr.mxu0 0.0
    %1799 = vmatpush2.msra.mxu0 0.0
    %1800 = vmatprep.subr.mxu0 0.0
    %1801 = vmatpush2.msra.mxu0 0.0
    %1802 = vmatprep.subr.mxu0 0.0
    %1803 = vmatpush2.msra.mxu0 0.0
    %1804 = vmatprep.subr.mxu0 0.0
    %1805 = vmatpush2.msra.mxu0 0.0
    %1806 = vmatprep.mubr.f32.mxu0 0.0
    %1807 = vmatmul.mubr.f32.gmra.mxu0 %v1740
    %v1808 = vpop.f32.mrf.mxu0
    %v1809 = vadd.f32 0.0, %v1808
    %v1810 = vpop.f32.mrf.mxu0
    %1811 = vdwg.mxu0
    %v1812 = vadd.f32 %v1737, %v1809
    %1813 = vst.msk [vmem:[#allocation2 + $0x8] sm:$0xff] %vm111, %v1812
    %1814 = vrot.lane.b32.xlu0 %v194, 112
    %v1815 = vpop.permute.xlu0 %1814
    %1816 = vrot.lane.b32.xlu0 %v278, 112
    %v1817 = vpop.permute.xlu0 %1816
    %v1818 = vsel %vm369, %v1815, 0
    %v1820 = vsel %vm369, %v1817, 0
    %1822 = vmatprep.subr.mxu0 0.0
    %1823 = vmatpush1.xpose.msra.mxu0 0.0
    %1824 = vmatprep.subr.mxu0 0.0
    %1825 = vmatpush1.xpose.msra.mxu0 0.0
    %1826 = vmatprep.subr.mxu0 0.0
    %1827 = vmatpush1.xpose.msra.mxu0 0.0
    %1828 = vmatprep.subr.mxu0 0.0
    %1829 = vmatpush1.xpose.msra.mxu0 0.0
    %1830 = vmatprep.subr.mxu0 0.0
    %1831 = vmatpush1.xpose.msra.mxu0 0.0
    %1832 = vmatprep.subr.mxu0 0.0
    %1833 = vmatpush1.xpose.msra.mxu0 0.0
    %1834 = vmatprep.subr.mxu0 0.0
    %1835 = vmatpush1.xpose.msra.mxu0 0.0
    %1836 = vmatprep.subr.mxu0 0.0
    %1837 = vmatpush1.xpose.msra.mxu0 0.0
    %1838 = vmatprep.subr.mxu0 0.0
    %1839 = vmatpush1.xpose.msra.mxu0 0.0
    %1840 = vmatprep.subr.mxu0 0.0
    %1841 = vmatpush1.xpose.msra.mxu0 0.0
    %1842 = vmatprep.subr.mxu0 0.0
    %1843 = vmatpush1.xpose.msra.mxu0 0.0
    %1844 = vmatprep.subr.mxu0 0.0
    %1845 = vmatpush1.xpose.msra.mxu0 0.0
    %1846 = vmatprep.subr.mxu0 0.0
    %1847 = vmatpush1.xpose.msra.mxu0 0.0
    %1848 = vmatprep.subr.mxu0 0.0
    %1849 = vmatpush1.xpose.msra.mxu0 0.0
    %1850 = vmatprep.subr.mxu0 0.0
    %1851 = vmatpush1.xpose.msra.mxu0 0.0
    %1852 = vmatprep.subr.mxu0 0.0
    %1853 = vmatpush1.xpose.msra.mxu0 %v1820
    %1854 = vmatprep.subr.mxu0 0.0
    %1855 = vmatpush2.xpose.msra.mxu0 0.0
    %1856 = vmatprep.subr.mxu0 0.0
    %1857 = vmatpush2.xpose.msra.mxu0 0.0
    %1858 = vmatprep.subr.mxu0 0.0
    %1859 = vmatpush2.xpose.msra.mxu0 0.0
    %1860 = vmatprep.subr.mxu0 0.0
    %1861 = vmatpush2.xpose.msra.mxu0 0.0
    %1862 = vmatprep.subr.mxu0 0.0
    %1863 = vmatpush2.xpose.msra.mxu0 0.0
    %1864 = vmatprep.subr.mxu0 0.0
    %1865 = vmatpush2.xpose.msra.mxu0 0.0
    %1866 = vmatprep.subr.mxu0 0.0
    %1867 = vmatpush2.xpose.msra.mxu0 0.0
    %1868 = vmatprep.subr.mxu0 0.0
    %1869 = vmatpush2.xpose.msra.mxu0 0.0
    %1870 = vmatprep.subr.mxu0 0.0
    %1871 = vmatpush2.xpose.msra.mxu0 0.0
    %1872 = vmatprep.subr.mxu0 0.0
    %1873 = vmatpush2.xpose.msra.mxu0 0.0
    %1874 = vmatprep.subr.mxu0 0.0
    %1875 = vmatpush2.xpose.msra.mxu0 0.0
    %1876 = vmatprep.subr.mxu0 0.0
    %1877 = vmatpush2.xpose.msra.mxu0 0.0
    %1878 = vmatprep.subr.mxu0 0.0
    %1879 = vmatpush2.xpose.msra.mxu0 0.0
    %1880 = vmatprep.subr.mxu0 0.0
    %1881 = vmatpush2.xpose.msra.mxu0 0.0
    %1882 = vmatprep.subr.mxu0 0.0
    %1883 = vmatpush2.xpose.msra.mxu0 0.0
    %1884 = vmatprep.subr.mxu0 0.0
    %1885 = vmatpush2.xpose.msra.mxu0 0.0
    %1886 = vmatprep.mubr.f32.mxu0 0.0
    %1887 = vmatmul.mubr.f32.gmra.mxu0 %v1818
    %v1888 = vpop.f32.mrf.mxu0
    %v1889 = vadd.f32 0.0, %v1888
    %v1890 = vpop.f32.mrf.mxu0
    %1891 = vdwg.mxu0
    %v1892 = vsel %vm369, %v1889, -inf
    %1893 = vmax.xlane.f32.xlu0 %v1892
    %v1894 = vpop.xlane.xlu0 %1893
    %v1895 = vsub.f32 %v1889, %v1894
    %v1896 = vmul.f32 %v1895, 1.442695
    %v1897 = vpow.pop %v1896
    %v1898 = vsel %vm369, %v1897, 0.0
    %1899 = vadd.xlane.f32.xlu0 %v1898
    %v1900 = vpop.xlane.xlu0 %1899
    %v1901 = vrcp.pop %v1900
    %v1902 = vmul.f32 %v1897, %v1901
    %1903 = vrot.lane.b32.xlu0 %v364, 112
    %v1904 = vpop.permute.xlu0 %1903
    %v1907 = vsel %vm369, %v1902, 0
    %1909 = vmatprep.subr.mxu0 0.0
    %1910 = vmatpush1.msra.mxu0 0.0
    %1911 = vmatprep.subr.mxu0 0.0
    %1912 = vmatpush1.msra.mxu0 0.0
    %1913 = vmatprep.subr.mxu0 0.0
    %1914 = vmatpush1.msra.mxu0 0.0
    %1915 = vmatprep.subr.mxu0 0.0
    %1916 = vmatpush1.msra.mxu0 0.0
    %1917 = vmatprep.subr.mxu0 0.0
    %1918 = vmatpush1.msra.mxu0 0.0
    %1919 = vmatprep.subr.mxu0 0.0
    %1920 = vmatpush1.msra.mxu0 0.0
    %1921 = vmatprep.subr.mxu0 0.0
    %1922 = vmatpush1.msra.mxu0 0.0
    %1923 = vmatprep.subr.mxu0 0.0
    %1924 = vmatpush1.msra.mxu0 0.0
    %1925 = vmatprep.subr.mxu0 0.0
    %1926 = vmatpush1.msra.mxu0 0.0
    %1927 = vmatprep.subr.mxu0 0.0
    %1928 = vmatpush1.msra.mxu0 0.0
    %1929 = vmatprep.subr.mxu0 0.0
    %1930 = vmatpush1.msra.mxu0 0.0
    %1931 = vmatprep.subr.mxu0 0.0
    %1932 = vmatpush1.msra.mxu0 0.0
    %1933 = vmatprep.subr.mxu0 0.0
    %1934 = vmatpush1.msra.mxu0 0.0
    %1935 = vmatprep.subr.mxu0 0.0
    %1936 = vmatpush1.msra.mxu0 0.0
    %1937 = vmatprep.subr.mxu0 0.0
    %1938 = vmatpush1.msra.mxu0 0.0
    %1939 = vmatprep.subr.mxu0 0.0
    %1940 = vmatpush1.msra.mxu0 %v1904
    %1941 = vmatprep.subr.mxu0 0.0
    %1942 = vmatpush2.msra.mxu0 0.0
    %1943 = vmatprep.subr.mxu0 0.0
    %1944 = vmatpush2.msra.mxu0 0.0
    %1945 = vmatprep.subr.mxu0 0.0
    %1946 = vmatpush2.msra.mxu0 0.0
    %1947 = vmatprep.subr.mxu0 0.0
    %1948 = vmatpush2.msra.mxu0 0.0
    %1949 = vmatprep.subr.mxu0 0.0
    %1950 = vmatpush2.msra.mxu0 0.0
    %1951 = vmatprep.subr.mxu0 0.0
    %1952 = vmatpush2.msra.mxu0 0.0
    %1953 = vmatprep.subr.mxu0 0.0
    %1954 = vmatpush2.msra.mxu0 0.0
    %1955 = vmatprep.subr.mxu0 0.0
    %1956 = vmatpush2.msra.mxu0 0.0
    %1957 = vmatprep.subr.mxu0 0.0
    %1958 = vmatpush2.msra.mxu0 0.0
    %1959 = vmatprep.subr.mxu0 0.0
    %1960 = vmatpush2.msra.mxu0 0.0
    %1961 = vmatprep.subr.mxu0 0.0
    %1962 = vmatpush2.msra.mxu0 0.0
    %1963 = vmatprep.subr.mxu0 0.0
    %1964 = vmatpush2.msra.mxu0 0.0
    %1965 = vmatprep.subr.mxu0 0.0
    %1966 = vmatpush2.msra.mxu0 0.0
    %1967 = vmatprep.subr.mxu0 0.0
    %1968 = vmatpush2.msra.mxu0 0.0
    %1969 = vmatprep.subr.mxu0 0.0
    %1970 = vmatpush2.msra.mxu0 0.0
    %1971 = vmatprep.subr.mxu0 0.0
    %1972 = vmatpush2.msra.mxu0 0.0
    %1973 = vmatprep.mubr.f32.mxu0 0.0
    %1974 = vmatmul.mubr.f32.gmra.mxu0 %v1907
    %v1975 = vpop.f32.mrf.mxu0
    %v1976 = vadd.f32 0.0, %v1975
    %v1977 = vpop.f32.mrf.mxu0
    %1978 = vdwg.mxu0
    %v1979 = vld [vmem:[#allocation2 + $0x8] sm:$0xff]
    %v1980 = vld [vmem:[#allocation6 + $0x10] sm:$0xff]
    %v1982 = vsel %vm369, %v1976, 0
    %1984 = vmatprep.subr.mxu0 0.0
    %1985 = vmatpush1.msra.mxu0 0.0
    %1986 = vmatprep.subr.mxu0 0.0
    %1987 = vmatpush1.msra.mxu0 0.0
    %1988 = vmatprep.subr.mxu0 0.0
    %1989 = vmatpush1.msra.mxu0 0.0
    %1990 = vmatprep.subr.mxu0 0.0
    %1991 = vmatpush1.msra.mxu0 0.0
    %1992 = vmatprep.subr.mxu0 0.0
    %1993 = vmatpush1.msra.mxu0 0.0
    %1994 = vmatprep.subr.mxu0 0.0
    %1995 = vmatpush1.msra.mxu0 0.0
    %1996 = vmatprep.subr.mxu0 0.0
    %1997 = vmatpush1.msra.mxu0 0.0
    %1998 = vmatprep.subr.mxu0 0.0
    %1999 = vmatpush1.msra.mxu0 0.0
    %2000 = vmatprep.subr.mxu0 0.0
    %2001 = vmatpush1.msra.mxu0 0.0
    %2002 = vmatprep.subr.mxu0 0.0
    %2003 = vmatpush1.msra.mxu0 0.0
    %2004 = vmatprep.subr.mxu0 0.0
    %2005 = vmatpush1.msra.mxu0 0.0
    %2006 = vmatprep.subr.mxu0 0.0
    %2007 = vmatpush1.msra.mxu0 0.0
    %2008 = vmatprep.subr.mxu0 0.0
    %2009 = vmatpush1.msra.mxu0 0.0
    %2010 = vmatprep.subr.mxu0 0.0
    %2011 = vmatpush1.msra.mxu0 0.0
    %2012 = vmatprep.subr.mxu0 0.0
    %2013 = vmatpush1.msra.mxu0 0.0
    %2014 = vmatprep.subr.mxu0 0.0
    %2015 = vmatpush1.msra.mxu0 %v1980
    %2016 = vmatprep.subr.mxu0 0.0
    %2017 = vmatpush2.msra.mxu0 0.0
    %2018 = vmatprep.subr.mxu0 0.0
    %2019 = vmatpush2.msra.mxu0 0.0
    %2020 = vmatprep.subr.mxu0 0.0
    %2021 = vmatpush2.msra.mxu0 0.0
    %2022 = vmatprep.subr.mxu0 0.0
    %2023 = vmatpush2.msra.mxu0 0.0
    %2024 = vmatprep.subr.mxu0 0.0
    %2025 = vmatpush2.msra.mxu0 0.0
    %2026 = vmatprep.subr.mxu0 0.0
    %2027 = vmatpush2.msra.mxu0 0.0
    %2028 = vmatprep.subr.mxu0 0.0
    %2029 = vmatpush2.msra.mxu0 0.0
    %2030 = vmatprep.subr.mxu0 0.0
    %2031 = vmatpush2.msra.mxu0 0.0
    %2032 = vmatprep.subr.mxu0 0.0
    %2033 = vmatpush2.msra.mxu0 0.0
    %2034 = vmatprep.subr.mxu0 0.0
    %2035 = vmatpush2.msra.mxu0 0.0
    %2036 = vmatprep.subr.mxu0 0.0
    %2037 = vmatpush2.msra.mxu0 0.0
    %2038 = vmatprep.subr.mxu0 0.0
    %2039 = vmatpush2.msra.mxu0 0.0
    %2040 = vmatprep.subr.mxu0 0.0
    %2041 = vmatpush2.msra.mxu0 0.0
    %2042 = vmatprep.subr.mxu0 0.0
    %2043 = vmatpush2.msra.mxu0 0.0
    %2044 = vmatprep.subr.mxu0 0.0
    %2045 = vmatpush2.msra.mxu0 0.0
    %2046 = vmatprep.subr.mxu0 0.0
    %2047 = vmatpush2.msra.mxu0 0.0
    %2048 = vmatprep.mubr.f32.mxu0 0.0
    %2049 = vmatmul.mubr.f32.gmra.mxu0 %v1982
    %v2050 = vpop.f32.mrf.mxu0
    %v2051 = vadd.f32 0.0, %v2050
    %v2052 = vpop.f32.mrf.mxu0
    %2053 = vdwg.mxu0
    %v2054 = vadd.f32 %v1979, %v2051
    %2055 = vst.msk [vmem:[#allocation2 + $0x8] sm:$0xff] %vm111, %v2054
    %2056 = vrot.lane.b32.xlu0 %v194, 104
    %v2057 = vpop.permute.xlu0 %2056
    %2058 = vrot.lane.b32.xlu0 %v278, 104
    %v2059 = vpop.permute.xlu0 %2058
    %v2060 = vsel %vm369, %v2057, 0
    %v2062 = vsel %vm369, %v2059, 0
    %2064 = vmatprep.subr.mxu0 0.0
    %2065 = vmatpush1.xpose.msra.mxu0 0.0
    %2066 = vmatprep.subr.mxu0 0.0
    %2067 = vmatpush1.xpose.msra.mxu0 0.0
    %2068 = vmatprep.subr.mxu0 0.0
    %2069 = vmatpush1.xpose.msra.mxu0 0.0
    %2070 = vmatprep.subr.mxu0 0.0
    %2071 = vmatpush1.xpose.msra.mxu0 0.0
    %2072 = vmatprep.subr.mxu0 0.0
    %2073 = vmatpush1.xpose.msra.mxu0 0.0
    %2074 = vmatprep.subr.mxu0 0.0
    %2075 = vmatpush1.xpose.msra.mxu0 0.0
    %2076 = vmatprep.subr.mxu0 0.0
    %2077 = vmatpush1.xpose.msra.mxu0 0.0
    %2078 = vmatprep.subr.mxu0 0.0
    %2079 = vmatpush1.xpose.msra.mxu0 0.0
    %2080 = vmatprep.subr.mxu0 0.0
    %2081 = vmatpush1.xpose.msra.mxu0 0.0
    %2082 = vmatprep.subr.mxu0 0.0
    %2083 = vmatpush1.xpose.msra.mxu0 0.0
    %2084 = vmatprep.subr.mxu0 0.0
    %2085 = vmatpush1.xpose.msra.mxu0 0.0
    %2086 = vmatprep.subr.mxu0 0.0
    %2087 = vmatpush1.xpose.msra.mxu0 0.0
    %2088 = vmatprep.subr.mxu0 0.0
    %2089 = vmatpush1.xpose.msra.mxu0 0.0
    %2090 = vmatprep.subr.mxu0 0.0
    %2091 = vmatpush1.xpose.msra.mxu0 0.0
    %2092 = vmatprep.subr.mxu0 0.0
    %2093 = vmatpush1.xpose.msra.mxu0 0.0
    %2094 = vmatprep.subr.mxu0 0.0
    %2095 = vmatpush1.xpose.msra.mxu0 %v2062
    %2096 = vmatprep.subr.mxu0 0.0
    %2097 = vmatpush2.xpose.msra.mxu0 0.0
    %2098 = vmatprep.subr.mxu0 0.0
    %2099 = vmatpush2.xpose.msra.mxu0 0.0
    %2100 = vmatprep.subr.mxu0 0.0
    %2101 = vmatpush2.xpose.msra.mxu0 0.0
    %2102 = vmatprep.subr.mxu0 0.0
    %2103 = vmatpush2.xpose.msra.mxu0 0.0
    %2104 = vmatprep.subr.mxu0 0.0
    %2105 = vmatpush2.xpose.msra.mxu0 0.0
    %2106 = vmatprep.subr.mxu0 0.0
    %2107 = vmatpush2.xpose.msra.mxu0 0.0
    %2108 = vmatprep.subr.mxu0 0.0
    %2109 = vmatpush2.xpose.msra.mxu0 0.0
    %2110 = vmatprep.subr.mxu0 0.0
    %2111 = vmatpush2.xpose.msra.mxu0 0.0
    %2112 = vmatprep.subr.mxu0 0.0
    %2113 = vmatpush2.xpose.msra.mxu0 0.0
    %2114 = vmatprep.subr.mxu0 0.0
    %2115 = vmatpush2.xpose.msra.mxu0 0.0
    %2116 = vmatprep.subr.mxu0 0.0
    %2117 = vmatpush2.xpose.msra.mxu0 0.0
    %2118 = vmatprep.subr.mxu0 0.0
    %2119 = vmatpush2.xpose.msra.mxu0 0.0
    %2120 = vmatprep.subr.mxu0 0.0
    %2121 = vmatpush2.xpose.msra.mxu0 0.0
    %2122 = vmatprep.subr.mxu0 0.0
    %2123 = vmatpush2.xpose.msra.mxu0 0.0
    %2124 = vmatprep.subr.mxu0 0.0
    %2125 = vmatpush2.xpose.msra.mxu0 0.0
    %2126 = vmatprep.subr.mxu0 0.0
    %2127 = vmatpush2.xpose.msra.mxu0 0.0
    %2128 = vmatprep.mubr.f32.mxu0 0.0
    %2129 = vmatmul.mubr.f32.gmra.mxu0 %v2060
    %v2130 = vpop.f32.mrf.mxu0
    %v2131 = vadd.f32 0.0, %v2130
    %v2132 = vpop.f32.mrf.mxu0
    %2133 = vdwg.mxu0
    %v2134 = vsel %vm369, %v2131, -inf
    %2135 = vmax.xlane.f32.xlu0 %v2134
    %v2136 = vpop.xlane.xlu0 %2135
    %v2137 = vsub.f32 %v2131, %v2136
    %v2138 = vmul.f32 %v2137, 1.442695
    %v2139 = vpow.pop %v2138
    %v2140 = vsel %vm369, %v2139, 0.0
    %2141 = vadd.xlane.f32.xlu0 %v2140
    %v2142 = vpop.xlane.xlu0 %2141
    %v2143 = vrcp.pop %v2142
    %v2144 = vmul.f32 %v2139, %v2143
    %2145 = vrot.lane.b32.xlu0 %v364, 104
    %v2146 = vpop.permute.xlu0 %2145
    %v2149 = vsel %vm369, %v2144, 0
    %2151 = vmatprep.subr.mxu0 0.0
    %2152 = vmatpush1.msra.mxu0 0.0
    %2153 = vmatprep.subr.mxu0 0.0
    %2154 = vmatpush1.msra.mxu0 0.0
    %2155 = vmatprep.subr.mxu0 0.0
    %2156 = vmatpush1.msra.mxu0 0.0
    %2157 = vmatprep.subr.mxu0 0.0
    %2158 = vmatpush1.msra.mxu0 0.0
    %2159 = vmatprep.subr.mxu0 0.0
    %2160 = vmatpush1.msra.mxu0 0.0
    %2161 = vmatprep.subr.mxu0 0.0
    %2162 = vmatpush1.msra.mxu0 0.0
    %2163 = vmatprep.subr.mxu0 0.0
    %2164 = vmatpush1.msra.mxu0 0.0
    %2165 = vmatprep.subr.mxu0 0.0
    %2166 = vmatpush1.msra.mxu0 0.0
    %2167 = vmatprep.subr.mxu0 0.0
    %2168 = vmatpush1.msra.mxu0 0.0
    %2169 = vmatprep.subr.mxu0 0.0
    %2170 = vmatpush1.msra.mxu0 0.0
    %2171 = vmatprep.subr.mxu0 0.0
    %2172 = vmatpush1.msra.mxu0 0.0
    %2173 = vmatprep.subr.mxu0 0.0
    %2174 = vmatpush1.msra.mxu0 0.0
    %2175 = vmatprep.subr.mxu0 0.0
    %2176 = vmatpush1.msra.mxu0 0.0
    %2177 = vmatprep.subr.mxu0 0.0
    %2178 = vmatpush1.msra.mxu0 0.0
    %2179 = vmatprep.subr.mxu0 0.0
    %2180 = vmatpush1.msra.mxu0 0.0
    %2181 = vmatprep.subr.mxu0 0.0
    %2182 = vmatpush1.msra.mxu0 %v2146
    %2183 = vmatprep.subr.mxu0 0.0
    %2184 = vmatpush2.msra.mxu0 0.0
    %2185 = vmatprep.subr.mxu0 0.0
    %2186 = vmatpush2.msra.mxu0 0.0
    %2187 = vmatprep.subr.mxu0 0.0
    %2188 = vmatpush2.msra.mxu0 0.0
    %2189 = vmatprep.subr.mxu0 0.0
    %2190 = vmatpush2.msra.mxu0 0.0
    %2191 = vmatprep.subr.mxu0 0.0
    %2192 = vmatpush2.msra.mxu0 0.0
    %2193 = vmatprep.subr.mxu0 0.0
    %2194 = vmatpush2.msra.mxu0 0.0
    %2195 = vmatprep.subr.mxu0 0.0
    %2196 = vmatpush2.msra.mxu0 0.0
    %2197 = vmatprep.subr.mxu0 0.0
    %2198 = vmatpush2.msra.mxu0 0.0
    %2199 = vmatprep.subr.mxu0 0.0
    %2200 = vmatpush2.msra.mxu0 0.0
    %2201 = vmatprep.subr.mxu0 0.0
    %2202 = vmatpush2.msra.mxu0 0.0
    %2203 = vmatprep.subr.mxu0 0.0
    %2204 = vmatpush2.msra.mxu0 0.0
    %2205 = vmatprep.subr.mxu0 0.0
    %2206 = vmatpush2.msra.mxu0 0.0
    %2207 = vmatprep.subr.mxu0 0.0
    %2208 = vmatpush2.msra.mxu0 0.0
    %2209 = vmatprep.subr.mxu0 0.0
    %2210 = vmatpush2.msra.mxu0 0.0
    %2211 = vmatprep.subr.mxu0 0.0
    %2212 = vmatpush2.msra.mxu0 0.0
    %2213 = vmatprep.subr.mxu0 0.0
    %2214 = vmatpush2.msra.mxu0 0.0
    %2215 = vmatprep.mubr.f32.mxu0 0.0
    %2216 = vmatmul.mubr.f32.gmra.mxu0 %v2149
    %v2217 = vpop.f32.mrf.mxu0
    %v2218 = vadd.f32 0.0, %v2217
    %v2219 = vpop.f32.mrf.mxu0
    %2220 = vdwg.mxu0
    %v2221 = vld [vmem:[#allocation2 + $0x8] sm:$0xff]
    %v2222 = vld [vmem:[#allocation6 + $0x18] sm:$0xff]
    %v2224 = vsel %vm369, %v2218, 0
    %2226 = vmatprep.subr.mxu0 0.0
    %2227 = vmatpush1.msra.mxu0 0.0
    %2228 = vmatprep.subr.mxu0 0.0
    %2229 = vmatpush1.msra.mxu0 0.0
    %2230 = vmatprep.subr.mxu0 0.0
    %2231 = vmatpush1.msra.mxu0 0.0
    %2232 = vmatprep.subr.mxu0 0.0
    %2233 = vmatpush1.msra.mxu0 0.0
    %2234 = vmatprep.subr.mxu0 0.0
    %2235 = vmatpush1.msra.mxu0 0.0
    %2236 = vmatprep.subr.mxu0 0.0
    %2237 = vmatpush1.msra.mxu0 0.0
    %2238 = vmatprep.subr.mxu0 0.0
    %2239 = vmatpush1.msra.mxu0 0.0
    %2240 = vmatprep.subr.mxu0 0.0
    %2241 = vmatpush1.msra.mxu0 0.0
    %2242 = vmatprep.subr.mxu0 0.0
    %2243 = vmatpush1.msra.mxu0 0.0
    %2244 = vmatprep.subr.mxu0 0.0
    %2245 = vmatpush1.msra.mxu0 0.0
    %2246 = vmatprep.subr.mxu0 0.0
    %2247 = vmatpush1.msra.mxu0 0.0
    %2248 = vmatprep.subr.mxu0 0.0
    %2249 = vmatpush1.msra.mxu0 0.0
    %2250 = vmatprep.subr.mxu0 0.0
    %2251 = vmatpush1.msra.mxu0 0.0
    %2252 = vmatprep.subr.mxu0 0.0
    %2253 = vmatpush1.msra.mxu0 0.0
    %2254 = vmatprep.subr.mxu0 0.0
    %2255 = vmatpush1.msra.mxu0 0.0
    %2256 = vmatprep.subr.mxu0 0.0
    %2257 = vmatpush1.msra.mxu0 %v2222
    %2258 = vmatprep.subr.mxu0 0.0
    %2259 = vmatpush2.msra.mxu0 0.0
    %2260 = vmatprep.subr.mxu0 0.0
    %2261 = vmatpush2.msra.mxu0 0.0
    %2262 = vmatprep.subr.mxu0 0.0
    %2263 = vmatpush2.msra.mxu0 0.0
    %2264 = vmatprep.subr.mxu0 0.0
    %2265 = vmatpush2.msra.mxu0 0.0
    %2266 = vmatprep.subr.mxu0 0.0
    %2267 = vmatpush2.msra.mxu0 0.0
    %2268 = vmatprep.subr.mxu0 0.0
    %2269 = vmatpush2.msra.mxu0 0.0
    %2270 = vmatprep.subr.mxu0 0.0
    %2271 = vmatpush2.msra.mxu0 0.0
    %2272 = vmatprep.subr.mxu0 0.0
    %2273 = vmatpush2.msra.mxu0 0.0
    %2274 = vmatprep.subr.mxu0 0.0
    %2275 = vmatpush2.msra.mxu0 0.0
    %2276 = vmatprep.subr.mxu0 0.0
    %2277 = vmatpush2.msra.mxu0 0.0
    %2278 = vmatprep.subr.mxu0 0.0
    %2279 = vmatpush2.msra.mxu0 0.0
    %2280 = vmatprep.subr.mxu0 0.0
    %2281 = vmatpush2.msra.mxu0 0.0
    %2282 = vmatprep.subr.mxu0 0.0
    %2283 = vmatpush2.msra.mxu0 0.0
    %2284 = vmatprep.subr.mxu0 0.0
    %2285 = vmatpush2.msra.mxu0 0.0
    %2286 = vmatprep.subr.mxu0 0.0
    %2287 = vmatpush2.msra.mxu0 0.0
    %2288 = vmatprep.subr.mxu0 0.0
    %2289 = vmatpush2.msra.mxu0 0.0
    %2290 = vmatprep.mubr.f32.mxu0 0.0
    %2291 = vmatmul.mubr.f32.gmra.mxu0 %v2224
    %v2292 = vpop.f32.mrf.mxu0
    %v2293 = vadd.f32 0.0, %v2292
    %v2294 = vpop.f32.mrf.mxu0
    %2295 = vdwg.mxu0
    %v2296 = vadd.f32 %v2221, %v2293
    %2297 = vst.msk [vmem:[#allocation2 + $0x8] sm:$0xff] %vm111, %v2296
    %v2298 = vld [vmem:[#allocation2] sm:$0xff]
    %v2299 = vld [vmem:[#allocation2 + $0x8] sm:$0xff]
    %v2300 = vld [vmem:[%s8] sm:$0x1]
    %v2302 = vlaneseq
    %v2303 = vshrl.u32 %v2302, 7
    %v2304 = vsub.s32 0, %v2303
    %v2305 = vrot.slane %v2300, %v2304
    %v2307 = vadd.f32 %v2298, %v2305
    %v2308 = vadd.f32 %v2299, %v2305
    %v2309 = vadd.f32 %v98, %v2307
    %v2310 = vadd.f32 %v99, %v2308
    %v2311 = vsel %vm111, %v2309, 0.0
    %2312 = vadd.xlane.f32.xlu0 %v2311
    %v2313 = vpop.xlane.xlu0 %2312
    %v2314 = vsel %vm111, %v2310, 0.0
    %2315 = vadd.xlane.f32.xlu0 %v2314
    %v2316 = vpop.xlane.xlu0 %2315
    %v2317 = vrcp.pop 32.0
    %v2318 = vmul.f32 %v2313, %v2317
    %v2319 = vmul.f32 %v2316, %v2317
    %v2320 = vsub.f32 %v2309, %v2318
    %v2321 = vsub.f32 %v2310, %v2319
    %v2322 = vmul.f32 %v2320, %v2320
    %v2323 = vmul.f32 %v2321, %v2321
    %v2324 = vsel %vm111, %v2322, 0.0
    %2325 = vadd.xlane.f32.xlu0 %v2324
    %v2326 = vpop.xlane.xlu0 %2325
    %v2327 = vsel %vm111, %v2323, 0.0
    %2328 = vadd.xlane.f32.xlu0 %v2327
    %v2329 = vpop.xlane.xlu0 %2328
    %v2330 = vmul.f32 %v2326, %v2317
    %v2331 = vmul.f32 %v2329, %v2317
    %v2332 = vadd.f32 %v2330, 1e-05
    %v2333 = vadd.f32 %v2331, 1e-05
    %v2334 = vrsqrt.pop %v2332
    %v2335 = vrsqrt.pop %v2333
    %v2336 = vmul.f32 %v2320, %v2334
    %v2337 = vmul.f32 %v2321, %v2335
    %v2338 = vld [vmem:[%s13] sm:$0x1]
    %v2340 = vlaneseq
    %v2341 = vshrl.u32 %v2340, 7
    %v2342 = vsub.s32 0, %v2341
    %v2343 = vrot.slane %v2338, %v2342
    %v2345 = vmul.f32 %v2336, %v2343
    %v2346 = vmul.f32 %v2337, %v2343
    %v2347 = vld [vmem:[%s14] sm:$0x1]
    %v2349 = vlaneseq
    %v2350 = vshrl.u32 %v2349, 7
    %v2351 = vsub.s32 0, %v2350
    %v2352 = vrot.slane %v2347, %v2351
    %v2354 = vadd.f32 %v2345, %v2352
    %v2355 = vadd.f32 %v2346, %v2352
    %v2356 = vld [vmem:[#allocation8] sm:$0xff]
    %v2357 = vld [vmem:[#allocation8 + $0x8] sm:$0xff]
    %v2358 = vld [vmem:[#allocation8 + $0x10] sm:$0xff]
    %v2359 = vld [vmem:[#allocation8 + $0x18] sm:$0xff]
    %v2360 = vld [vmem:[%s10] sm:$0x1]
    %v2362 = vlaneseq
    %v2363 = vshrl.u32 %v2362, 7
    %v2364 = vsub.s32 0, %v2363
    %v2365 = vrot.slane %v2360, %v2364
    %v2368 = vsel %vm111, %v2354, 0
    %v2371 = vsel %vm111, %v2355, 0
    %2373 = vmatprep.subr.mxu0 0.0
    %2374 = vmatpush1.msra.mxu0 0.0
    %2375 = vmatprep.subr.mxu0 0.0
    %2376 = vmatpush1.msra.mxu0 0.0
    %2377 = vmatprep.subr.mxu0 0.0
    %2378 = vmatpush1.msra.mxu0 0.0
    %2379 = vmatprep.subr.mxu0 0.0
    %2380 = vmatpush1.msra.mxu0 0.0
    %2381 = vmatprep.subr.mxu0 0.0
    %2382 = vmatpush1.msra.mxu0 0.0
    %2383 = vmatprep.subr.mxu0 0.0
    %2384 = vmatpush1.msra.mxu0 0.0
    %2385 = vmatprep.subr.mxu0 0.0
    %2386 = vmatpush1.msra.mxu0 0.0
    %2387 = vmatprep.subr.mxu0 0.0
    %2388 = vmatpush1.msra.mxu0 0.0
    %2389 = vmatprep.subr.mxu0 0.0
    %2390 = vmatpush1.msra.mxu0 0.0
    %2391 = vmatprep.subr.mxu0 0.0
    %2392 = vmatpush1.msra.mxu0 0.0
    %2393 = vmatprep.subr.mxu0 0.0
    %2394 = vmatpush1.msra.mxu0 0.0
    %2395 = vmatprep.subr.mxu0 0.0
    %2396 = vmatpush1.msra.mxu0 0.0
    %2397 = vmatprep.subr.mxu0 0.0
    %2398 = vmatpush1.msra.mxu0 %v2359
    %2399 = vmatprep.subr.mxu0 0.0
    %2400 = vmatpush1.msra.mxu0 %v2358
    %2401 = vmatprep.subr.mxu0 0.0
    %2402 = vmatpush1.msra.mxu0 %v2357
    %2403 = vmatprep.subr.mxu0 0.0
    %2404 = vmatpush1.msra.mxu0 %v2356
    %2405 = vmatprep.subr.mxu0 0.0
    %2406 = vmatpush2.msra.mxu0 0.0
    %2407 = vmatprep.subr.mxu0 0.0
    %2408 = vmatpush2.msra.mxu0 0.0
    %2409 = vmatprep.subr.mxu0 0.0
    %2410 = vmatpush2.msra.mxu0 0.0
    %2411 = vmatprep.subr.mxu0 0.0
    %2412 = vmatpush2.msra.mxu0 0.0
    %2413 = vmatprep.subr.mxu0 0.0
    %2414 = vmatpush2.msra.mxu0 0.0
    %2415 = vmatprep.subr.mxu0 0.0
    %2416 = vmatpush2.msra.mxu0 0.0
    %2417 = vmatprep.subr.mxu0 0.0
    %2418 = vmatpush2.msra.mxu0 0.0
    %2419 = vmatprep.subr.mxu0 0.0
    %2420 = vmatpush2.msra.mxu0 0.0
    %2421 = vmatprep.subr.mxu0 0.0
    %2422 = vmatpush2.msra.mxu0 0.0
    %2423 = vmatprep.subr.mxu0 0.0
    %2424 = vmatpush2.msra.mxu0 0.0
    %2425 = vmatprep.subr.mxu0 0.0
    %2426 = vmatpush2.msra.mxu0 0.0
    %2427 = vmatprep.subr.mxu0 0.0
    %2428 = vmatpush2.msra.mxu0 0.0
    %2429 = vmatprep.subr.mxu0 0.0
    %2430 = vmatpush2.msra.mxu0 0.0
    %2431 = vmatprep.subr.mxu0 0.0
    %2432 = vmatpush2.msra.mxu0 0.0
    %2433 = vmatprep.subr.mxu0 0.0
    %2434 = vmatpush2.msra.mxu0 0.0
    %2435 = vmatprep.subr.mxu0 0.0
    %2436 = vmatpush2.msra.mxu0 0.0
    %2437 = vmatprep.mubr.f32.mxu0 0.0
    %2438 = vmatmul.mubr.f32.gmra.mxu0 %v2368
    %v2439 = vpop.f32.mrf.mxu0
    %v2440 = vadd.f32 %v2365, %v2439
    %v2441 = vpop.f32.mrf.mxu0
    %2442 = vmatprep.mubr.f32.mxu0 0.0
    %2443 = vmatmul.mubr.f32.gmra.mxu0 %v2371
    %v2444 = vpop.f32.mrf.mxu0
    %v2445 = vadd.f32 %v2365, %v2444
    %v2446 = vpop.f32.mrf.mxu0
    %2447 = vdwg.mxu0
    %v2448 = vmax.f32 %v2440, 0.0
    %v2449 = vmax.f32 %v2445, 0.0
    %v2450 = vld [vmem:[%s11] sm:$0xff]
    %v2451 = vld [vmem:[%s11 + $0x8] sm:$0xff]
    %v2452 = vld [vmem:[%s11 + $0x10] sm:$0xff]
    %v2453 = vld [vmem:[%s11 + $0x18] sm:$0xff]
    %v2454 = vld [vmem:[%s11 + $0x20] sm:$0xff]
    %v2455 = vld [vmem:[%s11 + $0x28] sm:$0xff]
    %v2456 = vld [vmem:[%s11 + $0x30] sm:$0xff]
    %v2457 = vld [vmem:[%s11 + $0x38] sm:$0xff]
    %v2458 = vld [vmem:[%s12] sm:$0x1]
    %v2460 = vlaneseq
    %v2461 = vshrl.u32 %v2460, 7
    %v2462 = vsub.s32 0, %v2461
    %v2463 = vrot.slane %v2458, %v2462
    %vm2465 = vcmask 523264
    %v2467 = vsel %vm2465, %v2448, 0
    %v2470 = vsel %vm2465, %v2449, 0
    %2472 = vmatprep.subr.mxu0 0.0
    %2473 = vmatpush1.msra.mxu0 0.0
    %2474 = vmatprep.subr.mxu0 0.0
    %2475 = vmatpush1.msra.mxu0 0.0
    %2476 = vmatprep.subr.mxu0 0.0
    %2477 = vmatpush1.msra.mxu0 0.0
    %2478 = vmatprep.subr.mxu0 0.0
    %2479 = vmatpush1.msra.mxu0 0.0
    %2480 = vmatprep.subr.mxu0 0.0
    %2481 = vmatpush1.msra.mxu0 0.0
    %2482 = vmatprep.subr.mxu0 0.0
    %2483 = vmatpush1.msra.mxu0 0.0
    %2484 = vmatprep.subr.mxu0 0.0
    %2485 = vmatpush1.msra.mxu0 0.0
    %2486 = vmatprep.subr.mxu0 0.0
    %2487 = vmatpush1.msra.mxu0 0.0
    %2488 = vmatprep.subr.mxu0 0.0
    %2489 = vmatpush1.msra.mxu0 %v2457
    %2490 = vmatprep.subr.mxu0 0.0
    %2491 = vmatpush1.msra.mxu0 %v2456
    %2492 = vmatprep.subr.mxu0 0.0
    %2493 = vmatpush1.msra.mxu0 %v2455
    %2494 = vmatprep.subr.mxu0 0.0
    %2495 = vmatpush1.msra.mxu0 %v2454
    %2496 = vmatprep.subr.mxu0 0.0
    %2497 = vmatpush1.msra.mxu0 %v2453
    %2498 = vmatprep.subr.mxu0 0.0
    %2499 = vmatpush1.msra.mxu0 %v2452
    %2500 = vmatprep.subr.mxu0 0.0
    %2501 = vmatpush1.msra.mxu0 %v2451
    %2502 = vmatprep.subr.mxu0 0.0
    %2503 = vmatpush1.msra.mxu0 %v2450
    %2504 = vmatprep.subr.mxu0 0.0
    %2505 = vmatpush2.msra.mxu0 0.0
    %2506 = vmatprep.subr.mxu0 0.0
    %2507 = vmatpush2.msra.mxu0 0.0
    %2508 = vmatprep.subr.mxu0 0.0
    %2509 = vmatpush2.msra.mxu0 0.0
    %2510 = vmatprep.subr.mxu0 0.0
    %2511 = vmatpush2.msra.mxu0 0.0
    %2512 = vmatprep.subr.mxu0 0.0
    %2513 = vmatpush2.msra.mxu0 0.0
    %2514 = vmatprep.subr.mxu0 0.0
    %2515 = vmatpush2.msra.mxu0 0.0
    %2516 = vmatprep.subr.mxu0 0.0
    %2517 = vmatpush2.msra.mxu0 0.0
    %2518 = vmatprep.subr.mxu0 0.0
    %2519 = vmatpush2.msra.mxu0 0.0
    %2520 = vmatprep.subr.mxu0 0.0
    %2521 = vmatpush2.msra.mxu0 0.0
    %2522 = vmatprep.subr.mxu0 0.0
    %2523 = vmatpush2.msra.mxu0 0.0
    %2524 = vmatprep.subr.mxu0 0.0
    %2525 = vmatpush2.msra.mxu0 0.0
    %2526 = vmatprep.subr.mxu0 0.0
    %2527 = vmatpush2.msra.mxu0 0.0
    %2528 = vmatprep.subr.mxu0 0.0
    %2529 = vmatpush2.msra.mxu0 0.0
    %2530 = vmatprep.subr.mxu0 0.0
    %2531 = vmatpush2.msra.mxu0 0.0
    %2532 = vmatprep.subr.mxu0 0.0
    %2533 = vmatpush2.msra.mxu0 0.0
    %2534 = vmatprep.subr.mxu0 0.0
    %2535 = vmatpush2.msra.mxu0 0.0
    %2536 = vmatprep.mubr.f32.mxu0 0.0
    %2537 = vmatmul.mubr.f32.gmra.mxu0 %v2467
    %v2538 = vpop.f32.mrf.mxu0
    %v2539 = vadd.f32 %v2463, %v2538
    %v2540 = vpop.f32.mrf.mxu0
    %2541 = vmatprep.mubr.f32.mxu0 0.0
    %2542 = vmatmul.mubr.f32.gmra.mxu0 %v2470
    %v2543 = vpop.f32.mrf.mxu0
    %v2544 = vadd.f32 %v2463, %v2543
    %v2545 = vpop.f32.mrf.mxu0
    %2546 = vdwg.mxu0
    %v2547 = vadd.f32 %v2354, %v2539
    %v2548 = vadd.f32 %v2355, %v2544
    %v2549 = vsel %vm111, %v2547, 0.0
    %2550 = vadd.xlane.f32.xlu0 %v2549
    %v2551 = vpop.xlane.xlu0 %2550
    %v2552 = vsel %vm111, %v2548, 0.0
    %2553 = vadd.xlane.f32.xlu0 %v2552
    %v2554 = vpop.xlane.xlu0 %2553
    %v2555 = vmul.f32 %v2551, %v2317
    %v2556 = vmul.f32 %v2554, %v2317
    %v2557 = vsub.f32 %v2547, %v2555
    %v2558 = vsub.f32 %v2548, %v2556
    %v2559 = vmul.f32 %v2557, %v2557
    %v2560 = vmul.f32 %v2558, %v2558
    %v2561 = vsel %vm111, %v2559, 0.0
    %2562 = vadd.xlane.f32.xlu0 %v2561
    %v2563 = vpop.xlane.xlu0 %2562
    %v2564 = vsel %vm111, %v2560, 0.0
    %2565 = vadd.xlane.f32.xlu0 %v2564
    %v2566 = vpop.xlane.xlu0 %2565
    %v2567 = vmul.f32 %v2563, %v2317
    %v2568 = vmul.f32 %v2566, %v2317
    %v2569 = vadd.f32 %v2567, 1e-05
    %v2570 = vadd.f32 %v2568, 1e-05
    %v2571 = vrsqrt.pop %v2569
    %v2572 = vrsqrt.pop %v2570
    %v2573 = vmul.f32 %v2557, %v2571
    %v2574 = vmul.f32 %v2558, %v2572
    %v2575 = vld [vmem:[%s15] sm:$0x1]
    %v2577 = vlaneseq
    %v2578 = vshrl.u32 %v2577, 7
    %v2579 = vsub.s32 0, %v2578
    %v2580 = vrot.slane %v2575, %v2579
    %v2582 = vmul.f32 %v2573, %v2580
    %v2583 = vmul.f32 %v2574, %v2580
    %v2584 = vld [vmem:[%s16] sm:$0x1]
    %v2586 = vlaneseq
    %v2587 = vshrl.u32 %v2586, 7
    %v2588 = vsub.s32 0, %v2587
    %v2589 = vrot.slane %v2584, %v2588
    %v2591 = vadd.f32 %v2582, %v2589
    %v2592 = vadd.f32 %v2583, %v2589
    %2593 = vst.msk [vmem:[#allocation9] sm:$0xff] %vm111, %v2591
    %2594 = vst.msk [vmem:[#allocation9 + $0x8] sm:$0xff] %vm111, %v2592
    // Predicated region
    $region82: #{tpu_custom_call.1} parent=1 // pred_check
      _
    $region83: #{tpu_custom_call.1} parent=1 // pred_check_branch
      %2596 = sbr.rel (0) target = $region85
    $region84: #{tpu_custom_call.1} parent=1 // pred_region
      %s2598 = ssub.s32 256, 256
      %2599 = vsyncadd [#allocation5], %s2598
      %s2600 = sshll.u32 [#allocation9], 4
      %s2601 = int_to_ptr.vmem [resolvable:$true] %s2600
      %2606 = dma.vmem_to_hbm [thread:$0]  %s2601, 256, %s17, [#allocation5], 128, 128, 8
    $region85: #{tpu_custom_call.1} parent=1 // pred_fallthru
      _
    // Predicated region
    $region86: #{tpu_custom_call.1} parent=1 // pred_check
      _
    $region87: #{tpu_custom_call.1} parent=1 // pred_check_branch
      %2608 = sbr.rel (0) target = $region89
    $region88: #{tpu_custom_call.1} parent=1 // pred_region
      %2609 = dma.done [#allocation5], 256
    $region89: #{tpu_custom_call.1} parent=1 // pred_fallthru
      _
    %2610 = vsyncpa [#allocation4], 1
    %2611 = vsyncpa [#allocation7], 1
    %2612 = vsyncpa [#allocation5], 1

</llo_original>
